<compile_context>
chip_gen: v7x
topology: tpu7x:2x2x1
jax: 0.10.0
libtpu: 0.0.40
codegen_flags: <defaults>
</compile_context>

<pallas_src>
import jax
import jax.numpy as jnp
from jax import lax
from jax.experimental import pallas as pl
from jax.experimental.pallas import tpu as pltpu

# ----------------------------- model hyper-parameters -----------------------------
B = 2            # batch
S = 8            # sequence length
D = 48           # d_model (must be divisible by nhead=6)
H = 6            # nhead (hardcoded in the module)
HD = D // H      # head dim = 8
DFF = 1024       # dim_feedforward (hardcoded in the module)
L = 2            # num_layers
VOCAB = 50       # embedding_matrix rows
NUM_NER = 9
NUM_POS = 17
CLS_PAD = 128    # lane-dense fused classifier output width
LN_EPS = 1e-5    # PyTorch LayerNorm default
N_TOK = B * S    # 16


def _layer_norm(x, gamma, beta):
    mu = jnp.mean(x, axis=-1, keepdims=True)
    xc = x - mu
    var = jnp.mean(xc * xc, axis=-1, keepdims=True)
    return xc * lax.rsqrt(var + LN_EPS) * gamma + beta


def transformer_ner_kernel(
    x_ref,          # (B*S, D)      token embedding + positional embedding
    kbias_ref,      # (B, 1, S, 1)  0.0 for valid keys, -1e9 for padded keys
    wqkv_ref,       # (L, D, 3D)    fused Q/K/V projection weight
    bqkv_ref,       # (L, 1, 3D)
    wo_ref,         # (L, D, D)
    vec_ref,        # (L, 6, D)     rows: bo, gamma1, beta1, b2, gamma2, beta2
    w1_ref,         # (L, D, DFF)
    b1_ref,         # (L, 1, DFF)
    w2_ref,         # (L, DFF, D)
    wcls_ref,       # (D, CLS_PAD)  [W_ner | W_pos | zero pad]
    bcls_ref,       # (1, CLS_PAD)
    out_ref,        # (B*S, CLS_PAD) fused, lane-dense logits
):
    x = x_ref[...]                                   # (16, 48)
    kbias = kbias_ref[...]                           # (2, 1, 8, 1)

    # Head-grouping matrices (built once in-kernel, no extra DMA):
    #   G[d, h]  = 1.0 iff lane d belongs to head h    (D, H)
    #   GT[h, d] = 1.0 iff lane d belongs to head h    (H, D)
    d_col = lax.broadcasted_iota(jnp.int32, (D, H), 0)
    h_col = lax.broadcasted_iota(jnp.int32, (D, H), 1)
    lo = h_col * HD
    G = jnp.where((d_col >= lo) & (d_col < lo + HD), 1.0, 0.0)
    h_row = lax.broadcasted_iota(jnp.int32, (H, D), 0)
    d_row = lax.broadcasted_iota(jnp.int32, (H, D), 1)
    lo2 = h_row * HD
    GT = jnp.where((d_row >= lo2) & (d_row < lo2 + HD), 1.0, 0.0)

    scale = 1.0 / (float(HD) ** 0.5)

    for l in range(L):                               # static unroll, L = 2
        # ---------------- multi-head self attention (all heads at once) ----------
        # fused QKV projection: one (16,48)@(48,144) MXU matmul
        qkv = jnp.dot(x, wqkv_ref[l], preferred_element_type=jnp.float32) + bqkv_ref[l]
        q3 = (qkv[:, 0:D] * scale).reshape(B, S, D)          # (B,S,D)
        k3 = qkv[:, D:2 * D].reshape(B, S, D)
        v3 = qkv[:, 2 * D:3 * D].reshape(B, S, D)

        # scores[b,i,j,h] = sum_{d in head h} q[b,i,d]*k[b,j,d]
        # broadcast-multiply on the VPU, per-head lane-group sum via G
        prod = q3[:, :, None, :] * k3[:, None, :, :]          # (B,Sq,Sk,D)
        scores = jnp.dot(prod.reshape(B * S * S, D), G,
                         preferred_element_type=jnp.float32).reshape(B, S, S, H)
        scores = scores + kbias                               # mask padded keys

        # softmax over keys (axis=2); divide on the EUP via approx reciprocal
        m = jnp.max(scores, axis=2, keepdims=True)
        p = jnp.exp(scores - m)
        denom = jnp.sum(p, axis=2, keepdims=True)
        p = p * pl.reciprocal(denom, approx=True)             # (B,Sq,Sk,H)

        # expand per-head weights back to per-lane and weight the values (VPU)
        pd = jnp.dot(p.reshape(B * S * S, H), GT,
                     preferred_element_type=jnp.float32).reshape(B, S, S, D)
        ctx = jnp.sum(pd * v3[:, None, :, :], axis=2)         # (B,Sq,D)
        ctx2 = ctx.reshape(N_TOK, D)                          # (16, 48)

        vl = vec_ref[l]                                       # (6, D)
        bo, g1, be1 = vl[0:1], vl[1:2], vl[2:3]
        b2, g2, be2 = vl[3:4], vl[4:5], vl[5:6]

        # single out-projection matmul for all heads
        attn_out = jnp.dot(ctx2, wo_ref[l], preferred_element_type=jnp.float32) + bo

        # residual + LayerNorm1 (norm_first=False; attention dropout == identity)
        x = _layer_norm(x + attn_out, g1, be1)

        # ---------------- feed-forward (ReLU) ----------------------
        hid = jnp.dot(x, w1_ref[l], preferred_element_type=jnp.float32) + b1_ref[l]
        hid = jnp.maximum(hid, 0.0)
        ff = jnp.dot(hid, w2_ref[l], preferred_element_type=jnp.float32) + b2

        # residual + LayerNorm2
        x = _layer_norm(x + ff, g2, be2)

    # ---------------- fused NER + POS classifiers (lane-dense store) ----------
    out_ref[...] = jnp.dot(x, wcls_ref[...],
                           preferred_element_type=jnp.float32) + bcls_ref[...]


# ----------------------------- parameter init (deterministic) ---------------------
def init_params(key):
    def nrm(k, shape, scale=0.02):
        return scale * jax.random.normal(k, shape, dtype=jnp.float32)

    ks = jax.random.split(key, 8)
    p = {}
    p['embedding'] = nrm(ks[0], (VOCAB, D), 1.0)        # embedding_matrix
    p['pos_embedding'] = nrm(ks[1], (512, D), 1.0)      # nn.Embedding(512, dim)

    # fused / packed per-layer encoder params
    p['wqkv'] = nrm(ks[2], (L, D, 3 * D))               # [Wq | Wk | Wv]
    p['bqkv'] = jnp.zeros((L, 1, 3 * D), jnp.float32)
    p['wo'] = nrm(ks[3], (L, D, D))
    # vec rows: 0 = bo, 1 = gamma1, 2 = beta1, 3 = b2, 4 = gamma2, 5 = beta2
    vec = jnp.zeros((L, 6, D), jnp.float32)
    vec = vec.at[:, 1, :].set(1.0).at[:, 4, :].set(1.0)
    p['vec'] = vec
    p['w1'] = nrm(ks[4], (L, D, DFF))
    p['b1'] = jnp.zeros((L, 1, DFF), jnp.float32)
    p['w2'] = nrm(ks[5], (L, DFF, D))

    # fused, zero-padded classifier: [W_ner (48,9) | W_pos (48,17) | 0 ... ] -> (48,128)
    wner = nrm(ks[6], (D, NUM_NER))
    wpos = nrm(ks[7], (D, NUM_POS))
    wcls = jnp.zeros((D, CLS_PAD), jnp.float32)
    wcls = wcls.at[:, :NUM_NER].set(wner)
    wcls = wcls.at[:, NUM_NER:NUM_NER + NUM_POS].set(wpos)
    p['wcls'] = wcls
    p['bcls'] = jnp.zeros((1, CLS_PAD), jnp.float32)
    return p


PARAM_ORDER = ['wqkv', 'bqkv', 'wo', 'vec', 'w1', 'b1', 'w2', 'wcls', 'bcls']


# ----------------------------- wrapper ---------------------------------------------
def transformer_ner_forward(token_ids, mask, params):
    b, s = token_ids.shape
    # Glue (plain JAX): embedding gather, positional add, mask -> additive key bias.
    x = jnp.take(params['embedding'], token_ids, axis=0)            # (B,S,D)
    x = x + params['pos_embedding'][:s][None, :, :]                 # + pos embedding
    x2 = x.reshape(b * s, D).astype(jnp.float32)                    # (B*S, D)
    kbias = jnp.where(mask, 0.0, -1e9).astype(jnp.float32)[:, None, :, None]  # (B,1,S,1)

    flat = [params[k] for k in PARAM_ORDER]
    vmem = pltpu.MemorySpace.VMEM
    n_in = 2 + len(flat)

    # TODO(synk): for production batch sizes add a grid over (batch*seq) tiles with
    # dimension_semantics=("parallel",) so v7x's second TensorCore is used; at
    # B=2, S=8 there is a single 16-row tile, so no grid is needed.
    logits = pl.pallas_call(
        transformer_ner_kernel,
        out_shape=jax.ShapeDtypeStruct((b * s, CLS_PAD), jnp.float32),
        in_specs=[pl.BlockSpec(memory_space=vmem)] * n_in,
        out_specs=pl.BlockSpec(memory_space=vmem),
    )(x2, kbias, *flat)

    logits = logits.reshape(b, s, CLS_PAD)
    ner_logits = logits[..., :NUM_NER]
    pos_logits = logits[..., NUM_NER:NUM_NER + NUM_POS]
    return ner_logits, pos_logits


if __name__ == "__main__":
    key = jax.random.PRNGKey(0)
    pkey, tkey = jax.random.split(key)
    params = init_params(pkey)

    token_ids = jax.random.randint(tkey, (B, S), 0, VOCAB, dtype=jnp.int32)
    # mask: True = real token; make the last two positions of batch item 1 padding.
    mask = jnp.ones((B, S), dtype=bool).at[1, -2:].set(False)

    ner_logits, pos_logits = transformer_ner_forward(token_ids, mask, params)
    jax.block_until_ready((ner_logits, pos_logits))

    assert ner_logits.shape == (B, S, NUM_NER)
    assert pos_logits.shape == (B, S, NUM_POS)
    assert bool(jnp.all(jnp.isfinite(ner_logits))) and bool(jnp.all(jnp.isfinite(pos_logits)))
    print("KERNEL_OK")
</pallas_src>

<mosaic_0001>
module attributes {stable_mosaic.version = 11 : i64} {
  func.func @transformer_ner_kernel(%arg0: memref<16x48xf32, #tpu.memory_space<vmem>>, %arg1: memref<2x1x8x1xf32, #tpu.memory_space<vmem>>, %arg2: memref<2x48x144xf32, #tpu.memory_space<vmem>>, %arg3: memref<2x1x144xf32, #tpu.memory_space<vmem>>, %arg4: memref<2x48x48xf32, #tpu.memory_space<vmem>>, %arg5: memref<2x6x48xf32, #tpu.memory_space<vmem>>, %arg6: memref<2x48x1024xf32, #tpu.memory_space<vmem>>, %arg7: memref<2x1x1024xf32, #tpu.memory_space<vmem>>, %arg8: memref<2x1024x48xf32, #tpu.memory_space<vmem>>, %arg9: memref<48x128xf32, #tpu.memory_space<vmem>>, %arg10: memref<1x128xf32, #tpu.memory_space<vmem>>, %arg11: memref<16x128xf32, #tpu.memory_space<vmem>>) attributes {dimension_semantics = [], scalar_prefetch = 0 : i64, scratch_operands = 0 : i64, tpu.core_type = #tpu.core_type<tc>} {
    %c0 = arith.constant 0 : index
    %c0_0 = arith.constant 0 : index
    %0 = vector.load %arg0[%c0, %c0_0] : memref<16x48xf32, #tpu.memory_space<vmem>>, vector<16x48xf32>
    %c0_1 = arith.constant 0 : index
    %c0_2 = arith.constant 0 : index
    %c0_3 = arith.constant 0 : index
    %c0_4 = arith.constant 0 : index
    %1 = vector.load %arg1[%c0_1, %c0_2, %c0_3, %c0_4] : memref<2x1x8x1xf32, #tpu.memory_space<vmem>>, vector<2x1x8x1xf32>
    %2 = tpu.iota {dimensions = array<i32: 0>} : vector<48x6xi32>
    %3 = tpu.iota {dimensions = array<i32: 1>} : vector<48x6xi32>
    %c8_i32 = arith.constant 8 : i32
    %4 = vector.broadcast %c8_i32 : i32 to vector<48x6xi32>
    %5 = arith.muli %3, %4 : vector<48x6xi32>
    %6 = arith.cmpi sge, %2, %5 : vector<48x6xi32>
    %c8_i32_5 = arith.constant 8 : i32
    %7 = vector.broadcast %c8_i32_5 : i32 to vector<48x6xi32>
    %8 = arith.addi %5, %7 : vector<48x6xi32>
    %9 = arith.cmpi slt, %2, %8 : vector<48x6xi32>
    %10 = arith.andi %6, %9 : vector<48x6xi1>
    %cst = arith.constant 1.000000e+00 : f32
    %cst_6 = arith.constant 0.000000e+00 : f32
    %11 = vector.broadcast %cst : f32 to vector<48x6xf32>
    %12 = vector.broadcast %cst_6 : f32 to vector<48x6xf32>
    %13 = arith.select %10, %11, %12 : vector<48x6xi1>, vector<48x6xf32>
    %14 = tpu.iota {dimensions = array<i32: 0>} : vector<6x48xi32>
    %15 = tpu.iota {dimensions = array<i32: 1>} : vector<6x48xi32>
    %c8_i32_7 = arith.constant 8 : i32
    %16 = vector.broadcast %c8_i32_7 : i32 to vector<6x48xi32>
    %17 = arith.muli %14, %16 : vector<6x48xi32>
    %18 = arith.cmpi sge, %15, %17 : vector<6x48xi32>
    %c8_i32_8 = arith.constant 8 : i32
    %19 = vector.broadcast %c8_i32_8 : i32 to vector<6x48xi32>
    %20 = arith.addi %17, %19 : vector<6x48xi32>
    %21 = arith.cmpi slt, %15, %20 : vector<6x48xi32>
    %22 = arith.andi %18, %21 : vector<6x48xi1>
    %cst_9 = arith.constant 1.000000e+00 : f32
    %cst_10 = arith.constant 0.000000e+00 : f32
    %23 = vector.broadcast %cst_9 : f32 to vector<6x48xf32>
    %24 = vector.broadcast %cst_10 : f32 to vector<6x48xf32>
    %25 = arith.select %22, %23, %24 : vector<6x48xi1>, vector<6x48xf32>
    %c0_11 = arith.constant 0 : index
    %c0_12 = arith.constant 0 : index
    %c0_13 = arith.constant 0 : index
    %26 = vector.load %arg2[%c0_11, %c0_12, %c0_13] : memref<2x48x144xf32, #tpu.memory_space<vmem>>, vector<1x48x144xf32>
    %27 = vector.shape_cast %26 : vector<1x48x144xf32> to vector<48x144xf32>
    %cst_14 = arith.constant dense<0.000000e+00> : vector<16x144xf32>
    %28 = tpu.matmul %0, %27, %cst_14 {dimension_numbers = #tpu.dot_dimension_numbers<[1], [0], [0], [1], [0, 0, 1, 1], [], []>} : vector<16x48xf32>, vector<48x144xf32>, vector<16x144xf32> -> vector<16x144xf32>
    %c0_15 = arith.constant 0 : index
    %c0_16 = arith.constant 0 : index
    %c0_17 = arith.constant 0 : index
    %29 = vector.load %arg3[%c0_15, %c0_16, %c0_17] : memref<2x1x144xf32, #tpu.memory_space<vmem>>, vector<1x1x144xf32>
    %30 = vector.shape_cast %29 : vector<1x1x144xf32> to vector<1x144xf32>
    %31 = vector.broadcast %30 : vector<1x144xf32> to vector<16x144xf32>
    %32 = arith.addf %28, %31 : vector<16x144xf32>
    %33 = vector.extract_strided_slice %32 {offsets = [0, 0], sizes = [16, 48], strides = [1, 1]} : vector<16x144xf32> to vector<16x48xf32>
    %cst_18 = arith.constant 0.353553385 : f32
    %34 = vector.broadcast %cst_18 : f32 to vector<16x48xf32>
    %35 = arith.mulf %33, %34 : vector<16x48xf32>
    %36 = vector.shape_cast %35 : vector<16x48xf32> to vector<2x8x48xf32>
    %37 = vector.extract_strided_slice %32 {offsets = [0, 48], sizes = [16, 48], strides = [1, 1]} : vector<16x144xf32> to vector<16x48xf32>
    %38 = vector.shape_cast %37 : vector<16x48xf32> to vector<2x8x48xf32>
    %39 = vector.extract_strided_slice %32 {offsets = [0, 96], sizes = [16, 48], strides = [1, 1]} : vector<16x144xf32> to vector<16x48xf32>
    %40 = vector.shape_cast %39 : vector<16x48xf32> to vector<2x8x48xf32>
    %41 = vector.shape_cast %36 : vector<2x8x48xf32> to vector<2x8x1x48xf32>
    %42 = vector.shape_cast %38 : vector<2x8x48xf32> to vector<2x1x8x48xf32>
    %43 = vector.broadcast %41 : vector<2x8x1x48xf32> to vector<2x8x8x48xf32>
    %44 = vector.broadcast %42 : vector<2x1x8x48xf32> to vector<2x8x8x48xf32>
    %45 = arith.mulf %43, %44 : vector<2x8x8x48xf32>
    %46 = vector.shape_cast %45 : vector<2x8x8x48xf32> to vector<128x48xf32>
    %cst_19 = arith.constant dense<0.000000e+00> : vector<128x6xf32>
    %47 = tpu.matmul %46, %13, %cst_19 {dimension_numbers = #tpu.dot_dimension_numbers<[1], [0], [0], [1], [0, 0, 1, 1], [], []>} : vector<128x48xf32>, vector<48x6xf32>, vector<128x6xf32> -> vector<128x6xf32>
    %48 = vector.shape_cast %47 : vector<128x6xf32> to vector<2x8x8x6xf32>
    %49 = vector.broadcast %1 : vector<2x1x8x1xf32> to vector<2x8x8x6xf32>
    %50 = arith.addf %48, %49 : vector<2x8x8x6xf32>
    %cst_20 = arith.constant dense<0xFF800000> : vector<2x8x6xf32>
    %51 = vector.multi_reduction <maximumf>, %50, %cst_20 [2] : vector<2x8x8x6xf32> to vector<2x8x6xf32>
    %52 = vector.shape_cast %51 : vector<2x8x6xf32> to vector<2x8x1x6xf32>
    %53 = vector.broadcast %52 : vector<2x8x1x6xf32> to vector<2x8x8x6xf32>
    %54 = arith.subf %50, %53 : vector<2x8x8x6xf32>
    %55 = math.exp %54 : vector<2x8x8x6xf32>
    %cst_21 = arith.constant dense<0.000000e+00> : vector<2x8x6xf32>
    %56 = vector.multi_reduction <add>, %55, %cst_21 [2] : vector<2x8x8x6xf32> to vector<2x8x6xf32>
    %57 = vector.shape_cast %56 : vector<2x8x6xf32> to vector<2x8x1x6xf32>
    %58 = tpu.reciprocal %57 {approx = true} : vector<2x8x1x6xf32> -> vector<2x8x1x6xf32>
    %59 = vector.broadcast %58 : vector<2x8x1x6xf32> to vector<2x8x8x6xf32>
    %60 = arith.mulf %55, %59 : vector<2x8x8x6xf32>
    %61 = vector.shape_cast %60 : vector<2x8x8x6xf32> to vector<128x6xf32>
    %cst_22 = arith.constant dense<0.000000e+00> : vector<128x48xf32>
    %62 = tpu.matmul %61, %25, %cst_22 {dimension_numbers = #tpu.dot_dimension_numbers<[1], [0], [0], [1], [0, 0, 1, 1], [], []>} : vector<128x6xf32>, vector<6x48xf32>, vector<128x48xf32> -> vector<128x48xf32>
    %63 = vector.shape_cast %62 : vector<128x48xf32> to vector<2x8x8x48xf32>
    %64 = vector.shape_cast %40 : vector<2x8x48xf32> to vector<2x1x8x48xf32>
    %65 = vector.broadcast %64 : vector<2x1x8x48xf32> to vector<2x8x8x48xf32>
    %66 = arith.mulf %63, %65 : vector<2x8x8x48xf32>
    %cst_23 = arith.constant dense<0.000000e+00> : vector<2x8x48xf32>
    %67 = vector.multi_reduction <add>, %66, %cst_23 [2] : vector<2x8x8x48xf32> to vector<2x8x48xf32>
    %68 = vector.shape_cast %67 : vector<2x8x48xf32> to vector<16x48xf32>
    %c0_24 = arith.constant 0 : index
    %c0_25 = arith.constant 0 : index
    %c0_26 = arith.constant 0 : index
    %69 = vector.load %arg5[%c0_24, %c0_25, %c0_26] : memref<2x6x48xf32, #tpu.memory_space<vmem>>, vector<1x6x48xf32>
    %70 = vector.shape_cast %69 : vector<1x6x48xf32> to vector<6x48xf32>
    %71 = vector.extract_strided_slice %70 {offsets = [0, 0], sizes = [1, 48], strides = [1, 1]} : vector<6x48xf32> to vector<1x48xf32>
    %72 = vector.extract_strided_slice %70 {offsets = [1, 0], sizes = [1, 48], strides = [1, 1]} : vector<6x48xf32> to vector<1x48xf32>
    %73 = vector.extract_strided_slice %70 {offsets = [2, 0], sizes = [1, 48], strides = [1, 1]} : vector<6x48xf32> to vector<1x48xf32>
    %74 = vector.extract_strided_slice %70 {offsets = [3, 0], sizes = [1, 48], strides = [1, 1]} : vector<6x48xf32> to vector<1x48xf32>
    %75 = vector.extract_strided_slice %70 {offsets = [4, 0], sizes = [1, 48], strides = [1, 1]} : vector<6x48xf32> to vector<1x48xf32>
    %76 = vector.extract_strided_slice %70 {offsets = [5, 0], sizes = [1, 48], strides = [1, 1]} : vector<6x48xf32> to vector<1x48xf32>
    %c0_27 = arith.constant 0 : index
    %c0_28 = arith.constant 0 : index
    %c0_29 = arith.constant 0 : index
    %77 = vector.load %arg4[%c0_27, %c0_28, %c0_29] : memref<2x48x48xf32, #tpu.memory_space<vmem>>, vector<1x48x48xf32>
    %78 = vector.shape_cast %77 : vector<1x48x48xf32> to vector<48x48xf32>
    %cst_30 = arith.constant dense<0.000000e+00> : vector<16x48xf32>
    %79 = tpu.matmul %68, %78, %cst_30 {dimension_numbers = #tpu.dot_dimension_numbers<[1], [0], [0], [1], [0, 0, 1, 1], [], []>} : vector<16x48xf32>, vector<48x48xf32>, vector<16x48xf32> -> vector<16x48xf32>
    %80 = vector.broadcast %71 : vector<1x48xf32> to vector<16x48xf32>
    %81 = arith.addf %79, %80 : vector<16x48xf32>
    %82 = arith.addf %0, %81 : vector<16x48xf32>
    %cst_31 = arith.constant dense<0.000000e+00> : vector<16xf32>
    %83 = vector.multi_reduction <add>, %82, %cst_31 [1] : vector<16x48xf32> to vector<16xf32>
    %84 = vector.shape_cast %83 : vector<16xf32> to vector<16x1xf32>
    %cst_32 = arith.constant 4.800000e+01 : f32
    %85 = vector.broadcast %cst_32 : f32 to vector<16x1xf32>
    %86 = arith.divf %84, %85 : vector<16x1xf32>
    %87 = vector.broadcast %86 : vector<16x1xf32> to vector<16x48xf32>
    %88 = arith.subf %82, %87 : vector<16x48xf32>
    %89 = arith.mulf %88, %88 : vector<16x48xf32>
    %cst_33 = arith.constant dense<0.000000e+00> : vector<16xf32>
    %90 = vector.multi_reduction <add>, %89, %cst_33 [1] : vector<16x48xf32> to vector<16xf32>
    %91 = vector.shape_cast %90 : vector<16xf32> to vector<16x1xf32>
    %cst_34 = arith.constant 4.800000e+01 : f32
    %92 = vector.broadcast %cst_34 : f32 to vector<16x1xf32>
    %93 = arith.divf %91, %92 : vector<16x1xf32>
    %cst_35 = arith.constant 9.99999974E-6 : f32
    %94 = vector.broadcast %cst_35 : f32 to vector<16x1xf32>
    %95 = arith.addf %93, %94 : vector<16x1xf32>
    %96 = math.rsqrt %95 : vector<16x1xf32>
    %97 = vector.broadcast %96 : vector<16x1xf32> to vector<16x48xf32>
    %98 = arith.mulf %88, %97 : vector<16x48xf32>
    %99 = vector.broadcast %72 : vector<1x48xf32> to vector<16x48xf32>
    %100 = arith.mulf %98, %99 : vector<16x48xf32>
    %101 = vector.broadcast %73 : vector<1x48xf32> to vector<16x48xf32>
    %102 = arith.addf %100, %101 : vector<16x48xf32>
    %c0_36 = arith.constant 0 : index
    %c0_37 = arith.constant 0 : index
    %c0_38 = arith.constant 0 : index
    %103 = vector.load %arg6[%c0_36, %c0_37, %c0_38] : memref<2x48x1024xf32, #tpu.memory_space<vmem>>, vector<1x48x1024xf32>
    %104 = vector.shape_cast %103 : vector<1x48x1024xf32> to vector<48x1024xf32>
    %cst_39 = arith.constant dense<0.000000e+00> : vector<16x1024xf32>
    %105 = tpu.matmul %102, %104, %cst_39 {dimension_numbers = #tpu.dot_dimension_numbers<[1], [0], [0], [1], [0, 0, 1, 1], [], []>} : vector<16x48xf32>, vector<48x1024xf32>, vector<16x1024xf32> -> vector<16x1024xf32>
    %c0_40 = arith.constant 0 : index
    %c0_41 = arith.constant 0 : index
    %c0_42 = arith.constant 0 : index
    %106 = vector.load %arg7[%c0_40, %c0_41, %c0_42] : memref<2x1x1024xf32, #tpu.memory_space<vmem>>, vector<1x1x1024xf32>
    %107 = vector.shape_cast %106 : vector<1x1x1024xf32> to vector<1x1024xf32>
    %108 = vector.broadcast %107 : vector<1x1024xf32> to vector<16x1024xf32>
    %109 = arith.addf %105, %108 : vector<16x1024xf32>
    %cst_43 = arith.constant 0.000000e+00 : f32
    %110 = vector.broadcast %cst_43 : f32 to vector<16x1024xf32>
    %111 = arith.maximumf %109, %110 : vector<16x1024xf32>
    %c0_44 = arith.constant 0 : index
    %c0_45 = arith.constant 0 : index
    %c0_46 = arith.constant 0 : index
    %112 = vector.load %arg8[%c0_44, %c0_45, %c0_46] : memref<2x1024x48xf32, #tpu.memory_space<vmem>>, vector<1x1024x48xf32>
    %113 = vector.shape_cast %112 : vector<1x1024x48xf32> to vector<1024x48xf32>
    %cst_47 = arith.constant dense<0.000000e+00> : vector<16x48xf32>
    %114 = tpu.matmul %111, %113, %cst_47 {dimension_numbers = #tpu.dot_dimension_numbers<[1], [0], [0], [1], [0, 0, 1, 1], [], []>} : vector<16x1024xf32>, vector<1024x48xf32>, vector<16x48xf32> -> vector<16x48xf32>
    %115 = vector.broadcast %74 : vector<1x48xf32> to vector<16x48xf32>
    %116 = arith.addf %114, %115 : vector<16x48xf32>
    %117 = arith.addf %102, %116 : vector<16x48xf32>
    %cst_48 = arith.constant dense<0.000000e+00> : vector<16xf32>
    %118 = vector.multi_reduction <add>, %117, %cst_48 [1] : vector<16x48xf32> to vector<16xf32>
    %119 = vector.shape_cast %118 : vector<16xf32> to vector<16x1xf32>
    %cst_49 = arith.constant 4.800000e+01 : f32
    %120 = vector.broadcast %cst_49 : f32 to vector<16x1xf32>
    %121 = arith.divf %119, %120 : vector<16x1xf32>
    %122 = vector.broadcast %121 : vector<16x1xf32> to vector<16x48xf32>
    %123 = arith.subf %117, %122 : vector<16x48xf32>
    %124 = arith.mulf %123, %123 : vector<16x48xf32>
    %cst_50 = arith.constant dense<0.000000e+00> : vector<16xf32>
    %125 = vector.multi_reduction <add>, %124, %cst_50 [1] : vector<16x48xf32> to vector<16xf32>
    %126 = vector.shape_cast %125 : vector<16xf32> to vector<16x1xf32>
    %cst_51 = arith.constant 4.800000e+01 : f32
    %127 = vector.broadcast %cst_51 : f32 to vector<16x1xf32>
    %128 = arith.divf %126, %127 : vector<16x1xf32>
    %cst_52 = arith.constant 9.99999974E-6 : f32
    %129 = vector.broadcast %cst_52 : f32 to vector<16x1xf32>
    %130 = arith.addf %128, %129 : vector<16x1xf32>
    %131 = math.rsqrt %130 : vector<16x1xf32>
    %132 = vector.broadcast %131 : vector<16x1xf32> to vector<16x48xf32>
    %133 = arith.mulf %123, %132 : vector<16x48xf32>
    %134 = vector.broadcast %75 : vector<1x48xf32> to vector<16x48xf32>
    %135 = arith.mulf %133, %134 : vector<16x48xf32>
    %136 = vector.broadcast %76 : vector<1x48xf32> to vector<16x48xf32>
    %137 = arith.addf %135, %136 : vector<16x48xf32>
    %c1 = arith.constant 1 : index
    %c0_53 = arith.constant 0 : index
    %c0_54 = arith.constant 0 : index
    %138 = vector.load %arg2[%c1, %c0_53, %c0_54] : memref<2x48x144xf32, #tpu.memory_space<vmem>>, vector<1x48x144xf32>
    %139 = vector.shape_cast %138 : vector<1x48x144xf32> to vector<48x144xf32>
    %cst_55 = arith.constant dense<0.000000e+00> : vector<16x144xf32>
    %140 = tpu.matmul %137, %139, %cst_55 {dimension_numbers = #tpu.dot_dimension_numbers<[1], [0], [0], [1], [0, 0, 1, 1], [], []>} : vector<16x48xf32>, vector<48x144xf32>, vector<16x144xf32> -> vector<16x144xf32>
    %c1_56 = arith.constant 1 : index
    %c0_57 = arith.constant 0 : index
    %c0_58 = arith.constant 0 : index
    %141 = vector.load %arg3[%c1_56, %c0_57, %c0_58] : memref<2x1x144xf32, #tpu.memory_space<vmem>>, vector<1x1x144xf32>
    %142 = vector.shape_cast %141 : vector<1x1x144xf32> to vector<1x144xf32>
    %143 = vector.broadcast %142 : vector<1x144xf32> to vector<16x144xf32>
    %144 = arith.addf %140, %143 : vector<16x144xf32>
    %145 = vector.extract_strided_slice %144 {offsets = [0, 0], sizes = [16, 48], strides = [1, 1]} : vector<16x144xf32> to vector<16x48xf32>
    %cst_59 = arith.constant 0.353553385 : f32
    %146 = vector.broadcast %cst_59 : f32 to vector<16x48xf32>
    %147 = arith.mulf %145, %146 : vector<16x48xf32>
    %148 = vector.shape_cast %147 : vector<16x48xf32> to vector<2x8x48xf32>
    %149 = vector.extract_strided_slice %144 {offsets = [0, 48], sizes = [16, 48], strides = [1, 1]} : vector<16x144xf32> to vector<16x48xf32>
    %150 = vector.shape_cast %149 : vector<16x48xf32> to vector<2x8x48xf32>
    %151 = vector.extract_strided_slice %144 {offsets = [0, 96], sizes = [16, 48], strides = [1, 1]} : vector<16x144xf32> to vector<16x48xf32>
    %152 = vector.shape_cast %151 : vector<16x48xf32> to vector<2x8x48xf32>
    %153 = vector.shape_cast %148 : vector<2x8x48xf32> to vector<2x8x1x48xf32>
    %154 = vector.shape_cast %150 : vector<2x8x48xf32> to vector<2x1x8x48xf32>
    %155 = vector.broadcast %153 : vector<2x8x1x48xf32> to vector<2x8x8x48xf32>
    %156 = vector.broadcast %154 : vector<2x1x8x48xf32> to vector<2x8x8x48xf32>
    %157 = arith.mulf %155, %156 : vector<2x8x8x48xf32>
    %158 = vector.shape_cast %157 : vector<2x8x8x48xf32> to vector<128x48xf32>
    %cst_60 = arith.constant dense<0.000000e+00> : vector<128x6xf32>
    %159 = tpu.matmul %158, %13, %cst_60 {dimension_numbers = #tpu.dot_dimension_numbers<[1], [0], [0], [1], [0, 0, 1, 1], [], []>} : vector<128x48xf32>, vector<48x6xf32>, vector<128x6xf32> -> vector<128x6xf32>
    %160 = vector.shape_cast %159 : vector<128x6xf32> to vector<2x8x8x6xf32>
    %161 = vector.broadcast %1 : vector<2x1x8x1xf32> to vector<2x8x8x6xf32>
    %162 = arith.addf %160, %161 : vector<2x8x8x6xf32>
    %cst_61 = arith.constant dense<0xFF800000> : vector<2x8x6xf32>
    %163 = vector.multi_reduction <maximumf>, %162, %cst_61 [2] : vector<2x8x8x6xf32> to vector<2x8x6xf32>
    %164 = vector.shape_cast %163 : vector<2x8x6xf32> to vector<2x8x1x6xf32>
    %165 = vector.broadcast %164 : vector<2x8x1x6xf32> to vector<2x8x8x6xf32>
    %166 = arith.subf %162, %165 : vector<2x8x8x6xf32>
    %167 = math.exp %166 : vector<2x8x8x6xf32>
    %cst_62 = arith.constant dense<0.000000e+00> : vector<2x8x6xf32>
    %168 = vector.multi_reduction <add>, %167, %cst_62 [2] : vector<2x8x8x6xf32> to vector<2x8x6xf32>
    %169 = vector.shape_cast %168 : vector<2x8x6xf32> to vector<2x8x1x6xf32>
    %170 = tpu.reciprocal %169 {approx = true} : vector<2x8x1x6xf32> -> vector<2x8x1x6xf32>
    %171 = vector.broadcast %170 : vector<2x8x1x6xf32> to vector<2x8x8x6xf32>
    %172 = arith.mulf %167, %171 : vector<2x8x8x6xf32>
    %173 = vector.shape_cast %172 : vector<2x8x8x6xf32> to vector<128x6xf32>
    %cst_63 = arith.constant dense<0.000000e+00> : vector<128x48xf32>
    %174 = tpu.matmul %173, %25, %cst_63 {dimension_numbers = #tpu.dot_dimension_numbers<[1], [0], [0], [1], [0, 0, 1, 1], [], []>} : vector<128x6xf32>, vector<6x48xf32>, vector<128x48xf32> -> vector<128x48xf32>
    %175 = vector.shape_cast %174 : vector<128x48xf32> to vector<2x8x8x48xf32>
    %176 = vector.shape_cast %152 : vector<2x8x48xf32> to vector<2x1x8x48xf32>
    %177 = vector.broadcast %176 : vector<2x1x8x48xf32> to vector<2x8x8x48xf32>
    %178 = arith.mulf %175, %177 : vector<2x8x8x48xf32>
    %cst_64 = arith.constant dense<0.000000e+00> : vector<2x8x48xf32>
    %179 = vector.multi_reduction <add>, %178, %cst_64 [2] : vector<2x8x8x48xf32> to vector<2x8x48xf32>
    %180 = vector.shape_cast %179 : vector<2x8x48xf32> to vector<16x48xf32>
    %c1_65 = arith.constant 1 : index
    %c0_66 = arith.constant 0 : index
    %c0_67 = arith.constant 0 : index
    %181 = vector.load %arg5[%c1_65, %c0_66, %c0_67] : memref<2x6x48xf32, #tpu.memory_space<vmem>>, vector<1x6x48xf32>
    %182 = vector.shape_cast %181 : vector<1x6x48xf32> to vector<6x48xf32>
    %183 = vector.extract_strided_slice %182 {offsets = [0, 0], sizes = [1, 48], strides = [1, 1]} : vector<6x48xf32> to vector<1x48xf32>
    %184 = vector.extract_strided_slice %182 {offsets = [1, 0], sizes = [1, 48], strides = [1, 1]} : vector<6x48xf32> to vector<1x48xf32>
    %185 = vector.extract_strided_slice %182 {offsets = [2, 0], sizes = [1, 48], strides = [1, 1]} : vector<6x48xf32> to vector<1x48xf32>
    %186 = vector.extract_strided_slice %182 {offsets = [3, 0], sizes = [1, 48], strides = [1, 1]} : vector<6x48xf32> to vector<1x48xf32>
    %187 = vector.extract_strided_slice %182 {offsets = [4, 0], sizes = [1, 48], strides = [1, 1]} : vector<6x48xf32> to vector<1x48xf32>
    %188 = vector.extract_strided_slice %182 {offsets = [5, 0], sizes = [1, 48], strides = [1, 1]} : vector<6x48xf32> to vector<1x48xf32>
    %c1_68 = arith.constant 1 : index
    %c0_69 = arith.constant 0 : index
    %c0_70 = arith.constant 0 : index
    %189 = vector.load %arg4[%c1_68, %c0_69, %c0_70] : memref<2x48x48xf32, #tpu.memory_space<vmem>>, vector<1x48x48xf32>
    %190 = vector.shape_cast %189 : vector<1x48x48xf32> to vector<48x48xf32>
    %cst_71 = arith.constant dense<0.000000e+00> : vector<16x48xf32>
    %191 = tpu.matmul %180, %190, %cst_71 {dimension_numbers = #tpu.dot_dimension_numbers<[1], [0], [0], [1], [0, 0, 1, 1], [], []>} : vector<16x48xf32>, vector<48x48xf32>, vector<16x48xf32> -> vector<16x48xf32>
    %192 = vector.broadcast %183 : vector<1x48xf32> to vector<16x48xf32>
    %193 = arith.addf %191, %192 : vector<16x48xf32>
    %194 = arith.addf %137, %193 : vector<16x48xf32>
    %cst_72 = arith.constant dense<0.000000e+00> : vector<16xf32>
    %195 = vector.multi_reduction <add>, %194, %cst_72 [1] : vector<16x48xf32> to vector<16xf32>
    %196 = vector.shape_cast %195 : vector<16xf32> to vector<16x1xf32>
    %cst_73 = arith.constant 4.800000e+01 : f32
    %197 = vector.broadcast %cst_73 : f32 to vector<16x1xf32>
    %198 = arith.divf %196, %197 : vector<16x1xf32>
    %199 = vector.broadcast %198 : vector<16x1xf32> to vector<16x48xf32>
    %200 = arith.subf %194, %199 : vector<16x48xf32>
    %201 = arith.mulf %200, %200 : vector<16x48xf32>
    %cst_74 = arith.constant dense<0.000000e+00> : vector<16xf32>
    %202 = vector.multi_reduction <add>, %201, %cst_74 [1] : vector<16x48xf32> to vector<16xf32>
    %203 = vector.shape_cast %202 : vector<16xf32> to vector<16x1xf32>
    %cst_75 = arith.constant 4.800000e+01 : f32
    %204 = vector.broadcast %cst_75 : f32 to vector<16x1xf32>
    %205 = arith.divf %203, %204 : vector<16x1xf32>
    %cst_76 = arith.constant 9.99999974E-6 : f32
    %206 = vector.broadcast %cst_76 : f32 to vector<16x1xf32>
    %207 = arith.addf %205, %206 : vector<16x1xf32>
    %208 = math.rsqrt %207 : vector<16x1xf32>
    %209 = vector.broadcast %208 : vector<16x1xf32> to vector<16x48xf32>
    %210 = arith.mulf %200, %209 : vector<16x48xf32>
    %211 = vector.broadcast %184 : vector<1x48xf32> to vector<16x48xf32>
    %212 = arith.mulf %210, %211 : vector<16x48xf32>
    %213 = vector.broadcast %185 : vector<1x48xf32> to vector<16x48xf32>
    %214 = arith.addf %212, %213 : vector<16x48xf32>
    %c1_77 = arith.constant 1 : index
    %c0_78 = arith.constant 0 : index
    %c0_79 = arith.constant 0 : index
    %215 = vector.load %arg6[%c1_77, %c0_78, %c0_79] : memref<2x48x1024xf32, #tpu.memory_space<vmem>>, vector<1x48x1024xf32>
    %216 = vector.shape_cast %215 : vector<1x48x1024xf32> to vector<48x1024xf32>
    %cst_80 = arith.constant dense<0.000000e+00> : vector<16x1024xf32>
    %217 = tpu.matmul %214, %216, %cst_80 {dimension_numbers = #tpu.dot_dimension_numbers<[1], [0], [0], [1], [0, 0, 1, 1], [], []>} : vector<16x48xf32>, vector<48x1024xf32>, vector<16x1024xf32> -> vector<16x1024xf32>
    %c1_81 = arith.constant 1 : index
    %c0_82 = arith.constant 0 : index
    %c0_83 = arith.constant 0 : index
    %218 = vector.load %arg7[%c1_81, %c0_82, %c0_83] : memref<2x1x1024xf32, #tpu.memory_space<vmem>>, vector<1x1x1024xf32>
    %219 = vector.shape_cast %218 : vector<1x1x1024xf32> to vector<1x1024xf32>
    %220 = vector.broadcast %219 : vector<1x1024xf32> to vector<16x1024xf32>
    %221 = arith.addf %217, %220 : vector<16x1024xf32>
    %cst_84 = arith.constant 0.000000e+00 : f32
    %222 = vector.broadcast %cst_84 : f32 to vector<16x1024xf32>
    %223 = arith.maximumf %221, %222 : vector<16x1024xf32>
    %c1_85 = arith.constant 1 : index
    %c0_86 = arith.constant 0 : index
    %c0_87 = arith.constant 0 : index
    %224 = vector.load %arg8[%c1_85, %c0_86, %c0_87] : memref<2x1024x48xf32, #tpu.memory_space<vmem>>, vector<1x1024x48xf32>
    %225 = vector.shape_cast %224 : vector<1x1024x48xf32> to vector<1024x48xf32>
    %cst_88 = arith.constant dense<0.000000e+00> : vector<16x48xf32>
    %226 = tpu.matmul %223, %225, %cst_88 {dimension_numbers = #tpu.dot_dimension_numbers<[1], [0], [0], [1], [0, 0, 1, 1], [], []>} : vector<16x1024xf32>, vector<1024x48xf32>, vector<16x48xf32> -> vector<16x48xf32>
    %227 = vector.broadcast %186 : vector<1x48xf32> to vector<16x48xf32>
    %228 = arith.addf %226, %227 : vector<16x48xf32>
    %229 = arith.addf %214, %228 : vector<16x48xf32>
    %cst_89 = arith.constant dense<0.000000e+00> : vector<16xf32>
    %230 = vector.multi_reduction <add>, %229, %cst_89 [1] : vector<16x48xf32> to vector<16xf32>
    %231 = vector.shape_cast %230 : vector<16xf32> to vector<16x1xf32>
    %cst_90 = arith.constant 4.800000e+01 : f32
    %232 = vector.broadcast %cst_90 : f32 to vector<16x1xf32>
    %233 = arith.divf %231, %232 : vector<16x1xf32>
    %234 = vector.broadcast %233 : vector<16x1xf32> to vector<16x48xf32>
    %235 = arith.subf %229, %234 : vector<16x48xf32>
    %236 = arith.mulf %235, %235 : vector<16x48xf32>
    %cst_91 = arith.constant dense<0.000000e+00> : vector<16xf32>
    %237 = vector.multi_reduction <add>, %236, %cst_91 [1] : vector<16x48xf32> to vector<16xf32>
    %238 = vector.shape_cast %237 : vector<16xf32> to vector<16x1xf32>
    %cst_92 = arith.constant 4.800000e+01 : f32
    %239 = vector.broadcast %cst_92 : f32 to vector<16x1xf32>
    %240 = arith.divf %238, %239 : vector<16x1xf32>
    %cst_93 = arith.constant 9.99999974E-6 : f32
    %241 = vector.broadcast %cst_93 : f32 to vector<16x1xf32>
    %242 = arith.addf %240, %241 : vector<16x1xf32>
    %243 = math.rsqrt %242 : vector<16x1xf32>
    %244 = vector.broadcast %243 : vector<16x1xf32> to vector<16x48xf32>
    %245 = arith.mulf %235, %244 : vector<16x48xf32>
    %246 = vector.broadcast %187 : vector<1x48xf32> to vector<16x48xf32>
    %247 = arith.mulf %245, %246 : vector<16x48xf32>
    %248 = vector.broadcast %188 : vector<1x48xf32> to vector<16x48xf32>
    %249 = arith.addf %247, %248 : vector<16x48xf32>
    %c0_94 = arith.constant 0 : index
    %c0_95 = arith.constant 0 : index
    %250 = vector.load %arg9[%c0_94, %c0_95] : memref<48x128xf32, #tpu.memory_space<vmem>>, vector<48x128xf32>
    %cst_96 = arith.constant dense<0.000000e+00> : vector<16x128xf32>
    %251 = tpu.matmul %249, %250, %cst_96 {dimension_numbers = #tpu.dot_dimension_numbers<[1], [0], [0], [1], [0, 0, 1, 1], [], []>} : vector<16x48xf32>, vector<48x128xf32>, vector<16x128xf32> -> vector<16x128xf32>
    %c0_97 = arith.constant 0 : index
    %c0_98 = arith.constant 0 : index
    %252 = vector.load %arg10[%c0_97, %c0_98] : memref<1x128xf32, #tpu.memory_space<vmem>>, vector<1x128xf32>
    %253 = vector.broadcast %252 : vector<1x128xf32> to vector<16x128xf32>
    %254 = arith.addf %251, %253 : vector<16x128xf32>
    %c0_99 = arith.constant 0 : index
    %c0_100 = arith.constant 0 : index
    %255 = vector.load %arg11[%c0_99, %c0_100] : memref<16x128xf32, #tpu.memory_space<vmem>>, vector<16x128xf32>
    tpu.vector_store %arg11[%c0_99, %c0_100], %254 {strides = array<i32>} : memref<16x128xf32, #tpu.memory_space<vmem>>, vector<16x128xf32>,
    return
  }
}

</mosaic_0001>

<llo_original>
// kernel: tpu_custom_call.1
$region0: #{tpu_custom_call.1}
  #allocation0 [shape = 'u32[]', space=smem, size = 0x4, offset = 0x4, fixed_abs, tag = 'smem constant byte address 0x4 - core index']
  #allocation1 [shape = 'u32[144,128]{1,0:T(1,128)}', space=vmem, size = 0x12000, scoped, tag = 'internal scratch']
  %s0 = inlined_call_operand.vmem [shape: f32[16,48], index: 0, kind: input, shape index: {}]
  %s1 = inlined_call_operand.vmem [shape: f32[2,1,8,1], index: 1, kind: input, shape index: {}]
  %s2 = inlined_call_operand.vmem [shape: f32[2,48,144], index: 2, kind: input, shape index: {}]
  %s3 = inlined_call_operand.vmem [shape: f32[2,1,144], index: 3, kind: input, shape index: {}]
  %s4 = inlined_call_operand.vmem [shape: f32[2,48,48], index: 4, kind: input, shape index: {}]
  %s5 = inlined_call_operand.vmem [shape: f32[2,6,48], index: 5, kind: input, shape index: {}]
  %s6 = inlined_call_operand.vmem [shape: f32[2,48,1024], index: 6, kind: input, shape index: {}]
  %s7 = inlined_call_operand.vmem [shape: f32[2,1,1024], index: 7, kind: input, shape index: {}]
  %s8 = inlined_call_operand.vmem [shape: f32[2,1024,48], index: 8, kind: input, shape index: {}]
  %s9 = inlined_call_operand.vmem [shape: f32[48,128], index: 9, kind: input, shape index: {}]
  %s10 = inlined_call_operand.vmem [shape: f32[1,128], index: 10, kind: input, shape index: {}]
  %s11 = inlined_call_operand.hbm [shape: f32[16,128], index: 11, kind: output, shape index: {}]
  %s12 = sld [smem:[#allocation0]]
  $region54: #{tpu_custom_call.1} parent=0
    _
  %s14 = ssub.s32 1, %s12
  %s15 = scalar_select 0, %s14, %s12
  $region1: #{tpu_custom_call.1} parent=0
    #allocation2 [shape = 'u8[8192]{0}', space=vmem, size = 0x2000, scoped, tag = 'output window, operand 0, single buffered']
    #allocation3 [shape = 's32[1]{0}', space=sflag, size = 0x4, scoped, tag = 'scoped memory for tpu_custom_call.1']
    %16 = vsyncpa [#allocation3], 0
    // Predicated region
    $region2: #{tpu_custom_call.1} parent=1 // pred_check
      _
    $region3: #{tpu_custom_call.1} parent=1 // pred_check_branch
      %18 = sbr.rel (0) target = $region5
    $region4: #{tpu_custom_call.1} parent=1 // pred_region
      _
    $region5: #{tpu_custom_call.1} parent=1 // pred_fallthru
      _
    // Predicated region
    $region6: #{tpu_custom_call.1} parent=1 // pred_check
      _
    $region7: #{tpu_custom_call.1} parent=1 // pred_check_branch
      %20 = sbr.rel (0) target = $region9
    $region8: #{tpu_custom_call.1} parent=1 // pred_region
      _
    $region9: #{tpu_custom_call.1} parent=1 // pred_fallthru
      _
    // Predicated region
    $region10: #{tpu_custom_call.1} parent=1 // pred_check
      _
    $region11: #{tpu_custom_call.1} parent=1 // pred_check_branch
      %22 = sbr.rel (0) target = $region13
    $region12: #{tpu_custom_call.1} parent=1 // pred_region
      _
    $region13: #{tpu_custom_call.1} parent=1 // pred_fallthru
      _
    // Predicated region
    $region14: #{tpu_custom_call.1} parent=1 // pred_check
      _
    $region15: #{tpu_custom_call.1} parent=1 // pred_check_branch
      %24 = sbr.rel (0) target = $region17
    $region16: #{tpu_custom_call.1} parent=1 // pred_region
      _
    $region17: #{tpu_custom_call.1} parent=1 // pred_fallthru
      _
    // Predicated region
    $region18: #{tpu_custom_call.1} parent=1 // pred_check
      _
    $region19: #{tpu_custom_call.1} parent=1 // pred_check_branch
      %26 = sbr.rel (0) target = $region21
    $region20: #{tpu_custom_call.1} parent=1 // pred_region
      _
    $region21: #{tpu_custom_call.1} parent=1 // pred_fallthru
      _
    // Predicated region
    $region22: #{tpu_custom_call.1} parent=1 // pred_check
      _
    $region23: #{tpu_custom_call.1} parent=1 // pred_check_branch
      %28 = sbr.rel (0) target = $region25
    $region24: #{tpu_custom_call.1} parent=1 // pred_region
      _
    $region25: #{tpu_custom_call.1} parent=1 // pred_fallthru
      _
    // Predicated region
    $region26: #{tpu_custom_call.1} parent=1 // pred_check
      _
    $region27: #{tpu_custom_call.1} parent=1 // pred_check_branch
      %30 = sbr.rel (0) target = $region29
    $region28: #{tpu_custom_call.1} parent=1 // pred_region
      _
    $region29: #{tpu_custom_call.1} parent=1 // pred_fallthru
      _
    // Predicated region
    $region30: #{tpu_custom_call.1} parent=1 // pred_check
      _
    $region31: #{tpu_custom_call.1} parent=1 // pred_check_branch
      %32 = sbr.rel (0) target = $region33
    $region32: #{tpu_custom_call.1} parent=1 // pred_region
      _
    $region33: #{tpu_custom_call.1} parent=1 // pred_fallthru
      _
    // Predicated region
    $region34: #{tpu_custom_call.1} parent=1 // pred_check
      _
    $region35: #{tpu_custom_call.1} parent=1 // pred_check_branch
      %34 = sbr.rel (0) target = $region37
    $region36: #{tpu_custom_call.1} parent=1 // pred_region
      _
    $region37: #{tpu_custom_call.1} parent=1 // pred_fallthru
      _
    // Predicated region
    $region38: #{tpu_custom_call.1} parent=1 // pred_check
      _
    $region39: #{tpu_custom_call.1} parent=1 // pred_check_branch
      %36 = sbr.rel (0) target = $region41
    $region40: #{tpu_custom_call.1} parent=1 // pred_region
      _
    $region41: #{tpu_custom_call.1} parent=1 // pred_fallthru
      _
    // Predicated region
    $region42: #{tpu_custom_call.1} parent=1 // pred_check
      _
    $region43: #{tpu_custom_call.1} parent=1 // pred_check_branch
      %38 = sbr.rel (0) target = $region45
    $region44: #{tpu_custom_call.1} parent=1 // pred_region
      _
    $region45: #{tpu_custom_call.1} parent=1 // pred_fallthru
      _
    %v39 = vld [vmem:[%s0] sm:$0xff]
    %v40 = vld [vmem:[%s0 + $0x8] sm:$0xff]
    %v41 = vld [vmem:[%s1] sm:$0xff]
    %v42 = vld [vmem:[%s1 + $0x8] sm:$0xff]
    %v43 = vlaneseq
    %v44 = vshrl.u32 %v43, 7
    %v45 = vadd.s32 %v44, 8
    %v46 = vadd.s32 %v44, 16
    %v47 = vadd.s32 %v44, 24
    %v48 = vadd.s32 %v44, 32
    %v49 = vadd.s32 %v44, 40
    %v50 = vlaneseq
    %v51 = vand.u32 %v50, 127
    %v52 = vmul.u32 %v51, 8
    %vm53 = vcmp.ge.s32.totalorder %v44, %v52
    %vm54 = vcmp.ge.s32.totalorder %v45, %v52
    %vm55 = vcmp.ge.s32.totalorder %v46, %v52
    %vm56 = vcmp.ge.s32.totalorder %v47, %v52
    %vm57 = vcmp.ge.s32.totalorder %v48, %v52
    %vm58 = vcmp.ge.s32.totalorder %v49, %v52
    %v59 = vadd.s32 %v52, 8
    %vm60 = vcmp.lt.s32.totalorder %v44, %v59
    %vm61 = vcmp.lt.s32.totalorder %v45, %v59
    %vm62 = vcmp.lt.s32.totalorder %v46, %v59
    %vm63 = vcmp.lt.s32.totalorder %v47, %v59
    %vm64 = vcmp.lt.s32.totalorder %v48, %v59
    %vm65 = vcmp.lt.s32.totalorder %v49, %v59
    %vm66 = vmand %vm53, %vm60
    %vm67 = vmand %vm54, %vm61
    %vm68 = vmand %vm55, %vm62
    %vm69 = vmand %vm56, %vm63
    %vm70 = vmand %vm57, %vm64
    %vm71 = vmand %vm58, %vm65
    %v72 = vsel %vm66, 1.0, 0.0
    %v73 = vsel %vm67, 1.0, 0.0
    %v74 = vsel %vm68, 1.0, 0.0
    %v75 = vsel %vm69, 1.0, 0.0
    %v76 = vsel %vm70, 1.0, 0.0
    %v77 = vsel %vm71, 1.0, 0.0
    %v78 = vmul.u32 %v44, 8
    %vm79 = vcmp.ge.s32.totalorder %v51, %v78
    %v80 = vadd.s32 %v78, 8
    %vm81 = vcmp.lt.s32.totalorder %v51, %v80
    %vm82 = vmand %vm79, %vm81
    %v83 = vsel %vm82, 1.0, 0.0
    %v84 = vld [vmem:[%s2] sm:$0xff]
    %v85 = vld [vmem:[%s2 + $0x8] sm:$0xff]
    %v86 = vld [vmem:[%s2 + $0x10] sm:$0xff]
    %v87 = vld [vmem:[%s2 + $0x18] sm:$0xff]
    %v88 = vld [vmem:[%s2 + $0x20] sm:$0xff]
    %v89 = vld [vmem:[%s2 + $0x28] sm:$0xff]
    %v90 = vld [vmem:[%s2 + $0x30] sm:$0xff]
    %v91 = vld [vmem:[%s2 + $0x38] sm:$0xff]
    %v92 = vld [vmem:[%s2 + $0x40] sm:$0xff]
    %v93 = vld [vmem:[%s2 + $0x48] sm:$0xff]
    %v94 = vld [vmem:[%s2 + $0x50] sm:$0xff]
    %v95 = vld [vmem:[%s2 + $0x58] sm:$0xff]
    %v96 = vld [vmem:[%s3] sm:$0x3]
    %v98 = vlaneseq
    %v99 = vshrl.u32 %v98, 7
    %v100 = vsub.s32 0, %v99
    %v101 = vrot.slane %v96, %v100
    %v102 = vlaneseq
    %v103 = vshrl.u32 %v102, 7
    %v104 = vsub.s32 1, %v103
    %v105 = vrot.slane %v96, %v104
    %vm108 = vcmask 392192
    %v110 = vsel %vm108, %v39, 0
    %v113 = vsel %vm108, %v40, 0
    %115 = vmatprep.subr.mxu0 %v85
    %116 = vmatpush1.msra.mxu0 %v84
    %117 = vmatprep.subr.mxu0 %v87
    %118 = vmatpush1.msra.mxu0 %v86
    %119 = vmatprep.subr.mxu0 %v89
    %120 = vmatpush1.msra.mxu0 %v88
    %121 = vmatprep.subr.mxu0 %v91
    %122 = vmatpush1.msra.mxu0 %v90
    %123 = vmatprep.subr.mxu0 %v93
    %124 = vmatpush1.msra.mxu0 %v92
    %125 = vmatprep.subr.mxu0 %v95
    %126 = vmatpush1.msra.mxu0 %v94
    %127 = vmatprep.subr.mxu0 0.0
    %128 = vmatpush1.msra.mxu0 0.0
    %129 = vmatprep.subr.mxu0 0.0
    %130 = vmatpush1.msra.mxu0 0.0
    %131 = vmatprep.subr.mxu0 0.0
    %132 = vmatpush1.msra.mxu0 0.0
    %133 = vmatprep.subr.mxu0 0.0
    %134 = vmatpush1.msra.mxu0 0.0
    %135 = vmatprep.subr.mxu0 0.0
    %136 = vmatpush1.msra.mxu0 0.0
    %137 = vmatprep.subr.mxu0 0.0
    %138 = vmatpush1.msra.mxu0 0.0
    %139 = vmatprep.subr.mxu0 0.0
    %140 = vmatpush1.msra.mxu0 0.0
    %141 = vmatprep.subr.mxu0 0.0
    %142 = vmatpush1.msra.mxu0 0.0
    %143 = vmatprep.subr.mxu0 0.0
    %144 = vmatpush1.msra.mxu0 0.0
    %145 = vmatprep.subr.mxu0 0.0
    %146 = vmatpush1.msra.mxu0 0.0
    %147 = vmatprep.subr.mxu0 0.0
    %148 = vmatpush1.msra.mxu0 0.0
    %149 = vmatprep.subr.mxu0 0.0
    %150 = vmatpush1.msra.mxu0 0.0
    %151 = vmatprep.subr.mxu0 0.0
    %152 = vmatpush1.msra.mxu0 0.0
    %153 = vmatprep.subr.mxu0 0.0
    %154 = vmatpush1.msra.mxu0 0.0
    %155 = vmatprep.subr.mxu0 0.0
    %156 = vmatpush1.msra.mxu0 0.0
    %157 = vmatprep.subr.mxu0 0.0
    %158 = vmatpush1.msra.mxu0 0.0
    %159 = vmatprep.subr.mxu0 0.0
    %160 = vmatpush1.msra.mxu0 0.0
    %161 = vmatprep.subr.mxu0 0.0
    %162 = vmatpush1.msra.mxu0 0.0
    %163 = vmatprep.subr.mxu0 0.0
    %164 = vmatpush1.msra.mxu0 0.0
    %165 = vmatprep.subr.mxu0 0.0
    %166 = vmatpush1.msra.mxu0 0.0
    %167 = vmatprep.subr.mxu0 0.0
    %168 = vmatpush1.msra.mxu0 0.0
    %169 = vmatprep.subr.mxu0 0.0
    %170 = vmatpush1.msra.mxu0 0.0
    %171 = vmatprep.subr.mxu0 0.0
    %172 = vmatpush1.msra.mxu0 0.0
    %173 = vmatprep.subr.mxu0 0.0
    %174 = vmatpush1.msra.mxu0 0.0
    %175 = vmatprep.subr.mxu0 0.0
    %176 = vmatpush1.msra.mxu0 0.0
    %177 = vmatprep.subr.mxu0 0.0
    %178 = vmatpush1.msra.mxu0 0.0
    %179 = vmatprep.mubr.f32.mxu0 0.0
    %180 = vmatmul.mubr.f32.gmra.mrb[0].mxu0 %v110
    %v181 = vpop.f32.mrb[0].mxu0
    %v182 = vadd.f32 %v101, %v181
    %v183 = vpop.f32.mrb[0].mxu0
    %v184 = vadd.f32 %v105, %v183
    %185 = vmatprep.mubr.f32.mxu0 0.0
    %186 = vmatmul.mubr.f32.gmra.mrb[0].mxu0 %v113
    %v187 = vpop.f32.mrb[0].mxu0
    %v188 = vadd.f32 %v101, %v187
    %v189 = vpop.f32.mrb[0].mxu0
    %v190 = vadd.f32 %v105, %v189
    %191 = vdwg.mxu0
    %v192 = vmul.f32 %v182, 0.35355338
    %v193 = vmul.f32 %v188, 0.35355338
    %v196 = vcombine.high %v192, %v192
    %v198 = vunpack.c.l.s4 1966171168
    %v199 = vunpack.c.0.s8 %v198
    %v200 = vlaneseq
    %v201 = vshrl.u32 %v200, 7
    %v202 = vsub.s32 %v199, %v201
    %v203 = vrot.slane %v192, %v202
    %v205 = vunpack.c.l.s4 1966171168
    %v206 = vunpack.c.0.s8 %v205
    %v207 = vlaneseq
    %v208 = vshrl.u32 %v207, 7
    %v209 = vsub.s32 %v206, %v208
    %v210 = vrot.slane %v196, %v209
    %v211 = vcombine.high %v203, %v203
    %v212 = vcombine.high %v210, %v210
    %v214 = vunpack.c.l.s4 1966171168
    %v215 = vunpack.c.0.s8 %v214
    %v216 = vlaneseq
    %v217 = vshrl.u32 %v216, 7
    %v218 = vsub.s32 %v215, %v217
    %v219 = vrot.slane %v203, %v218
    %v221 = vunpack.c.l.s4 1966171168
    %v222 = vunpack.c.0.s8 %v221
    %v223 = vlaneseq
    %v224 = vshrl.u32 %v223, 7
    %v225 = vsub.s32 %v222, %v224
    %v226 = vrot.slane %v210, %v225
    %v228 = vunpack.c.l.s4 1966171168
    %v229 = vunpack.c.0.s8 %v228
    %v230 = vlaneseq
    %v231 = vshrl.u32 %v230, 7
    %v232 = vsub.s32 %v229, %v231
    %v233 = vrot.slane %v211, %v232
    %v235 = vunpack.c.l.s4 1966171168
    %v236 = vunpack.c.0.s8 %v235
    %v237 = vlaneseq
    %v238 = vshrl.u32 %v237, 7
    %v239 = vsub.s32 %v236, %v238
    %v240 = vrot.slane %v212, %v239
    %v241 = vcombine.high %v219, %v219
    %v242 = vcombine.high %v226, %v226
    %v243 = vcombine.high %v233, %v233
    %v244 = vcombine.high %v240, %v240
    %v245 = vcombine.high %v193, %v193
    %v247 = vunpack.c.l.s4 1966171168
    %v248 = vunpack.c.0.s8 %v247
    %v249 = vlaneseq
    %v250 = vshrl.u32 %v249, 7
    %v251 = vsub.s32 %v248, %v250
    %v252 = vrot.slane %v193, %v251
    %v254 = vunpack.c.l.s4 1966171168
    %v255 = vunpack.c.0.s8 %v254
    %v256 = vlaneseq
    %v257 = vshrl.u32 %v256, 7
    %v258 = vsub.s32 %v255, %v257
    %v259 = vrot.slane %v245, %v258
    %v260 = vcombine.high %v252, %v252
    %v261 = vcombine.high %v259, %v259
    %v263 = vunpack.c.l.s4 1966171168
    %v264 = vunpack.c.0.s8 %v263
    %v265 = vlaneseq
    %v266 = vshrl.u32 %v265, 7
    %v267 = vsub.s32 %v264, %v266
    %v268 = vrot.slane %v252, %v267
    %v270 = vunpack.c.l.s4 1966171168
    %v271 = vunpack.c.0.s8 %v270
    %v272 = vlaneseq
    %v273 = vshrl.u32 %v272, 7
    %v274 = vsub.s32 %v271, %v273
    %v275 = vrot.slane %v259, %v274
    %v277 = vunpack.c.l.s4 1966171168
    %v278 = vunpack.c.0.s8 %v277
    %v279 = vlaneseq
    %v280 = vshrl.u32 %v279, 7
    %v281 = vsub.s32 %v278, %v280
    %v282 = vrot.slane %v260, %v281
    %v284 = vunpack.c.l.s4 1966171168
    %v285 = vunpack.c.0.s8 %v284
    %v286 = vlaneseq
    %v287 = vshrl.u32 %v286, 7
    %v288 = vsub.s32 %v285, %v287
    %v289 = vrot.slane %v261, %v288
    %v290 = vcombine.high %v268, %v268
    %v291 = vcombine.high %v275, %v275
    %v292 = vcombine.high %v282, %v282
    %v293 = vcombine.high %v289, %v289
    %v294 = vlaneseq
    %v295 = vshrl.u32 %v294, 7
    %v296 = vsub.s32 0, %v295
    %v297 = vrot.slane %v219, %v296
    %v298 = vlaneseq
    %v299 = vshrl.u32 %v298, 7
    %v300 = vsub.s32 0, %v299
    %v301 = vrot.slane %v233, %v300
    %v302 = vlaneseq
    %v303 = vshrl.u32 %v302, 7
    %v304 = vsub.s32 0, %v303
    %v305 = vrot.slane %v241, %v304
    %v306 = vlaneseq
    %v307 = vshrl.u32 %v306, 7
    %v308 = vsub.s32 0, %v307
    %v309 = vrot.slane %v243, %v308
    %v310 = vlaneseq
    %v311 = vshrl.u32 %v310, 7
    %v312 = vsub.s32 0, %v311
    %v313 = vrot.slane %v226, %v312
    %v314 = vlaneseq
    %v315 = vshrl.u32 %v314, 7
    %v316 = vsub.s32 0, %v315
    %v317 = vrot.slane %v240, %v316
    %v318 = vlaneseq
    %v319 = vshrl.u32 %v318, 7
    %v320 = vsub.s32 0, %v319
    %v321 = vrot.slane %v242, %v320
    %v322 = vlaneseq
    %v323 = vshrl.u32 %v322, 7
    %v324 = vsub.s32 0, %v323
    %v325 = vrot.slane %v244, %v324
    %v326 = vlaneseq
    %v327 = vshrl.u32 %v326, 7
    %v328 = vsub.s32 0, %v327
    %v329 = vrot.slane %v268, %v328
    %v330 = vlaneseq
    %v331 = vshrl.u32 %v330, 7
    %v332 = vsub.s32 0, %v331
    %v333 = vrot.slane %v282, %v332
    %v334 = vlaneseq
    %v335 = vshrl.u32 %v334, 7
    %v336 = vsub.s32 0, %v335
    %v337 = vrot.slane %v290, %v336
    %v338 = vlaneseq
    %v339 = vshrl.u32 %v338, 7
    %v340 = vsub.s32 0, %v339
    %v341 = vrot.slane %v292, %v340
    %v342 = vlaneseq
    %v343 = vshrl.u32 %v342, 7
    %v344 = vsub.s32 0, %v343
    %v345 = vrot.slane %v275, %v344
    %v346 = vlaneseq
    %v347 = vshrl.u32 %v346, 7
    %v348 = vsub.s32 0, %v347
    %v349 = vrot.slane %v289, %v348
    %v350 = vlaneseq
    %v351 = vshrl.u32 %v350, 7
    %v352 = vsub.s32 0, %v351
    %v353 = vrot.slane %v291, %v352
    %v354 = vlaneseq
    %v355 = vshrl.u32 %v354, 7
    %v356 = vsub.s32 0, %v355
    %v357 = vrot.slane %v293, %v356
    %376 = vrot.lane.b32.xlu0 %v182, 80
    %v377 = vpop.permute.xlu0 %376
    %378 = vrot.lane.b32.xlu0 %v188, 80
    %v379 = vpop.permute.xlu0 %378
    %v382 = vmul.f32 %v297, %v377
    %v383 = vmul.f32 %v301, %v377
    %v384 = vmul.f32 %v305, %v377
    %v385 = vmul.f32 %v309, %v377
    %v386 = vmul.f32 %v313, %v377
    %v387 = vmul.f32 %v317, %v377
    %v388 = vmul.f32 %v321, %v377
    %v389 = vmul.f32 %v325, %v377
    %v390 = vmul.f32 %v329, %v379
    %v391 = vmul.f32 %v333, %v379
    %v392 = vmul.f32 %v337, %v379
    %v393 = vmul.f32 %v341, %v379
    %v394 = vmul.f32 %v345, %v379
    %v395 = vmul.f32 %v349, %v379
    %v396 = vmul.f32 %v353, %v379
    %v397 = vmul.f32 %v357, %v379
    %v399 = vsel %vm108, %v382, 0
    %v402 = vsel %vm108, %v383, 0
    %v405 = vsel %vm108, %v384, 0
    %v408 = vsel %vm108, %v385, 0
    %v411 = vsel %vm108, %v386, 0
    %v414 = vsel %vm108, %v387, 0
    %v417 = vsel %vm108, %v388, 0
    %v420 = vsel %vm108, %v389, 0
    %v423 = vsel %vm108, %v390, 0
    %v426 = vsel %vm108, %v391, 0
    %v429 = vsel %vm108, %v392, 0
    %v432 = vsel %vm108, %v393, 0
    %v435 = vsel %vm108, %v394, 0
    %v438 = vsel %vm108, %v395, 0
    %v441 = vsel %vm108, %v396, 0
    %v444 = vsel %vm108, %v397, 0
    %446 = vmatprep.subr.mxu0 0.0
    %447 = vmatpush1.msra.mxu0 %v72
    %448 = vmatprep.subr.mxu0 0.0
    %449 = vmatpush1.msra.mxu0 %v73
    %450 = vmatprep.subr.mxu0 0.0
    %451 = vmatpush1.msra.mxu0 %v74
    %452 = vmatprep.subr.mxu0 0.0
    %453 = vmatpush1.msra.mxu0 %v75
    %454 = vmatprep.subr.mxu0 0.0
    %455 = vmatpush1.msra.mxu0 %v76
    %456 = vmatprep.subr.mxu0 0.0
    %457 = vmatpush1.msra.mxu0 %v77
    %458 = vmatprep.subr.mxu0 0.0
    %459 = vmatpush1.msra.mxu0 0.0
    %460 = vmatprep.subr.mxu0 0.0
    %461 = vmatpush1.msra.mxu0 0.0
    %462 = vmatprep.subr.mxu0 0.0
    %463 = vmatpush1.msra.mxu0 0.0
    %464 = vmatprep.subr.mxu0 0.0
    %465 = vmatpush1.msra.mxu0 0.0
    %466 = vmatprep.subr.mxu0 0.0
    %467 = vmatpush1.msra.mxu0 0.0
    %468 = vmatprep.subr.mxu0 0.0
    %469 = vmatpush1.msra.mxu0 0.0
    %470 = vmatprep.subr.mxu0 0.0
    %471 = vmatpush1.msra.mxu0 0.0
    %472 = vmatprep.subr.mxu0 0.0
    %473 = vmatpush1.msra.mxu0 0.0
    %474 = vmatprep.subr.mxu0 0.0
    %475 = vmatpush1.msra.mxu0 0.0
    %476 = vmatprep.subr.mxu0 0.0
    %477 = vmatpush1.msra.mxu0 0.0
    %478 = vmatprep.subr.mxu0 0.0
    %479 = vmatpush1.msra.mxu0 0.0
    %480 = vmatprep.subr.mxu0 0.0
    %481 = vmatpush1.msra.mxu0 0.0
    %482 = vmatprep.subr.mxu0 0.0
    %483 = vmatpush1.msra.mxu0 0.0
    %484 = vmatprep.subr.mxu0 0.0
    %485 = vmatpush1.msra.mxu0 0.0
    %486 = vmatprep.subr.mxu0 0.0
    %487 = vmatpush1.msra.mxu0 0.0
    %488 = vmatprep.subr.mxu0 0.0
    %489 = vmatpush1.msra.mxu0 0.0
    %490 = vmatprep.subr.mxu0 0.0
    %491 = vmatpush1.msra.mxu0 0.0
    %492 = vmatprep.subr.mxu0 0.0
    %493 = vmatpush1.msra.mxu0 0.0
    %494 = vmatprep.subr.mxu0 0.0
    %495 = vmatpush1.msra.mxu0 0.0
    %496 = vmatprep.subr.mxu0 0.0
    %497 = vmatpush1.msra.mxu0 0.0
    %498 = vmatprep.subr.mxu0 0.0
    %499 = vmatpush1.msra.mxu0 0.0
    %500 = vmatprep.subr.mxu0 0.0
    %501 = vmatpush1.msra.mxu0 0.0
    %502 = vmatprep.subr.mxu0 0.0
    %503 = vmatpush1.msra.mxu0 0.0
    %504 = vmatprep.subr.mxu0 0.0
    %505 = vmatpush1.msra.mxu0 0.0
    %506 = vmatprep.subr.mxu0 0.0
    %507 = vmatpush1.msra.mxu0 0.0
    %508 = vmatprep.subr.mxu0 0.0
    %509 = vmatpush1.msra.mxu0 0.0
    %510 = vmatprep.mubr.f32.mxu0 0.0
    %511 = vmatmul.mubr.f32.gmra.mrb[0].mxu0 %v399
    %v512 = vpop.f32.mrb[0].mxu0
    %v513 = vadd.f32 0.0, %v512
    %v514 = vpop.f32.mrb[0].mxu0
    %515 = vmatprep.mubr.f32.mxu0 0.0
    %516 = vmatmul.mubr.f32.gmra.mrb[0].mxu0 %v402
    %v517 = vpop.f32.mrb[0].mxu0
    %v518 = vadd.f32 0.0, %v517
    %v519 = vpop.f32.mrb[0].mxu0
    %520 = vmatprep.mubr.f32.mxu0 0.0
    %521 = vmatmul.mubr.f32.gmra.mrb[0].mxu0 %v405
    %v522 = vpop.f32.mrb[0].mxu0
    %v523 = vadd.f32 0.0, %v522
    %v524 = vpop.f32.mrb[0].mxu0
    %525 = vmatprep.mubr.f32.mxu0 0.0
    %526 = vmatmul.mubr.f32.gmra.mrb[0].mxu0 %v408
    %v527 = vpop.f32.mrb[0].mxu0
    %v528 = vadd.f32 0.0, %v527
    %v529 = vpop.f32.mrb[0].mxu0
    %530 = vmatprep.mubr.f32.mxu0 0.0
    %531 = vmatmul.mubr.f32.gmra.mrb[0].mxu0 %v411
    %v532 = vpop.f32.mrb[0].mxu0
    %v533 = vadd.f32 0.0, %v532
    %v534 = vpop.f32.mrb[0].mxu0
    %535 = vmatprep.mubr.f32.mxu0 0.0
    %536 = vmatmul.mubr.f32.gmra.mrb[0].mxu0 %v414
    %v537 = vpop.f32.mrb[0].mxu0
    %v538 = vadd.f32 0.0, %v537
    %v539 = vpop.f32.mrb[0].mxu0
    %540 = vmatprep.mubr.f32.mxu0 0.0
    %541 = vmatmul.mubr.f32.gmra.mrb[0].mxu0 %v417
    %v542 = vpop.f32.mrb[0].mxu0
    %v543 = vadd.f32 0.0, %v542
    %v544 = vpop.f32.mrb[0].mxu0
    %545 = vmatprep.mubr.f32.mxu0 0.0
    %546 = vmatmul.mubr.f32.gmra.mrb[0].mxu0 %v420
    %v547 = vpop.f32.mrb[0].mxu0
    %v548 = vadd.f32 0.0, %v547
    %v549 = vpop.f32.mrb[0].mxu0
    %550 = vmatprep.mubr.f32.mxu0 0.0
    %551 = vmatmul.mubr.f32.gmra.mrb[0].mxu0 %v423
    %v552 = vpop.f32.mrb[0].mxu0
    %v553 = vadd.f32 0.0, %v552
    %v554 = vpop.f32.mrb[0].mxu0
    %555 = vmatprep.mubr.f32.mxu0 0.0
    %556 = vmatmul.mubr.f32.gmra.mrb[0].mxu0 %v426
    %v557 = vpop.f32.mrb[0].mxu0
    %v558 = vadd.f32 0.0, %v557
    %v559 = vpop.f32.mrb[0].mxu0
    %560 = vmatprep.mubr.f32.mxu0 0.0
    %561 = vmatmul.mubr.f32.gmra.mrb[0].mxu0 %v429
    %v562 = vpop.f32.mrb[0].mxu0
    %v563 = vadd.f32 0.0, %v562
    %v564 = vpop.f32.mrb[0].mxu0
    %565 = vmatprep.mubr.f32.mxu0 0.0
    %566 = vmatmul.mubr.f32.gmra.mrb[0].mxu0 %v432
    %v567 = vpop.f32.mrb[0].mxu0
    %v568 = vadd.f32 0.0, %v567
    %v569 = vpop.f32.mrb[0].mxu0
    %570 = vmatprep.mubr.f32.mxu0 0.0
    %571 = vmatmul.mubr.f32.gmra.mrb[0].mxu0 %v435
    %v572 = vpop.f32.mrb[0].mxu0
    %v573 = vadd.f32 0.0, %v572
    %v574 = vpop.f32.mrb[0].mxu0
    %575 = vmatprep.mubr.f32.mxu0 0.0
    %576 = vmatmul.mubr.f32.gmra.mrb[0].mxu0 %v438
    %v577 = vpop.f32.mrb[0].mxu0
    %v578 = vadd.f32 0.0, %v577
    %v579 = vpop.f32.mrb[0].mxu0
    %580 = vmatprep.mubr.f32.mxu0 0.0
    %581 = vmatmul.mubr.f32.gmra.mrb[0].mxu0 %v441
    %v582 = vpop.f32.mrb[0].mxu0
    %v583 = vadd.f32 0.0, %v582
    %v584 = vpop.f32.mrb[0].mxu0
    %585 = vmatprep.mubr.f32.mxu0 0.0
    %586 = vmatmul.mubr.f32.gmra.mrb[0].mxu0 %v444
    %v587 = vpop.f32.mrb[0].mxu0
    %v588 = vadd.f32 0.0, %v587
    %v589 = vpop.f32.mrb[0].mxu0
    %590 = vdwg.mxu0
    %592 = vset.pattern.permute.xlu0 0
    %593 = vperm.xlu0 %592, %v41
    %v594 = vpop.permute.xlu0 %593
    %597 = vset.pattern.permute.xlu0 0
    %598 = vperm.xlu0 %597, %v42
    %v599 = vpop.permute.xlu0 %598
    %v601 = vadd.f32 %v513, %v594
    %v602 = vadd.f32 %v518, %v594
    %v603 = vadd.f32 %v523, %v594
    %v604 = vadd.f32 %v528, %v594
    %v605 = vadd.f32 %v533, %v594
    %v606 = vadd.f32 %v538, %v594
    %v607 = vadd.f32 %v543, %v594
    %v608 = vadd.f32 %v548, %v594
    %v609 = vadd.f32 %v553, %v599
    %v610 = vadd.f32 %v558, %v599
    %v611 = vadd.f32 %v563, %v599
    %v612 = vadd.f32 %v568, %v599
    %v613 = vadd.f32 %v573, %v599
    %v614 = vadd.f32 %v578, %v599
    %v615 = vadd.f32 %v583, %v599
    %v616 = vadd.f32 %v588, %v599
    %vm617 = vcmask 48128
    %v618 = vsel %vm617, %v601, -inf
    %v619 = vrot.slane %v618, 4
    %v620 = vmax.f32 %v618, %v619
    %v621 = vrot.slane %v620, 2
    %v622 = vmax.f32 %v620, %v621
    %v623 = vrot.slane %v622, 1
    %v624 = vmax.f32 %v622, %v623
    %v625 = vsel %vm617, %v602, -inf
    %v626 = vrot.slane %v625, 4
    %v627 = vmax.f32 %v625, %v626
    %v628 = vrot.slane %v627, 2
    %v629 = vmax.f32 %v627, %v628
    %v630 = vrot.slane %v629, 1
    %v631 = vmax.f32 %v629, %v630
    %v632 = vsel %vm617, %v603, -inf
    %v633 = vrot.slane %v632, 4
    %v634 = vmax.f32 %v632, %v633
    %v635 = vrot.slane %v634, 2
    %v636 = vmax.f32 %v634, %v635
    %v637 = vrot.slane %v636, 1
    %v638 = vmax.f32 %v636, %v637
    %v639 = vsel %vm617, %v604, -inf
    %v640 = vrot.slane %v639, 4
    %v641 = vmax.f32 %v639, %v640
    %v642 = vrot.slane %v641, 2
    %v643 = vmax.f32 %v641, %v642
    %v644 = vrot.slane %v643, 1
    %v645 = vmax.f32 %v643, %v644
    %v646 = vsel %vm617, %v605, -inf
    %v647 = vrot.slane %v646, 4
    %v648 = vmax.f32 %v646, %v647
    %v649 = vrot.slane %v648, 2
    %v650 = vmax.f32 %v648, %v649
    %v651 = vrot.slane %v650, 1
    %v652 = vmax.f32 %v650, %v651
    %v653 = vsel %vm617, %v606, -inf
    %v654 = vrot.slane %v653, 4
    %v655 = vmax.f32 %v653, %v654
    %v656 = vrot.slane %v655, 2
    %v657 = vmax.f32 %v655, %v656
    %v658 = vrot.slane %v657, 1
    %v659 = vmax.f32 %v657, %v658
    %v660 = vsel %vm617, %v607, -inf
    %v661 = vrot.slane %v660, 4
    %v662 = vmax.f32 %v660, %v661
    %v663 = vrot.slane %v662, 2
    %v664 = vmax.f32 %v662, %v663
    %v665 = vrot.slane %v664, 1
    %v666 = vmax.f32 %v664, %v665
    %v667 = vsel %vm617, %v608, -inf
    %v668 = vrot.slane %v667, 4
    %v669 = vmax.f32 %v667, %v668
    %v670 = vrot.slane %v669, 2
    %v671 = vmax.f32 %v669, %v670
    %v672 = vrot.slane %v671, 1
    %v673 = vmax.f32 %v671, %v672
    %v674 = vsel %vm617, %v609, -inf
    %v675 = vrot.slane %v674, 4
    %v676 = vmax.f32 %v674, %v675
    %v677 = vrot.slane %v676, 2
    %v678 = vmax.f32 %v676, %v677
    %v679 = vrot.slane %v678, 1
    %v680 = vmax.f32 %v678, %v679
    %v681 = vsel %vm617, %v610, -inf
    %v682 = vrot.slane %v681, 4
    %v683 = vmax.f32 %v681, %v682
    %v684 = vrot.slane %v683, 2
    %v685 = vmax.f32 %v683, %v684
    %v686 = vrot.slane %v685, 1
    %v687 = vmax.f32 %v685, %v686
    %v688 = vsel %vm617, %v611, -inf
    %v689 = vrot.slane %v688, 4
    %v690 = vmax.f32 %v688, %v689
    %v691 = vrot.slane %v690, 2
    %v692 = vmax.f32 %v690, %v691
    %v693 = vrot.slane %v692, 1
    %v694 = vmax.f32 %v692, %v693
    %v695 = vsel %vm617, %v612, -inf
    %v696 = vrot.slane %v695, 4
    %v697 = vmax.f32 %v695, %v696
    %v698 = vrot.slane %v697, 2
    %v699 = vmax.f32 %v697, %v698
    %v700 = vrot.slane %v699, 1
    %v701 = vmax.f32 %v699, %v700
    %v702 = vsel %vm617, %v613, -inf
    %v703 = vrot.slane %v702, 4
    %v704 = vmax.f32 %v702, %v703
    %v705 = vrot.slane %v704, 2
    %v706 = vmax.f32 %v704, %v705
    %v707 = vrot.slane %v706, 1
    %v708 = vmax.f32 %v706, %v707
    %v709 = vsel %vm617, %v614, -inf
    %v710 = vrot.slane %v709, 4
    %v711 = vmax.f32 %v709, %v710
    %v712 = vrot.slane %v711, 2
    %v713 = vmax.f32 %v711, %v712
    %v714 = vrot.slane %v713, 1
    %v715 = vmax.f32 %v713, %v714
    %v716 = vsel %vm617, %v615, -inf
    %v717 = vrot.slane %v716, 4
    %v718 = vmax.f32 %v716, %v717
    %v719 = vrot.slane %v718, 2
    %v720 = vmax.f32 %v718, %v719
    %v721 = vrot.slane %v720, 1
    %v722 = vmax.f32 %v720, %v721
    %v723 = vsel %vm617, %v616, -inf
    %v724 = vrot.slane %v723, 4
    %v725 = vmax.f32 %v723, %v724
    %v726 = vrot.slane %v725, 2
    %v727 = vmax.f32 %v725, %v726
    %v728 = vrot.slane %v727, 1
    %v729 = vmax.f32 %v727, %v728
    %v730 = vsub.f32 %v601, %v624
    %v731 = vsub.f32 %v602, %v631
    %v732 = vsub.f32 %v603, %v638
    %v733 = vsub.f32 %v604, %v645
    %v734 = vsub.f32 %v605, %v652
    %v735 = vsub.f32 %v606, %v659
    %v736 = vsub.f32 %v607, %v666
    %v737 = vsub.f32 %v608, %v673
    %v738 = vsub.f32 %v609, %v680
    %v739 = vsub.f32 %v610, %v687
    %v740 = vsub.f32 %v611, %v694
    %v741 = vsub.f32 %v612, %v701
    %v742 = vsub.f32 %v613, %v708
    %v743 = vsub.f32 %v614, %v715
    %v744 = vsub.f32 %v615, %v722
    %v745 = vsub.f32 %v616, %v729
    %v746 = vmul.f32 %v730, 1.442695
    %v747 = vpow.pop %v746
    %v748 = vmul.f32 %v731, 1.442695
    %v749 = vpow.pop %v748
    %v750 = vmul.f32 %v732, 1.442695
    %v751 = vpow.pop %v750
    %v752 = vmul.f32 %v733, 1.442695
    %v753 = vpow.pop %v752
    %v754 = vmul.f32 %v734, 1.442695
    %v755 = vpow.pop %v754
    %v756 = vmul.f32 %v735, 1.442695
    %v757 = vpow.pop %v756
    %v758 = vmul.f32 %v736, 1.442695
    %v759 = vpow.pop %v758
    %v760 = vmul.f32 %v737, 1.442695
    %v761 = vpow.pop %v760
    %v762 = vmul.f32 %v738, 1.442695
    %v763 = vpow.pop %v762
    %v764 = vmul.f32 %v739, 1.442695
    %v765 = vpow.pop %v764
    %v766 = vmul.f32 %v740, 1.442695
    %v767 = vpow.pop %v766
    %v768 = vmul.f32 %v741, 1.442695
    %v769 = vpow.pop %v768
    %v770 = vmul.f32 %v742, 1.442695
    %v771 = vpow.pop %v770
    %v772 = vmul.f32 %v743, 1.442695
    %v773 = vpow.pop %v772
    %v774 = vmul.f32 %v744, 1.442695
    %v775 = vpow.pop %v774
    %v776 = vmul.f32 %v745, 1.442695
    %v777 = vpow.pop %v776
    %v778 = vsel %vm617, %v747, 0.0
    %v779 = vrot.slane %v778, 4
    %v780 = vadd.f32 %v778, %v779
    %v781 = vrot.slane %v780, 2
    %v782 = vadd.f32 %v780, %v781
    %v783 = vrot.slane %v782, 1
    %v784 = vadd.f32 %v782, %v783
    %v785 = vsel %vm617, %v749, 0.0
    %v786 = vrot.slane %v785, 4
    %v787 = vadd.f32 %v785, %v786
    %v788 = vrot.slane %v787, 2
    %v789 = vadd.f32 %v787, %v788
    %v790 = vrot.slane %v789, 1
    %v791 = vadd.f32 %v789, %v790
    %v792 = vsel %vm617, %v751, 0.0
    %v793 = vrot.slane %v792, 4
    %v794 = vadd.f32 %v792, %v793
    %v795 = vrot.slane %v794, 2
    %v796 = vadd.f32 %v794, %v795
    %v797 = vrot.slane %v796, 1
    %v798 = vadd.f32 %v796, %v797
    %v799 = vsel %vm617, %v753, 0.0
    %v800 = vrot.slane %v799, 4
    %v801 = vadd.f32 %v799, %v800
    %v802 = vrot.slane %v801, 2
    %v803 = vadd.f32 %v801, %v802
    %v804 = vrot.slane %v803, 1
    %v805 = vadd.f32 %v803, %v804
    %v806 = vsel %vm617, %v755, 0.0
    %v807 = vrot.slane %v806, 4
    %v808 = vadd.f32 %v806, %v807
    %v809 = vrot.slane %v808, 2
    %v810 = vadd.f32 %v808, %v809
    %v811 = vrot.slane %v810, 1
    %v812 = vadd.f32 %v810, %v811
    %v813 = vsel %vm617, %v757, 0.0
    %v814 = vrot.slane %v813, 4
    %v815 = vadd.f32 %v813, %v814
    %v816 = vrot.slane %v815, 2
    %v817 = vadd.f32 %v815, %v816
    %v818 = vrot.slane %v817, 1
    %v819 = vadd.f32 %v817, %v818
    %v820 = vsel %vm617, %v759, 0.0
    %v821 = vrot.slane %v820, 4
    %v822 = vadd.f32 %v820, %v821
    %v823 = vrot.slane %v822, 2
    %v824 = vadd.f32 %v822, %v823
    %v825 = vrot.slane %v824, 1
    %v826 = vadd.f32 %v824, %v825
    %v827 = vsel %vm617, %v761, 0.0
    %v828 = vrot.slane %v827, 4
    %v829 = vadd.f32 %v827, %v828
    %v830 = vrot.slane %v829, 2
    %v831 = vadd.f32 %v829, %v830
    %v832 = vrot.slane %v831, 1
    %v833 = vadd.f32 %v831, %v832
    %v834 = vsel %vm617, %v763, 0.0
    %v835 = vrot.slane %v834, 4
    %v836 = vadd.f32 %v834, %v835
    %v837 = vrot.slane %v836, 2
    %v838 = vadd.f32 %v836, %v837
    %v839 = vrot.slane %v838, 1
    %v840 = vadd.f32 %v838, %v839
    %v841 = vsel %vm617, %v765, 0.0
    %v842 = vrot.slane %v841, 4
    %v843 = vadd.f32 %v841, %v842
    %v844 = vrot.slane %v843, 2
    %v845 = vadd.f32 %v843, %v844
    %v846 = vrot.slane %v845, 1
    %v847 = vadd.f32 %v845, %v846
    %v848 = vsel %vm617, %v767, 0.0
    %v849 = vrot.slane %v848, 4
    %v850 = vadd.f32 %v848, %v849
    %v851 = vrot.slane %v850, 2
    %v852 = vadd.f32 %v850, %v851
    %v853 = vrot.slane %v852, 1
    %v854 = vadd.f32 %v852, %v853
    %v855 = vsel %vm617, %v769, 0.0
    %v856 = vrot.slane %v855, 4
    %v857 = vadd.f32 %v855, %v856
    %v858 = vrot.slane %v857, 2
    %v859 = vadd.f32 %v857, %v858
    %v860 = vrot.slane %v859, 1
    %v861 = vadd.f32 %v859, %v860
    %v862 = vsel %vm617, %v771, 0.0
    %v863 = vrot.slane %v862, 4
    %v864 = vadd.f32 %v862, %v863
    %v865 = vrot.slane %v864, 2
    %v866 = vadd.f32 %v864, %v865
    %v867 = vrot.slane %v866, 1
    %v868 = vadd.f32 %v866, %v867
    %v869 = vsel %vm617, %v773, 0.0
    %v870 = vrot.slane %v869, 4
    %v871 = vadd.f32 %v869, %v870
    %v872 = vrot.slane %v871, 2
    %v873 = vadd.f32 %v871, %v872
    %v874 = vrot.slane %v873, 1
    %v875 = vadd.f32 %v873, %v874
    %v876 = vsel %vm617, %v775, 0.0
    %v877 = vrot.slane %v876, 4
    %v878 = vadd.f32 %v876, %v877
    %v879 = vrot.slane %v878, 2
    %v880 = vadd.f32 %v878, %v879
    %v881 = vrot.slane %v880, 1
    %v882 = vadd.f32 %v880, %v881
    %v883 = vsel %vm617, %v777, 0.0
    %v884 = vrot.slane %v883, 4
    %v885 = vadd.f32 %v883, %v884
    %v886 = vrot.slane %v885, 2
    %v887 = vadd.f32 %v885, %v886
    %v888 = vrot.slane %v887, 1
    %v889 = vadd.f32 %v887, %v888
    %v890 = vrcp.pop %v784
    %v891 = vrcp.pop %v791
    %v892 = vrcp.pop %v798
    %v893 = vrcp.pop %v805
    %v894 = vrcp.pop %v812
    %v895 = vrcp.pop %v819
    %v896 = vrcp.pop %v826
    %v897 = vrcp.pop %v833
    %v898 = vrcp.pop %v840
    %v899 = vrcp.pop %v847
    %v900 = vrcp.pop %v854
    %v901 = vrcp.pop %v861
    %v902 = vrcp.pop %v868
    %v903 = vrcp.pop %v875
    %v904 = vrcp.pop %v882
    %v905 = vrcp.pop %v889
    %v906 = vmul.f32 %v747, %v890
    %v907 = vmul.f32 %v749, %v891
    %v908 = vmul.f32 %v751, %v892
    %v909 = vmul.f32 %v753, %v893
    %v910 = vmul.f32 %v755, %v894
    %v911 = vmul.f32 %v757, %v895
    %v912 = vmul.f32 %v759, %v896
    %v913 = vmul.f32 %v761, %v897
    %v914 = vmul.f32 %v763, %v898
    %v915 = vmul.f32 %v765, %v899
    %v916 = vmul.f32 %v767, %v900
    %v917 = vmul.f32 %v769, %v901
    %v918 = vmul.f32 %v771, %v902
    %v919 = vmul.f32 %v773, %v903
    %v920 = vmul.f32 %v775, %v904
    %v921 = vmul.f32 %v777, %v905
    %v923 = vsel %vm617, %v906, 0
    %v926 = vsel %vm617, %v907, 0
    %v929 = vsel %vm617, %v908, 0
    %v932 = vsel %vm617, %v909, 0
    %v935 = vsel %vm617, %v910, 0
    %v938 = vsel %vm617, %v911, 0
    %v941 = vsel %vm617, %v912, 0
    %v944 = vsel %vm617, %v913, 0
    %v947 = vsel %vm617, %v914, 0
    %v950 = vsel %vm617, %v915, 0
    %v953 = vsel %vm617, %v916, 0
    %v956 = vsel %vm617, %v917, 0
    %v959 = vsel %vm617, %v918, 0
    %v962 = vsel %vm617, %v919, 0
    %v965 = vsel %vm617, %v920, 0
    %v968 = vsel %vm617, %v921, 0
    %vm970 = vcmask 1045504
    %v972 = vsel %vm970, %v83, 0
    %974 = vmatprep.subr.mxu0 0.0
    %975 = vmatpush1.msra.mxu0 %v972
    %976 = vmatprep.subr.mxu0 0.0
    %977 = vmatpush1.msra.mxu0 0.0
    %978 = vmatprep.subr.mxu0 0.0
    %979 = vmatpush1.msra.mxu0 0.0
    %980 = vmatprep.subr.mxu0 0.0
    %981 = vmatpush1.msra.mxu0 0.0
    %982 = vmatprep.subr.mxu0 0.0
    %983 = vmatpush1.msra.mxu0 0.0
    %984 = vmatprep.subr.mxu0 0.0
    %985 = vmatpush1.msra.mxu0 0.0
    %986 = vmatprep.subr.mxu0 0.0
    %987 = vmatpush1.msra.mxu0 0.0
    %988 = vmatprep.subr.mxu0 0.0
    %989 = vmatpush1.msra.mxu0 0.0
    %990 = vmatprep.subr.mxu0 0.0
    %991 = vmatpush1.msra.mxu0 0.0
    %992 = vmatprep.subr.mxu0 0.0
    %993 = vmatpush1.msra.mxu0 0.0
    %994 = vmatprep.subr.mxu0 0.0
    %995 = vmatpush1.msra.mxu0 0.0
    %996 = vmatprep.subr.mxu0 0.0
    %997 = vmatpush1.msra.mxu0 0.0
    %998 = vmatprep.subr.mxu0 0.0
    %999 = vmatpush1.msra.mxu0 0.0
    %1000 = vmatprep.subr.mxu0 0.0
    %1001 = vmatpush1.msra.mxu0 0.0
    %1002 = vmatprep.subr.mxu0 0.0
    %1003 = vmatpush1.msra.mxu0 0.0
    %1004 = vmatprep.subr.mxu0 0.0
    %1005 = vmatpush1.msra.mxu0 0.0
    %1006 = vmatprep.subr.mxu0 0.0
    %1007 = vmatpush1.msra.mxu0 0.0
    %1008 = vmatprep.subr.mxu0 0.0
    %1009 = vmatpush1.msra.mxu0 0.0
    %1010 = vmatprep.subr.mxu0 0.0
    %1011 = vmatpush1.msra.mxu0 0.0
    %1012 = vmatprep.subr.mxu0 0.0
    %1013 = vmatpush1.msra.mxu0 0.0
    %1014 = vmatprep.subr.mxu0 0.0
    %1015 = vmatpush1.msra.mxu0 0.0
    %1016 = vmatprep.subr.mxu0 0.0
    %1017 = vmatpush1.msra.mxu0 0.0
    %1018 = vmatprep.subr.mxu0 0.0
    %1019 = vmatpush1.msra.mxu0 0.0
    %1020 = vmatprep.subr.mxu0 0.0
    %1021 = vmatpush1.msra.mxu0 0.0
    %1022 = vmatprep.subr.mxu0 0.0
    %1023 = vmatpush1.msra.mxu0 0.0
    %1024 = vmatprep.subr.mxu0 0.0
    %1025 = vmatpush1.msra.mxu0 0.0
    %1026 = vmatprep.subr.mxu0 0.0
    %1027 = vmatpush1.msra.mxu0 0.0
    %1028 = vmatprep.subr.mxu0 0.0
    %1029 = vmatpush1.msra.mxu0 0.0
    %1030 = vmatprep.subr.mxu0 0.0
    %1031 = vmatpush1.msra.mxu0 0.0
    %1032 = vmatprep.subr.mxu0 0.0
    %1033 = vmatpush1.msra.mxu0 0.0
    %1034 = vmatprep.subr.mxu0 0.0
    %1035 = vmatpush1.msra.mxu0 0.0
    %1036 = vmatprep.subr.mxu0 0.0
    %1037 = vmatpush1.msra.mxu0 0.0
    %1038 = vmatprep.mubr.f32.mxu0 0.0
    %1039 = vmatmul.mubr.f32.gmra.mrb[0].mxu0 %v923
    %v1040 = vpop.f32.mrb[0].mxu0
    %v1041 = vadd.f32 0.0, %v1040
    %v1042 = vpop.f32.mrb[0].mxu0
    %1043 = vmatprep.mubr.f32.mxu0 0.0
    %1044 = vmatmul.mubr.f32.gmra.mrb[0].mxu0 %v926
    %v1045 = vpop.f32.mrb[0].mxu0
    %v1046 = vadd.f32 0.0, %v1045
    %v1047 = vpop.f32.mrb[0].mxu0
    %1048 = vmatprep.mubr.f32.mxu0 0.0
    %1049 = vmatmul.mubr.f32.gmra.mrb[0].mxu0 %v929
    %v1050 = vpop.f32.mrb[0].mxu0
    %v1051 = vadd.f32 0.0, %v1050
    %v1052 = vpop.f32.mrb[0].mxu0
    %1053 = vmatprep.mubr.f32.mxu0 0.0
    %1054 = vmatmul.mubr.f32.gmra.mrb[0].mxu0 %v932
    %v1055 = vpop.f32.mrb[0].mxu0
    %v1056 = vadd.f32 0.0, %v1055
    %v1057 = vpop.f32.mrb[0].mxu0
    %1058 = vmatprep.mubr.f32.mxu0 0.0
    %1059 = vmatmul.mubr.f32.gmra.mrb[0].mxu0 %v935
    %v1060 = vpop.f32.mrb[0].mxu0
    %v1061 = vadd.f32 0.0, %v1060
    %v1062 = vpop.f32.mrb[0].mxu0
    %1063 = vmatprep.mubr.f32.mxu0 0.0
    %1064 = vmatmul.mubr.f32.gmra.mrb[0].mxu0 %v938
    %v1065 = vpop.f32.mrb[0].mxu0
    %v1066 = vadd.f32 0.0, %v1065
    %v1067 = vpop.f32.mrb[0].mxu0
    %1068 = vmatprep.mubr.f32.mxu0 0.0
    %1069 = vmatmul.mubr.f32.gmra.mrb[0].mxu0 %v941
    %v1070 = vpop.f32.mrb[0].mxu0
    %v1071 = vadd.f32 0.0, %v1070
    %v1072 = vpop.f32.mrb[0].mxu0
    %1073 = vmatprep.mubr.f32.mxu0 0.0
    %1074 = vmatmul.mubr.f32.gmra.mrb[0].mxu0 %v944
    %v1075 = vpop.f32.mrb[0].mxu0
    %v1076 = vadd.f32 0.0, %v1075
    %v1077 = vpop.f32.mrb[0].mxu0
    %1078 = vmatprep.mubr.f32.mxu0 0.0
    %1079 = vmatmul.mubr.f32.gmra.mrb[0].mxu0 %v947
    %v1080 = vpop.f32.mrb[0].mxu0
    %v1081 = vadd.f32 0.0, %v1080
    %v1082 = vpop.f32.mrb[0].mxu0
    %1083 = vmatprep.mubr.f32.mxu0 0.0
    %1084 = vmatmul.mubr.f32.gmra.mrb[0].mxu0 %v950
    %v1085 = vpop.f32.mrb[0].mxu0
    %v1086 = vadd.f32 0.0, %v1085
    %v1087 = vpop.f32.mrb[0].mxu0
    %1088 = vmatprep.mubr.f32.mxu0 0.0
    %1089 = vmatmul.mubr.f32.gmra.mrb[0].mxu0 %v953
    %v1090 = vpop.f32.mrb[0].mxu0
    %v1091 = vadd.f32 0.0, %v1090
    %v1092 = vpop.f32.mrb[0].mxu0
    %1093 = vmatprep.mubr.f32.mxu0 0.0
    %1094 = vmatmul.mubr.f32.gmra.mrb[0].mxu0 %v956
    %v1095 = vpop.f32.mrb[0].mxu0
    %v1096 = vadd.f32 0.0, %v1095
    %v1097 = vpop.f32.mrb[0].mxu0
    %1098 = vmatprep.mubr.f32.mxu0 0.0
    %1099 = vmatmul.mubr.f32.gmra.mrb[0].mxu0 %v959
    %v1100 = vpop.f32.mrb[0].mxu0
    %v1101 = vadd.f32 0.0, %v1100
    %v1102 = vpop.f32.mrb[0].mxu0
    %1103 = vmatprep.mubr.f32.mxu0 0.0
    %1104 = vmatmul.mubr.f32.gmra.mrb[0].mxu0 %v962
    %v1105 = vpop.f32.mrb[0].mxu0
    %v1106 = vadd.f32 0.0, %v1105
    %v1107 = vpop.f32.mrb[0].mxu0
    %1108 = vmatprep.mubr.f32.mxu0 0.0
    %1109 = vmatmul.mubr.f32.gmra.mrb[0].mxu0 %v965
    %v1110 = vpop.f32.mrb[0].mxu0
    %v1111 = vadd.f32 0.0, %v1110
    %v1112 = vpop.f32.mrb[0].mxu0
    %1113 = vmatprep.mubr.f32.mxu0 0.0
    %1114 = vmatmul.mubr.f32.gmra.mrb[0].mxu0 %v968
    %v1115 = vpop.f32.mrb[0].mxu0
    %v1116 = vadd.f32 0.0, %v1115
    %v1117 = vpop.f32.mrb[0].mxu0
    %1118 = vdwg.mxu0
    %1121 = vrot.lane.b32.xlu0 %v182, 32
    %v1122 = vpop.permute.xlu0 %1121
    %1123 = vrot.lane.b32.xlu0 %v184, 32
    %v1124 = vpop.permute.xlu0 %1123
    %1125 = vrot.lane.b32.xlu0 %v188, 32
    %v1126 = vpop.permute.xlu0 %1125
    %1127 = vrot.lane.b32.xlu0 %v190, 32
    %v1128 = vpop.permute.xlu0 %1127
    %vm1129 = vcmask 261120
    %v1130 = vsel %vm1129, %v1122, %v1124
    %v1131 = vsel %vm1129, %v1126, %v1128
    %v1134 = vmul.f32 %v1041, %v1130
    %v1135 = vmul.f32 %v1046, %v1130
    %v1136 = vmul.f32 %v1051, %v1130
    %v1137 = vmul.f32 %v1056, %v1130
    %v1138 = vmul.f32 %v1061, %v1130
    %v1139 = vmul.f32 %v1066, %v1130
    %v1140 = vmul.f32 %v1071, %v1130
    %v1141 = vmul.f32 %v1076, %v1130
    %v1142 = vmul.f32 %v1081, %v1131
    %v1143 = vmul.f32 %v1086, %v1131
    %v1144 = vmul.f32 %v1091, %v1131
    %v1145 = vmul.f32 %v1096, %v1131
    %v1146 = vmul.f32 %v1101, %v1131
    %v1147 = vmul.f32 %v1106, %v1131
    %v1148 = vmul.f32 %v1111, %v1131
    %v1149 = vmul.f32 %v1116, %v1131
    %v1150 = vsel %vm108, %v1134, 0.0
    %v1151 = vrot.slane %v1150, 4
    %v1152 = vadd.f32 %v1150, %v1151
    %v1153 = vrot.slane %v1152, 2
    %v1154 = vadd.f32 %v1152, %v1153
    %v1155 = vrot.slane %v1154, 1
    %v1156 = vadd.f32 %v1154, %v1155
    %v1157 = vsel %vm108, %v1135, 0.0
    %v1158 = vrot.slane %v1157, 4
    %v1159 = vadd.f32 %v1157, %v1158
    %v1160 = vrot.slane %v1159, 2
    %v1161 = vadd.f32 %v1159, %v1160
    %v1162 = vrot.slane %v1161, 1
    %v1163 = vadd.f32 %v1161, %v1162
    %v1164 = vsel %vm108, %v1136, 0.0
    %v1165 = vrot.slane %v1164, 4
    %v1166 = vadd.f32 %v1164, %v1165
    %v1167 = vrot.slane %v1166, 2
    %v1168 = vadd.f32 %v1166, %v1167
    %v1169 = vrot.slane %v1168, 1
    %v1170 = vadd.f32 %v1168, %v1169
    %v1171 = vsel %vm108, %v1137, 0.0
    %v1172 = vrot.slane %v1171, 4
    %v1173 = vadd.f32 %v1171, %v1172
    %v1174 = vrot.slane %v1173, 2
    %v1175 = vadd.f32 %v1173, %v1174
    %v1176 = vrot.slane %v1175, 1
    %v1177 = vadd.f32 %v1175, %v1176
    %v1178 = vsel %vm108, %v1138, 0.0
    %v1179 = vrot.slane %v1178, 4
    %v1180 = vadd.f32 %v1178, %v1179
    %v1181 = vrot.slane %v1180, 2
    %v1182 = vadd.f32 %v1180, %v1181
    %v1183 = vrot.slane %v1182, 1
    %v1184 = vadd.f32 %v1182, %v1183
    %v1185 = vsel %vm108, %v1139, 0.0
    %v1186 = vrot.slane %v1185, 4
    %v1187 = vadd.f32 %v1185, %v1186
    %v1188 = vrot.slane %v1187, 2
    %v1189 = vadd.f32 %v1187, %v1188
    %v1190 = vrot.slane %v1189, 1
    %v1191 = vadd.f32 %v1189, %v1190
    %v1192 = vsel %vm108, %v1140, 0.0
    %v1193 = vrot.slane %v1192, 4
    %v1194 = vadd.f32 %v1192, %v1193
    %v1195 = vrot.slane %v1194, 2
    %v1196 = vadd.f32 %v1194, %v1195
    %v1197 = vrot.slane %v1196, 1
    %v1198 = vadd.f32 %v1196, %v1197
    %v1199 = vsel %vm108, %v1141, 0.0
    %v1200 = vrot.slane %v1199, 4
    %v1201 = vadd.f32 %v1199, %v1200
    %v1202 = vrot.slane %v1201, 2
    %v1203 = vadd.f32 %v1201, %v1202
    %v1204 = vrot.slane %v1203, 1
    %v1205 = vadd.f32 %v1203, %v1204
    %v1206 = vsel %vm108, %v1142, 0.0
    %v1207 = vrot.slane %v1206, 4
    %v1208 = vadd.f32 %v1206, %v1207
    %v1209 = vrot.slane %v1208, 2
    %v1210 = vadd.f32 %v1208, %v1209
    %v1211 = vrot.slane %v1210, 1
    %v1212 = vadd.f32 %v1210, %v1211
    %v1213 = vsel %vm108, %v1143, 0.0
    %v1214 = vrot.slane %v1213, 4
    %v1215 = vadd.f32 %v1213, %v1214
    %v1216 = vrot.slane %v1215, 2
    %v1217 = vadd.f32 %v1215, %v1216
    %v1218 = vrot.slane %v1217, 1
    %v1219 = vadd.f32 %v1217, %v1218
    %v1220 = vsel %vm108, %v1144, 0.0
    %v1221 = vrot.slane %v1220, 4
    %v1222 = vadd.f32 %v1220, %v1221
    %v1223 = vrot.slane %v1222, 2
    %v1224 = vadd.f32 %v1222, %v1223
    %v1225 = vrot.slane %v1224, 1
    %v1226 = vadd.f32 %v1224, %v1225
    %v1227 = vsel %vm108, %v1145, 0.0
    %v1228 = vrot.slane %v1227, 4
    %v1229 = vadd.f32 %v1227, %v1228
    %v1230 = vrot.slane %v1229, 2
    %v1231 = vadd.f32 %v1229, %v1230
    %v1232 = vrot.slane %v1231, 1
    %v1233 = vadd.f32 %v1231, %v1232
    %v1234 = vsel %vm108, %v1146, 0.0
    %v1235 = vrot.slane %v1234, 4
    %v1236 = vadd.f32 %v1234, %v1235
    %v1237 = vrot.slane %v1236, 2
    %v1238 = vadd.f32 %v1236, %v1237
    %v1239 = vrot.slane %v1238, 1
    %v1240 = vadd.f32 %v1238, %v1239
    %v1241 = vsel %vm108, %v1147, 0.0
    %v1242 = vrot.slane %v1241, 4
    %v1243 = vadd.f32 %v1241, %v1242
    %v1244 = vrot.slane %v1243, 2
    %v1245 = vadd.f32 %v1243, %v1244
    %v1246 = vrot.slane %v1245, 1
    %v1247 = vadd.f32 %v1245, %v1246
    %v1248 = vsel %vm108, %v1148, 0.0
    %v1249 = vrot.slane %v1248, 4
    %v1250 = vadd.f32 %v1248, %v1249
    %v1251 = vrot.slane %v1250, 2
    %v1252 = vadd.f32 %v1250, %v1251
    %v1253 = vrot.slane %v1252, 1
    %v1254 = vadd.f32 %v1252, %v1253
    %v1255 = vsel %vm108, %v1149, 0.0
    %v1256 = vrot.slane %v1255, 4
    %v1257 = vadd.f32 %v1255, %v1256
    %v1258 = vrot.slane %v1257, 2
    %v1259 = vadd.f32 %v1257, %v1258
    %v1260 = vrot.slane %v1259, 1
    %v1261 = vadd.f32 %v1259, %v1260
    %v1262 = vld [vmem:[%s5] sm:$0x3f]
    %v1263 = vld [vmem:[%s4] sm:$0xff]
    %v1264 = vld [vmem:[%s4 + $0x8] sm:$0xff]
    %v1265 = vld [vmem:[%s4 + $0x10] sm:$0xff]
    %v1266 = vld [vmem:[%s4 + $0x18] sm:$0xff]
    %v1267 = vld [vmem:[%s4 + $0x20] sm:$0xff]
    %v1268 = vld [vmem:[%s4 + $0x28] sm:$0xff]
    %v1269 = vlaneseq
    %v1270 = vshrl.u32 %v1269, 7
    %v1271 = vsub.s32 0, %v1270
    %v1272 = vrot.slane %v1262, %v1271
    %vm1289 = vcmask 1041409
    %v1290 = vsel %vm1289, %v1163, %v1156
    %vm1291 = vcmask 1042434
    %v1292 = vsel %vm1291, %v1170, %v1290
    %vm1293 = vcmask 1043459
    %v1294 = vsel %vm1293, %v1177, %v1292
    %vm1295 = vcmask 1044484
    %v1296 = vsel %vm1295, %v1184, %v1294
    %vm1297 = vcmask 1045509
    %v1298 = vsel %vm1297, %v1191, %v1296
    %vm1299 = vcmask 1046534
    %v1300 = vsel %vm1299, %v1198, %v1298
    %vm1301 = vcmask 1047559
    %v1302 = vsel %vm1301, %v1205, %v1300
    %v1303 = vsel %vm1289, %v1219, %v1212
    %v1304 = vsel %vm1291, %v1226, %v1303
    %v1305 = vsel %vm1293, %v1233, %v1304
    %v1306 = vsel %vm1295, %v1240, %v1305
    %v1307 = vsel %vm1297, %v1247, %v1306
    %v1308 = vsel %vm1299, %v1254, %v1307
    %v1309 = vsel %vm1301, %v1261, %v1308
    %v1310 = vsel %vm108, %v1302, 0
    %v1312 = vsel %vm108, %v1309, 0
    %1314 = vmatprep.subr.mxu0 0.0
    %1315 = vmatpush1.msra.mxu0 %v1263
    %1316 = vmatprep.subr.mxu0 0.0
    %1317 = vmatpush1.msra.mxu0 %v1264
    %1318 = vmatprep.subr.mxu0 0.0
    %1319 = vmatpush1.msra.mxu0 %v1265
    %1320 = vmatprep.subr.mxu0 0.0
    %1321 = vmatpush1.msra.mxu0 %v1266
    %1322 = vmatprep.subr.mxu0 0.0
    %1323 = vmatpush1.msra.mxu0 %v1267
    %1324 = vmatprep.subr.mxu0 0.0
    %1325 = vmatpush1.msra.mxu0 %v1268
    %1326 = vmatprep.subr.mxu0 0.0
    %1327 = vmatpush1.msra.mxu0 0.0
    %1328 = vmatprep.subr.mxu0 0.0
    %1329 = vmatpush1.msra.mxu0 0.0
    %1330 = vmatprep.subr.mxu0 0.0
    %1331 = vmatpush1.msra.mxu0 0.0
    %1332 = vmatprep.subr.mxu0 0.0
    %1333 = vmatpush1.msra.mxu0 0.0
    %1334 = vmatprep.subr.mxu0 0.0
    %1335 = vmatpush1.msra.mxu0 0.0
    %1336 = vmatprep.subr.mxu0 0.0
    %1337 = vmatpush1.msra.mxu0 0.0
    %1338 = vmatprep.subr.mxu0 0.0
    %1339 = vmatpush1.msra.mxu0 0.0
    %1340 = vmatprep.subr.mxu0 0.0
    %1341 = vmatpush1.msra.mxu0 0.0
    %1342 = vmatprep.subr.mxu0 0.0
    %1343 = vmatpush1.msra.mxu0 0.0
    %1344 = vmatprep.subr.mxu0 0.0
    %1345 = vmatpush1.msra.mxu0 0.0
    %1346 = vmatprep.subr.mxu0 0.0
    %1347 = vmatpush1.msra.mxu0 0.0
    %1348 = vmatprep.subr.mxu0 0.0
    %1349 = vmatpush1.msra.mxu0 0.0
    %1350 = vmatprep.subr.mxu0 0.0
    %1351 = vmatpush1.msra.mxu0 0.0
    %1352 = vmatprep.subr.mxu0 0.0
    %1353 = vmatpush1.msra.mxu0 0.0
    %1354 = vmatprep.subr.mxu0 0.0
    %1355 = vmatpush1.msra.mxu0 0.0
    %1356 = vmatprep.subr.mxu0 0.0
    %1357 = vmatpush1.msra.mxu0 0.0
    %1358 = vmatprep.subr.mxu0 0.0
    %1359 = vmatpush1.msra.mxu0 0.0
    %1360 = vmatprep.subr.mxu0 0.0
    %1361 = vmatpush1.msra.mxu0 0.0
    %1362 = vmatprep.subr.mxu0 0.0
    %1363 = vmatpush1.msra.mxu0 0.0
    %1364 = vmatprep.subr.mxu0 0.0
    %1365 = vmatpush1.msra.mxu0 0.0
    %1366 = vmatprep.subr.mxu0 0.0
    %1367 = vmatpush1.msra.mxu0 0.0
    %1368 = vmatprep.subr.mxu0 0.0
    %1369 = vmatpush1.msra.mxu0 0.0
    %1370 = vmatprep.subr.mxu0 0.0
    %1371 = vmatpush1.msra.mxu0 0.0
    %1372 = vmatprep.subr.mxu0 0.0
    %1373 = vmatpush1.msra.mxu0 0.0
    %1374 = vmatprep.subr.mxu0 0.0
    %1375 = vmatpush1.msra.mxu0 0.0
    %1376 = vmatprep.subr.mxu0 0.0
    %1377 = vmatpush1.msra.mxu0 0.0
    %1378 = vmatprep.mubr.f32.mxu0 0.0
    %1379 = vmatmul.mubr.f32.gmra.mrb[0].mxu0 %v1310
    %v1380 = vpop.f32.mrb[0].mxu0
    %v1381 = vadd.f32 %v1272, %v1380
    %v1382 = vpop.f32.mrb[0].mxu0
    %1383 = vmatprep.mubr.f32.mxu0 0.0
    %1384 = vmatmul.mubr.f32.gmra.mrb[0].mxu0 %v1312
    %v1385 = vpop.f32.mrb[0].mxu0
    %v1386 = vadd.f32 %v1272, %v1385
    %v1387 = vpop.f32.mrb[0].mxu0
    %1388 = vdwg.mxu0
    %v1389 = vadd.f32 %v39, %v1381
    %v1390 = vadd.f32 %v40, %v1386
    %v1391 = vsel %vm108, %v1389, 0.0
    %1392 = vadd.xlane.f32.xlu0 %v1391
    %v1393 = vpop.xlane.xlu0 %1392
    %v1394 = vsel %vm108, %v1390, 0.0
    %1395 = vadd.xlane.f32.xlu0 %v1394
    %v1396 = vpop.xlane.xlu0 %1395
    %v1397 = vrcp.pop 48.0
    %v1398 = vmul.f32 %v1393, %v1397
    %v1399 = vmul.f32 %v1396, %v1397
    %v1400 = vsub.f32 %v1389, %v1398
    %v1401 = vsub.f32 %v1390, %v1399
    %v1402 = vmul.f32 %v1400, %v1400
    %v1403 = vmul.f32 %v1401, %v1401
    %v1404 = vsel %vm108, %v1402, 0.0
    %1405 = vadd.xlane.f32.xlu0 %v1404
    %v1406 = vpop.xlane.xlu0 %1405
    %v1407 = vsel %vm108, %v1403, 0.0
    %1408 = vadd.xlane.f32.xlu0 %v1407
    %v1409 = vpop.xlane.xlu0 %1408
    %v1410 = vmul.f32 %v1406, %v1397
    %v1411 = vmul.f32 %v1409, %v1397
    %v1412 = vadd.f32 %v1410, 1e-05
    %v1413 = vadd.f32 %v1411, 1e-05
    %v1414 = vrsqrt.pop %v1412
    %v1415 = vrsqrt.pop %v1413
    %v1416 = vmul.f32 %v1400, %v1414
    %v1417 = vmul.f32 %v1401, %v1415
    %v1418 = vlaneseq
    %v1419 = vshrl.u32 %v1418, 7
    %v1420 = vsub.s32 1, %v1419
    %v1421 = vrot.slane %v1262, %v1420
    %v1422 = vmul.f32 %v1416, %v1421
    %v1423 = vmul.f32 %v1417, %v1421
    %v1424 = vlaneseq
    %v1425 = vshrl.u32 %v1424, 7
    %v1426 = vsub.s32 2, %v1425
    %v1427 = vrot.slane %v1262, %v1426
    %v1428 = vadd.f32 %v1422, %v1427
    %v1429 = vadd.f32 %v1423, %v1427
    %v1430 = vld [vmem:[%s6] sm:$0xff]
    %v1431 = vld [vmem:[%s6 + $0x8] sm:$0xff]
    %v1432 = vld [vmem:[%s6 + $0x10] sm:$0xff]
    %v1433 = vld [vmem:[%s6 + $0x18] sm:$0xff]
    %v1434 = vld [vmem:[%s6 + $0x20] sm:$0xff]
    %v1435 = vld [vmem:[%s6 + $0x28] sm:$0xff]
    %v1436 = vld [vmem:[%s6 + $0x30] sm:$0xff]
    %v1437 = vld [vmem:[%s6 + $0x38] sm:$0xff]
    %v1438 = vld [vmem:[%s6 + $0x40] sm:$0xff]
    %v1439 = vld [vmem:[%s6 + $0x48] sm:$0xff]
    %v1440 = vld [vmem:[%s6 + $0x50] sm:$0xff]
    %v1441 = vld [vmem:[%s6 + $0x58] sm:$0xff]
    %v1442 = vld [vmem:[%s6 + $0x60] sm:$0xff]
    %v1443 = vld [vmem:[%s6 + $0x68] sm:$0xff]
    %v1444 = vld [vmem:[%s6 + $0x70] sm:$0xff]
    %v1445 = vld [vmem:[%s6 + $0x78] sm:$0xff]
    %v1446 = vld [vmem:[%s6 + $0x80] sm:$0xff]
    %v1447 = vld [vmem:[%s6 + $0x88] sm:$0xff]
    %v1448 = vld [vmem:[%s6 + $0x90] sm:$0xff]
    %v1449 = vld [vmem:[%s6 + $0x98] sm:$0xff]
    %v1450 = vld [vmem:[%s6 + $0xa0] sm:$0xff]
    %v1451 = vld [vmem:[%s6 + $0xa8] sm:$0xff]
    %v1452 = vld [vmem:[%s6 + $0xb0] sm:$0xff]
    %v1453 = vld [vmem:[%s6 + $0xb8] sm:$0xff]
    %v1454 = vld [vmem:[%s6 + $0xc0] sm:$0xff]
    %v1455 = vld [vmem:[%s6 + $0xc8] sm:$0xff]
    %v1456 = vld [vmem:[%s6 + $0xd0] sm:$0xff]
    %v1457 = vld [vmem:[%s6 + $0xd8] sm:$0xff]
    %v1458 = vld [vmem:[%s6 + $0xe0] sm:$0xff]
    %v1459 = vld [vmem:[%s6 + $0xe8] sm:$0xff]
    %v1460 = vld [vmem:[%s6 + $0xf0] sm:$0xff]
    %v1461 = vld [vmem:[%s6 + $0xf8] sm:$0xff]
    %v1462 = vld [vmem:[%s6 + $0x100] sm:$0xff]
    %v1463 = vld [vmem:[%s6 + $0x108] sm:$0xff]
    %v1464 = vld [vmem:[%s6 + $0x110] sm:$0xff]
    %v1465 = vld [vmem:[%s6 + $0x118] sm:$0xff]
    %v1466 = vld [vmem:[%s6 + $0x120] sm:$0xff]
    %v1467 = vld [vmem:[%s6 + $0x128] sm:$0xff]
    %v1468 = vld [vmem:[%s6 + $0x130] sm:$0xff]
    %v1469 = vld [vmem:[%s6 + $0x138] sm:$0xff]
    %v1470 = vld [vmem:[%s6 + $0x140] sm:$0xff]
    %v1471 = vld [vmem:[%s6 + $0x148] sm:$0xff]
    %v1472 = vld [vmem:[%s6 + $0x150] sm:$0xff]
    %v1473 = vld [vmem:[%s6 + $0x158] sm:$0xff]
    %v1474 = vld [vmem:[%s6 + $0x160] sm:$0xff]
    %v1475 = vld [vmem:[%s6 + $0x168] sm:$0xff]
    %v1476 = vld [vmem:[%s6 + $0x170] sm:$0xff]
    %v1477 = vld [vmem:[%s6 + $0x178] sm:$0xff]
    %v1478 = vld [vmem:[%s7] sm:$0xff]
    %v1480 = vlaneseq
    %v1481 = vshrl.u32 %v1480, 7
    %v1482 = vsub.s32 0, %v1481
    %v1483 = vrot.slane %v1478, %v1482
    %v1484 = vlaneseq
    %v1485 = vshrl.u32 %v1484, 7
    %v1486 = vsub.s32 1, %v1485
    %v1487 = vrot.slane %v1478, %v1486
    %v1488 = vlaneseq
    %v1489 = vshrl.u32 %v1488, 7
    %v1490 = vsub.s32 2, %v1489
    %v1491 = vrot.slane %v1478, %v1490
    %v1492 = vlaneseq
    %v1493 = vshrl.u32 %v1492, 7
    %v1494 = vsub.s32 3, %v1493
    %v1495 = vrot.slane %v1478, %v1494
    %v1496 = vlaneseq
    %v1497 = vshrl.u32 %v1496, 7
    %v1498 = vsub.s32 4, %v1497
    %v1499 = vrot.slane %v1478, %v1498
    %v1500 = vlaneseq
    %v1501 = vshrl.u32 %v1500, 7
    %v1502 = vsub.s32 5, %v1501
    %v1503 = vrot.slane %v1478, %v1502
    %v1504 = vlaneseq
    %v1505 = vshrl.u32 %v1504, 7
    %v1506 = vsub.s32 6, %v1505
    %v1507 = vrot.slane %v1478, %v1506
    %v1508 = vlaneseq
    %v1509 = vshrl.u32 %v1508, 7
    %v1510 = vsub.s32 7, %v1509
    %v1511 = vrot.slane %v1478, %v1510
    %v1521 = vsel %vm108, %v1428, 0
    %v1524 = vsel %vm108, %v1429, 0
    %1526 = vmatprep.subr.mxu0 %v1431
    %1527 = vmatpush1.msra.mxu0 %v1430
    %1528 = vmatprep.subr.mxu0 %v1439
    %1529 = vmatpush1.msra.mxu0 %v1438
    %1530 = vmatprep.subr.mxu0 %v1447
    %1531 = vmatpush1.msra.mxu0 %v1446
    %1532 = vmatprep.subr.mxu0 %v1455
    %1533 = vmatpush1.msra.mxu0 %v1454
    %1534 = vmatprep.subr.mxu0 %v1463
    %1535 = vmatpush1.msra.mxu0 %v1462
    %1536 = vmatprep.subr.mxu0 %v1471
    %1537 = vmatpush1.msra.mxu0 %v1470
    %1538 = vmatprep.subr.mxu0 0.0
    %1539 = vmatpush1.msra.mxu0 0.0
    %1540 = vmatprep.subr.mxu0 0.0
    %1541 = vmatpush1.msra.mxu0 0.0
    %1542 = vmatprep.subr.mxu0 0.0
    %1543 = vmatpush1.msra.mxu0 0.0
    %1544 = vmatprep.subr.mxu0 0.0
    %1545 = vmatpush1.msra.mxu0 0.0
    %1546 = vmatprep.subr.mxu0 0.0
    %1547 = vmatpush1.msra.mxu0 0.0
    %1548 = vmatprep.subr.mxu0 0.0
    %1549 = vmatpush1.msra.mxu0 0.0
    %1550 = vmatprep.subr.mxu0 0.0
    %1551 = vmatpush1.msra.mxu0 0.0
    %1552 = vmatprep.subr.mxu0 0.0
    %1553 = vmatpush1.msra.mxu0 0.0
    %1554 = vmatprep.subr.mxu0 0.0
    %1555 = vmatpush1.msra.mxu0 0.0
    %1556 = vmatprep.subr.mxu0 0.0
    %1557 = vmatpush1.msra.mxu0 0.0
    %1558 = vmatprep.subr.mxu0 0.0
    %1559 = vmatpush1.msra.mxu0 0.0
    %1560 = vmatprep.subr.mxu0 0.0
    %1561 = vmatpush1.msra.mxu0 0.0
    %1562 = vmatprep.subr.mxu0 0.0
    %1563 = vmatpush1.msra.mxu0 0.0
    %1564 = vmatprep.subr.mxu0 0.0
    %1565 = vmatpush1.msra.mxu0 0.0
    %1566 = vmatprep.subr.mxu0 0.0
    %1567 = vmatpush1.msra.mxu0 0.0
    %1568 = vmatprep.subr.mxu0 0.0
    %1569 = vmatpush1.msra.mxu0 0.0
    %1570 = vmatprep.subr.mxu0 0.0
    %1571 = vmatpush1.msra.mxu0 0.0
    %1572 = vmatprep.subr.mxu0 0.0
    %1573 = vmatpush1.msra.mxu0 0.0
    %1574 = vmatprep.subr.mxu0 0.0
    %1575 = vmatpush1.msra.mxu0 0.0
    %1576 = vmatprep.subr.mxu0 0.0
    %1577 = vmatpush1.msra.mxu0 0.0
    %1578 = vmatprep.subr.mxu0 0.0
    %1579 = vmatpush1.msra.mxu0 0.0
    %1580 = vmatprep.subr.mxu0 0.0
    %1581 = vmatpush1.msra.mxu0 0.0
    %1582 = vmatprep.subr.mxu0 0.0
    %1583 = vmatpush1.msra.mxu0 0.0
    %1584 = vmatprep.subr.mxu0 0.0
    %1585 = vmatpush1.msra.mxu0 0.0
    %1586 = vmatprep.subr.mxu0 0.0
    %1587 = vmatpush1.msra.mxu0 0.0
    %1588 = vmatprep.subr.mxu0 0.0
    %1589 = vmatpush1.msra.mxu0 0.0
    %1590 = vmatprep.mubr.f32.mxu0 0.0
    %1591 = vmatmul.mubr.f32.gmra.mrb[0].mxu0 %v1521
    %v1592 = vpop.f32.mrb[0].mxu0
    %v1593 = vadd.f32 %v1483, %v1592
    %v1594 = vpop.f32.mrb[0].mxu0
    %v1595 = vadd.f32 %v1487, %v1594
    %1596 = vmatprep.mubr.f32.mxu0 0.0
    %1597 = vmatmul.mubr.f32.gmra.mrb[0].mxu0 %v1524
    %v1598 = vpop.f32.mrb[0].mxu0
    %v1599 = vadd.f32 %v1483, %v1598
    %v1600 = vpop.f32.mrb[0].mxu0
    %v1601 = vadd.f32 %v1487, %v1600
    %1602 = vdwg.mxu0
    %1603 = vmatprep.subr.mxu0 %v1433
    %1604 = vmatpush1.msra.mxu0 %v1432
    %1605 = vmatprep.subr.mxu0 %v1441
    %1606 = vmatpush1.msra.mxu0 %v1440
    %1607 = vmatprep.subr.mxu0 %v1449
    %1608 = vmatpush1.msra.mxu0 %v1448
    %1609 = vmatprep.subr.mxu0 %v1457
    %1610 = vmatpush1.msra.mxu0 %v1456
    %1611 = vmatprep.subr.mxu0 %v1465
    %1612 = vmatpush1.msra.mxu0 %v1464
    %1613 = vmatprep.subr.mxu0 %v1473
    %1614 = vmatpush1.msra.mxu0 %v1472
    %1615 = vmatprep.subr.mxu0 0.0
    %1616 = vmatpush1.msra.mxu0 0.0
    %1617 = vmatprep.subr.mxu0 0.0
    %1618 = vmatpush1.msra.mxu0 0.0
    %1619 = vmatprep.subr.mxu0 0.0
    %1620 = vmatpush1.msra.mxu0 0.0
    %1621 = vmatprep.subr.mxu0 0.0
    %1622 = vmatpush1.msra.mxu0 0.0
    %1623 = vmatprep.subr.mxu0 0.0
    %1624 = vmatpush1.msra.mxu0 0.0
    %1625 = vmatprep.subr.mxu0 0.0
    %1626 = vmatpush1.msra.mxu0 0.0
    %1627 = vmatprep.subr.mxu0 0.0
    %1628 = vmatpush1.msra.mxu0 0.0
    %1629 = vmatprep.subr.mxu0 0.0
    %1630 = vmatpush1.msra.mxu0 0.0
    %1631 = vmatprep.subr.mxu0 0.0
    %1632 = vmatpush1.msra.mxu0 0.0
    %1633 = vmatprep.subr.mxu0 0.0
    %1634 = vmatpush1.msra.mxu0 0.0
    %1635 = vmatprep.subr.mxu0 0.0
    %1636 = vmatpush1.msra.mxu0 0.0
    %1637 = vmatprep.subr.mxu0 0.0
    %1638 = vmatpush1.msra.mxu0 0.0
    %1639 = vmatprep.subr.mxu0 0.0
    %1640 = vmatpush1.msra.mxu0 0.0
    %1641 = vmatprep.subr.mxu0 0.0
    %1642 = vmatpush1.msra.mxu0 0.0
    %1643 = vmatprep.subr.mxu0 0.0
    %1644 = vmatpush1.msra.mxu0 0.0
    %1645 = vmatprep.subr.mxu0 0.0
    %1646 = vmatpush1.msra.mxu0 0.0
    %1647 = vmatprep.subr.mxu0 0.0
    %1648 = vmatpush1.msra.mxu0 0.0
    %1649 = vmatprep.subr.mxu0 0.0
    %1650 = vmatpush1.msra.mxu0 0.0
    %1651 = vmatprep.subr.mxu0 0.0
    %1652 = vmatpush1.msra.mxu0 0.0
    %1653 = vmatprep.subr.mxu0 0.0
    %1654 = vmatpush1.msra.mxu0 0.0
    %1655 = vmatprep.subr.mxu0 0.0
    %1656 = vmatpush1.msra.mxu0 0.0
    %1657 = vmatprep.subr.mxu0 0.0
    %1658 = vmatpush1.msra.mxu0 0.0
    %1659 = vmatprep.subr.mxu0 0.0
    %1660 = vmatpush1.msra.mxu0 0.0
    %1661 = vmatprep.subr.mxu0 0.0
    %1662 = vmatpush1.msra.mxu0 0.0
    %1663 = vmatprep.subr.mxu0 0.0
    %1664 = vmatpush1.msra.mxu0 0.0
    %1665 = vmatprep.subr.mxu0 0.0
    %1666 = vmatpush1.msra.mxu0 0.0
    %1667 = vmatprep.mubr.f32.mxu0 0.0
    %1668 = vmatmul.mubr.f32.gmra.mrb[0].mxu0 %v1521
    %v1669 = vpop.f32.mrb[0].mxu0
    %v1670 = vadd.f32 %v1491, %v1669
    %v1671 = vpop.f32.mrb[0].mxu0
    %v1672 = vadd.f32 %v1495, %v1671
    %1673 = vmatprep.mubr.f32.mxu0 0.0
    %1674 = vmatmul.mubr.f32.gmra.mrb[0].mxu0 %v1524
    %v1675 = vpop.f32.mrb[0].mxu0
    %v1676 = vadd.f32 %v1491, %v1675
    %v1677 = vpop.f32.mrb[0].mxu0
    %v1678 = vadd.f32 %v1495, %v1677
    %1679 = vdwg.mxu0
    %1680 = vmatprep.subr.mxu0 %v1435
    %1681 = vmatpush1.msra.mxu0 %v1434
    %1682 = vmatprep.subr.mxu0 %v1443
    %1683 = vmatpush1.msra.mxu0 %v1442
    %1684 = vmatprep.subr.mxu0 %v1451
    %1685 = vmatpush1.msra.mxu0 %v1450
    %1686 = vmatprep.subr.mxu0 %v1459
    %1687 = vmatpush1.msra.mxu0 %v1458
    %1688 = vmatprep.subr.mxu0 %v1467
    %1689 = vmatpush1.msra.mxu0 %v1466
    %1690 = vmatprep.subr.mxu0 %v1475
    %1691 = vmatpush1.msra.mxu0 %v1474
    %1692 = vmatprep.subr.mxu0 0.0
    %1693 = vmatpush1.msra.mxu0 0.0
    %1694 = vmatprep.subr.mxu0 0.0
    %1695 = vmatpush1.msra.mxu0 0.0
    %1696 = vmatprep.subr.mxu0 0.0
    %1697 = vmatpush1.msra.mxu0 0.0
    %1698 = vmatprep.subr.mxu0 0.0
    %1699 = vmatpush1.msra.mxu0 0.0
    %1700 = vmatprep.subr.mxu0 0.0
    %1701 = vmatpush1.msra.mxu0 0.0
    %1702 = vmatprep.subr.mxu0 0.0
    %1703 = vmatpush1.msra.mxu0 0.0
    %1704 = vmatprep.subr.mxu0 0.0
    %1705 = vmatpush1.msra.mxu0 0.0
    %1706 = vmatprep.subr.mxu0 0.0
    %1707 = vmatpush1.msra.mxu0 0.0
    %1708 = vmatprep.subr.mxu0 0.0
    %1709 = vmatpush1.msra.mxu0 0.0
    %1710 = vmatprep.subr.mxu0 0.0
    %1711 = vmatpush1.msra.mxu0 0.0
    %1712 = vmatprep.subr.mxu0 0.0
    %1713 = vmatpush1.msra.mxu0 0.0
    %1714 = vmatprep.subr.mxu0 0.0
    %1715 = vmatpush1.msra.mxu0 0.0
    %1716 = vmatprep.subr.mxu0 0.0
    %1717 = vmatpush1.msra.mxu0 0.0
    %1718 = vmatprep.subr.mxu0 0.0
    %1719 = vmatpush1.msra.mxu0 0.0
    %1720 = vmatprep.subr.mxu0 0.0
    %1721 = vmatpush1.msra.mxu0 0.0
    %1722 = vmatprep.subr.mxu0 0.0
    %1723 = vmatpush1.msra.mxu0 0.0
    %1724 = vmatprep.subr.mxu0 0.0
    %1725 = vmatpush1.msra.mxu0 0.0
    %1726 = vmatprep.subr.mxu0 0.0
    %1727 = vmatpush1.msra.mxu0 0.0
    %1728 = vmatprep.subr.mxu0 0.0
    %1729 = vmatpush1.msra.mxu0 0.0
    %1730 = vmatprep.subr.mxu0 0.0
    %1731 = vmatpush1.msra.mxu0 0.0
    %1732 = vmatprep.subr.mxu0 0.0
    %1733 = vmatpush1.msra.mxu0 0.0
    %1734 = vmatprep.subr.mxu0 0.0
    %1735 = vmatpush1.msra.mxu0 0.0
    %1736 = vmatprep.subr.mxu0 0.0
    %1737 = vmatpush1.msra.mxu0 0.0
    %1738 = vmatprep.subr.mxu0 0.0
    %1739 = vmatpush1.msra.mxu0 0.0
    %1740 = vmatprep.subr.mxu0 0.0
    %1741 = vmatpush1.msra.mxu0 0.0
    %1742 = vmatprep.subr.mxu0 0.0
    %1743 = vmatpush1.msra.mxu0 0.0
    %1744 = vmatprep.mubr.f32.mxu0 0.0
    %1745 = vmatmul.mubr.f32.gmra.mrb[0].mxu0 %v1521
    %v1746 = vpop.f32.mrb[0].mxu0
    %v1747 = vadd.f32 %v1499, %v1746
    %v1748 = vpop.f32.mrb[0].mxu0
    %v1749 = vadd.f32 %v1503, %v1748
    %1750 = vmatprep.mubr.f32.mxu0 0.0
    %1751 = vmatmul.mubr.f32.gmra.mrb[0].mxu0 %v1524
    %v1752 = vpop.f32.mrb[0].mxu0
    %v1753 = vadd.f32 %v1499, %v1752
    %v1754 = vpop.f32.mrb[0].mxu0
    %v1755 = vadd.f32 %v1503, %v1754
    %1756 = vdwg.mxu0
    %1757 = vmatprep.subr.mxu0 %v1437
    %1758 = vmatpush1.msra.mxu0 %v1436
    %1759 = vmatprep.subr.mxu0 %v1445
    %1760 = vmatpush1.msra.mxu0 %v1444
    %1761 = vmatprep.subr.mxu0 %v1453
    %1762 = vmatpush1.msra.mxu0 %v1452
    %1763 = vmatprep.subr.mxu0 %v1461
    %1764 = vmatpush1.msra.mxu0 %v1460
    %1765 = vmatprep.subr.mxu0 %v1469
    %1766 = vmatpush1.msra.mxu0 %v1468
    %1767 = vmatprep.subr.mxu0 %v1477
    %1768 = vmatpush1.msra.mxu0 %v1476
    %1769 = vmatprep.subr.mxu0 0.0
    %1770 = vmatpush1.msra.mxu0 0.0
    %1771 = vmatprep.subr.mxu0 0.0
    %1772 = vmatpush1.msra.mxu0 0.0
    %1773 = vmatprep.subr.mxu0 0.0
    %1774 = vmatpush1.msra.mxu0 0.0
    %1775 = vmatprep.subr.mxu0 0.0
    %1776 = vmatpush1.msra.mxu0 0.0
    %1777 = vmatprep.subr.mxu0 0.0
    %1778 = vmatpush1.msra.mxu0 0.0
    %1779 = vmatprep.subr.mxu0 0.0
    %1780 = vmatpush1.msra.mxu0 0.0
    %1781 = vmatprep.subr.mxu0 0.0
    %1782 = vmatpush1.msra.mxu0 0.0
    %1783 = vmatprep.subr.mxu0 0.0
    %1784 = vmatpush1.msra.mxu0 0.0
    %1785 = vmatprep.subr.mxu0 0.0
    %1786 = vmatpush1.msra.mxu0 0.0
    %1787 = vmatprep.subr.mxu0 0.0
    %1788 = vmatpush1.msra.mxu0 0.0
    %1789 = vmatprep.subr.mxu0 0.0
    %1790 = vmatpush1.msra.mxu0 0.0
    %1791 = vmatprep.subr.mxu0 0.0
    %1792 = vmatpush1.msra.mxu0 0.0
    %1793 = vmatprep.subr.mxu0 0.0
    %1794 = vmatpush1.msra.mxu0 0.0
    %1795 = vmatprep.subr.mxu0 0.0
    %1796 = vmatpush1.msra.mxu0 0.0
    %1797 = vmatprep.subr.mxu0 0.0
    %1798 = vmatpush1.msra.mxu0 0.0
    %1799 = vmatprep.subr.mxu0 0.0
    %1800 = vmatpush1.msra.mxu0 0.0
    %1801 = vmatprep.subr.mxu0 0.0
    %1802 = vmatpush1.msra.mxu0 0.0
    %1803 = vmatprep.subr.mxu0 0.0
    %1804 = vmatpush1.msra.mxu0 0.0
    %1805 = vmatprep.subr.mxu0 0.0
    %1806 = vmatpush1.msra.mxu0 0.0
    %1807 = vmatprep.subr.mxu0 0.0
    %1808 = vmatpush1.msra.mxu0 0.0
    %1809 = vmatprep.subr.mxu0 0.0
    %1810 = vmatpush1.msra.mxu0 0.0
    %1811 = vmatprep.subr.mxu0 0.0
    %1812 = vmatpush1.msra.mxu0 0.0
    %1813 = vmatprep.subr.mxu0 0.0
    %1814 = vmatpush1.msra.mxu0 0.0
    %1815 = vmatprep.subr.mxu0 0.0
    %1816 = vmatpush1.msra.mxu0 0.0
    %1817 = vmatprep.subr.mxu0 0.0
    %1818 = vmatpush1.msra.mxu0 0.0
    %1819 = vmatprep.subr.mxu0 0.0
    %1820 = vmatpush1.msra.mxu0 0.0
    %1821 = vmatprep.mubr.f32.mxu0 0.0
    %1822 = vmatmul.mubr.f32.gmra.mrb[0].mxu0 %v1521
    %v1823 = vpop.f32.mrb[0].mxu0
    %v1824 = vadd.f32 %v1507, %v1823
    %v1825 = vpop.f32.mrb[0].mxu0
    %v1826 = vadd.f32 %v1511, %v1825
    %1827 = vmatprep.mubr.f32.mxu0 0.0
    %1828 = vmatmul.mubr.f32.gmra.mrb[0].mxu0 %v1524
    %v1829 = vpop.f32.mrb[0].mxu0
    %v1830 = vadd.f32 %v1507, %v1829
    %v1831 = vpop.f32.mrb[0].mxu0
    %v1832 = vadd.f32 %v1511, %v1831
    %1833 = vdwg.mxu0
    %v1834 = vmax.f32 %v1593, 0.0
    %v1835 = vmax.f32 %v1595, 0.0
    %v1836 = vmax.f32 %v1670, 0.0
    %v1837 = vmax.f32 %v1672, 0.0
    %v1838 = vmax.f32 %v1747, 0.0
    %v1839 = vmax.f32 %v1749, 0.0
    %v1840 = vmax.f32 %v1824, 0.0
    %v1841 = vmax.f32 %v1826, 0.0
    %v1842 = vmax.f32 %v1599, 0.0
    %v1843 = vmax.f32 %v1601, 0.0
    %v1844 = vmax.f32 %v1676, 0.0
    %v1845 = vmax.f32 %v1678, 0.0
    %v1846 = vmax.f32 %v1753, 0.0
    %v1847 = vmax.f32 %v1755, 0.0
    %v1848 = vmax.f32 %v1830, 0.0
    %v1849 = vmax.f32 %v1832, 0.0
    %v1850 = vld [vmem:[%s8] sm:$0xff]
    %v1851 = vld [vmem:[%s8 + $0x8] sm:$0xff]
    %v1852 = vld [vmem:[%s8 + $0x10] sm:$0xff]
    %v1853 = vld [vmem:[%s8 + $0x18] sm:$0xff]
    %v1854 = vld [vmem:[%s8 + $0x20] sm:$0xff]
    %v1855 = vld [vmem:[%s8 + $0x28] sm:$0xff]
    %v1856 = vld [vmem:[%s8 + $0x30] sm:$0xff]
    %v1857 = vld [vmem:[%s8 + $0x38] sm:$0xff]
    %v1858 = vld [vmem:[%s8 + $0x40] sm:$0xff]
    %v1859 = vld [vmem:[%s8 + $0x48] sm:$0xff]
    %v1860 = vld [vmem:[%s8 + $0x50] sm:$0xff]
    %v1861 = vld [vmem:[%s8 + $0x58] sm:$0xff]
    %v1862 = vld [vmem:[%s8 + $0x60] sm:$0xff]
    %v1863 = vld [vmem:[%s8 + $0x68] sm:$0xff]
    %v1864 = vld [vmem:[%s8 + $0x70] sm:$0xff]
    %v1865 = vld [vmem:[%s8 + $0x78] sm:$0xff]
    %v1866 = vld [vmem:[%s8 + $0x80] sm:$0xff]
    %v1867 = vld [vmem:[%s8 + $0x88] sm:$0xff]
    %v1868 = vld [vmem:[%s8 + $0x90] sm:$0xff]
    %v1869 = vld [vmem:[%s8 + $0x98] sm:$0xff]
    %v1870 = vld [vmem:[%s8 + $0xa0] sm:$0xff]
    %v1871 = vld [vmem:[%s8 + $0xa8] sm:$0xff]
    %v1872 = vld [vmem:[%s8 + $0xb0] sm:$0xff]
    %v1873 = vld [vmem:[%s8 + $0xb8] sm:$0xff]
    %v1874 = vld [vmem:[%s8 + $0xc0] sm:$0xff]
    %v1875 = vld [vmem:[%s8 + $0xc8] sm:$0xff]
    %v1876 = vld [vmem:[%s8 + $0xd0] sm:$0xff]
    %v1877 = vld [vmem:[%s8 + $0xd8] sm:$0xff]
    %v1878 = vld [vmem:[%s8 + $0xe0] sm:$0xff]
    %v1879 = vld [vmem:[%s8 + $0xe8] sm:$0xff]
    %v1880 = vld [vmem:[%s8 + $0xf0] sm:$0xff]
    %v1881 = vld [vmem:[%s8 + $0xf8] sm:$0xff]
    %v1882 = vld [vmem:[%s8 + $0x100] sm:$0xff]
    %v1883 = vld [vmem:[%s8 + $0x108] sm:$0xff]
    %v1884 = vld [vmem:[%s8 + $0x110] sm:$0xff]
    %v1885 = vld [vmem:[%s8 + $0x118] sm:$0xff]
    %v1886 = vld [vmem:[%s8 + $0x120] sm:$0xff]
    %v1887 = vld [vmem:[%s8 + $0x128] sm:$0xff]
    %v1888 = vld [vmem:[%s8 + $0x130] sm:$0xff]
    %v1889 = vld [vmem:[%s8 + $0x138] sm:$0xff]
    %v1890 = vld [vmem:[%s8 + $0x140] sm:$0xff]
    %v1891 = vld [vmem:[%s8 + $0x148] sm:$0xff]
    %v1892 = vld [vmem:[%s8 + $0x150] sm:$0xff]
    %v1893 = vld [vmem:[%s8 + $0x158] sm:$0xff]
    %v1894 = vld [vmem:[%s8 + $0x160] sm:$0xff]
    %v1895 = vld [vmem:[%s8 + $0x168] sm:$0xff]
    %v1896 = vld [vmem:[%s8 + $0x170] sm:$0xff]
    %v1897 = vld [vmem:[%s8 + $0x178] sm:$0xff]
    %v1898 = vld [vmem:[%s8 + $0x180] sm:$0xff]
    %v1899 = vld [vmem:[%s8 + $0x188] sm:$0xff]
    %v1900 = vld [vmem:[%s8 + $0x190] sm:$0xff]
    %v1901 = vld [vmem:[%s8 + $0x198] sm:$0xff]
    %v1902 = vld [vmem:[%s8 + $0x1a0] sm:$0xff]
    %v1903 = vld [vmem:[%s8 + $0x1a8] sm:$0xff]
    %v1904 = vld [vmem:[%s8 + $0x1b0] sm:$0xff]
    %v1905 = vld [vmem:[%s8 + $0x1b8] sm:$0xff]
    %v1906 = vld [vmem:[%s8 + $0x1c0] sm:$0xff]
    %v1907 = vld [vmem:[%s8 + $0x1c8] sm:$0xff]
    %v1908 = vld [vmem:[%s8 + $0x1d0] sm:$0xff]
    %v1909 = vld [vmem:[%s8 + $0x1d8] sm:$0xff]
    %v1910 = vld [vmem:[%s8 + $0x1e0] sm:$0xff]
    %v1911 = vld [vmem:[%s8 + $0x1e8] sm:$0xff]
    %v1912 = vld [vmem:[%s8 + $0x1f0] sm:$0xff]
    %v1913 = vld [vmem:[%s8 + $0x1f8] sm:$0xff]
    %v1914 = vld [vmem:[%s8 + $0x200] sm:$0xff]
    %v1915 = vld [vmem:[%s8 + $0x208] sm:$0xff]
    %v1916 = vld [vmem:[%s8 + $0x210] sm:$0xff]
    %v1917 = vld [vmem:[%s8 + $0x218] sm:$0xff]
    %v1918 = vld [vmem:[%s8 + $0x220] sm:$0xff]
    %v1919 = vld [vmem:[%s8 + $0x228] sm:$0xff]
    %v1920 = vld [vmem:[%s8 + $0x230] sm:$0xff]
    %v1921 = vld [vmem:[%s8 + $0x238] sm:$0xff]
    %v1922 = vld [vmem:[%s8 + $0x240] sm:$0xff]
    %v1923 = vld [vmem:[%s8 + $0x248] sm:$0xff]
    %v1924 = vld [vmem:[%s8 + $0x250] sm:$0xff]
    %v1925 = vld [vmem:[%s8 + $0x258] sm:$0xff]
    %v1926 = vld [vmem:[%s8 + $0x260] sm:$0xff]
    %v1927 = vld [vmem:[%s8 + $0x268] sm:$0xff]
    %v1928 = vld [vmem:[%s8 + $0x270] sm:$0xff]
    %v1929 = vld [vmem:[%s8 + $0x278] sm:$0xff]
    %v1930 = vld [vmem:[%s8 + $0x280] sm:$0xff]
    %v1931 = vld [vmem:[%s8 + $0x288] sm:$0xff]
    %v1932 = vld [vmem:[%s8 + $0x290] sm:$0xff]
    %v1933 = vld [vmem:[%s8 + $0x298] sm:$0xff]
    %v1934 = vld [vmem:[%s8 + $0x2a0] sm:$0xff]
    %v1935 = vld [vmem:[%s8 + $0x2a8] sm:$0xff]
    %v1936 = vld [vmem:[%s8 + $0x2b0] sm:$0xff]
    %v1937 = vld [vmem:[%s8 + $0x2b8] sm:$0xff]
    %v1938 = vld [vmem:[%s8 + $0x2c0] sm:$0xff]
    %v1939 = vld [vmem:[%s8 + $0x2c8] sm:$0xff]
    %v1940 = vld [vmem:[%s8 + $0x2d0] sm:$0xff]
    %v1941 = vld [vmem:[%s8 + $0x2d8] sm:$0xff]
    %v1942 = vld [vmem:[%s8 + $0x2e0] sm:$0xff]
    %v1943 = vld [vmem:[%s8 + $0x2e8] sm:$0xff]
    %v1944 = vld [vmem:[%s8 + $0x2f0] sm:$0xff]
    %v1945 = vld [vmem:[%s8 + $0x2f8] sm:$0xff]
    %v1946 = vld [vmem:[%s8 + $0x300] sm:$0xff]
    %v1947 = vld [vmem:[%s8 + $0x308] sm:$0xff]
    %v1948 = vld [vmem:[%s8 + $0x310] sm:$0xff]
    %v1949 = vld [vmem:[%s8 + $0x318] sm:$0xff]
    %v1950 = vld [vmem:[%s8 + $0x320] sm:$0xff]
    %v1951 = vld [vmem:[%s8 + $0x328] sm:$0xff]
    %v1952 = vld [vmem:[%s8 + $0x330] sm:$0xff]
    %v1953 = vld [vmem:[%s8 + $0x338] sm:$0xff]
    %v1954 = vld [vmem:[%s8 + $0x340] sm:$0xff]
    %v1955 = vld [vmem:[%s8 + $0x348] sm:$0xff]
    %v1956 = vld [vmem:[%s8 + $0x350] sm:$0xff]
    %v1957 = vld [vmem:[%s8 + $0x358] sm:$0xff]
    %v1958 = vld [vmem:[%s8 + $0x360] sm:$0xff]
    %v1959 = vld [vmem:[%s8 + $0x368] sm:$0xff]
    %v1960 = vld [vmem:[%s8 + $0x370] sm:$0xff]
    %v1961 = vld [vmem:[%s8 + $0x378] sm:$0xff]
    %v1962 = vld [vmem:[%s8 + $0x380] sm:$0xff]
    %v1963 = vld [vmem:[%s8 + $0x388] sm:$0xff]
    %v1964 = vld [vmem:[%s8 + $0x390] sm:$0xff]
    %v1965 = vld [vmem:[%s8 + $0x398] sm:$0xff]
    %v1966 = vld [vmem:[%s8 + $0x3a0] sm:$0xff]
    %v1967 = vld [vmem:[%s8 + $0x3a8] sm:$0xff]
    %v1968 = vld [vmem:[%s8 + $0x3b0] sm:$0xff]
    %v1969 = vld [vmem:[%s8 + $0x3b8] sm:$0xff]
    %v1970 = vld [vmem:[%s8 + $0x3c0] sm:$0xff]
    %v1971 = vld [vmem:[%s8 + $0x3c8] sm:$0xff]
    %v1972 = vld [vmem:[%s8 + $0x3d0] sm:$0xff]
    %v1973 = vld [vmem:[%s8 + $0x3d8] sm:$0xff]
    %v1974 = vld [vmem:[%s8 + $0x3e0] sm:$0xff]
    %v1975 = vld [vmem:[%s8 + $0x3e8] sm:$0xff]
    %v1976 = vld [vmem:[%s8 + $0x3f0] sm:$0xff]
    %v1977 = vld [vmem:[%s8 + $0x3f8] sm:$0xff]
    %v1978 = vlaneseq
    %v1979 = vshrl.u32 %v1978, 7
    %v1980 = vsub.s32 3, %v1979
    %v1981 = vrot.slane %v1262, %v1980
    %1982 = vmatprep.subr.mxu0 0.0
    %1983 = vmatpush1.msra.mxu0 %v1850
    %1984 = vmatprep.subr.mxu0 0.0
    %1985 = vmatpush1.msra.mxu0 %v1851
    %1986 = vmatprep.subr.mxu0 0.0
    %1987 = vmatpush1.msra.mxu0 %v1852
    %1988 = vmatprep.subr.mxu0 0.0
    %1989 = vmatpush1.msra.mxu0 %v1853
    %1990 = vmatprep.subr.mxu0 0.0
    %1991 = vmatpush1.msra.mxu0 %v1854
    %1992 = vmatprep.subr.mxu0 0.0
    %1993 = vmatpush1.msra.mxu0 %v1855
    %1994 = vmatprep.subr.mxu0 0.0
    %1995 = vmatpush1.msra.mxu0 %v1856
    %1996 = vmatprep.subr.mxu0 0.0
    %1997 = vmatpush1.msra.mxu0 %v1857
    %1998 = vmatprep.subr.mxu0 0.0
    %1999 = vmatpush1.msra.mxu0 %v1858
    %2000 = vmatprep.subr.mxu0 0.0
    %2001 = vmatpush1.msra.mxu0 %v1859
    %2002 = vmatprep.subr.mxu0 0.0
    %2003 = vmatpush1.msra.mxu0 %v1860
    %2004 = vmatprep.subr.mxu0 0.0
    %2005 = vmatpush1.msra.mxu0 %v1861
    %2006 = vmatprep.subr.mxu0 0.0
    %2007 = vmatpush1.msra.mxu0 %v1862
    %2008 = vmatprep.subr.mxu0 0.0
    %2009 = vmatpush1.msra.mxu0 %v1863
    %2010 = vmatprep.subr.mxu0 0.0
    %2011 = vmatpush1.msra.mxu0 %v1864
    %2012 = vmatprep.subr.mxu0 0.0
    %2013 = vmatpush1.msra.mxu0 %v1865
    %2014 = vmatprep.subr.mxu0 0.0
    %2015 = vmatpush1.msra.mxu0 %v1866
    %2016 = vmatprep.subr.mxu0 0.0
    %2017 = vmatpush1.msra.mxu0 %v1867
    %2018 = vmatprep.subr.mxu0 0.0
    %2019 = vmatpush1.msra.mxu0 %v1868
    %2020 = vmatprep.subr.mxu0 0.0
    %2021 = vmatpush1.msra.mxu0 %v1869
    %2022 = vmatprep.subr.mxu0 0.0
    %2023 = vmatpush1.msra.mxu0 %v1870
    %2024 = vmatprep.subr.mxu0 0.0
    %2025 = vmatpush1.msra.mxu0 %v1871
    %2026 = vmatprep.subr.mxu0 0.0
    %2027 = vmatpush1.msra.mxu0 %v1872
    %2028 = vmatprep.subr.mxu0 0.0
    %2029 = vmatpush1.msra.mxu0 %v1873
    %2030 = vmatprep.subr.mxu0 0.0
    %2031 = vmatpush1.msra.mxu0 %v1874
    %2032 = vmatprep.subr.mxu0 0.0
    %2033 = vmatpush1.msra.mxu0 %v1875
    %2034 = vmatprep.subr.mxu0 0.0
    %2035 = vmatpush1.msra.mxu0 %v1876
    %2036 = vmatprep.subr.mxu0 0.0
    %2037 = vmatpush1.msra.mxu0 %v1877
    %2038 = vmatprep.subr.mxu0 0.0
    %2039 = vmatpush1.msra.mxu0 %v1878
    %2040 = vmatprep.subr.mxu0 0.0
    %2041 = vmatpush1.msra.mxu0 %v1879
    %2042 = vmatprep.subr.mxu0 0.0
    %2043 = vmatpush1.msra.mxu0 %v1880
    %2044 = vmatprep.subr.mxu0 0.0
    %2045 = vmatpush1.msra.mxu0 %v1881
    %2046 = vmatprep.mubr.f32.mxu0 %v1835
    %2047 = vmatmul.mubr.f32.gmra.mrb[0].mxu0 %v1834
    %v2048 = vpop.f32.mrb[0].mxu0
    %v2049 = vadd.f32 %v1981, %v2048
    %v2050 = vpop.f32.mrb[0].mxu0
    %2051 = vmatprep.mubr.f32.mxu0 %v1843
    %2052 = vmatmul.mubr.f32.gmra.mrb[0].mxu0 %v1842
    %v2053 = vpop.f32.mrb[0].mxu0
    %v2054 = vadd.f32 %v1981, %v2053
    %v2055 = vpop.f32.mrb[0].mxu0
    %2056 = vdwg.mxu0
    %2057 = vmatprep.subr.mxu0 0.0
    %2058 = vmatpush1.msra.mxu0 %v1882
    %2059 = vmatprep.subr.mxu0 0.0
    %2060 = vmatpush1.msra.mxu0 %v1883
    %2061 = vmatprep.subr.mxu0 0.0
    %2062 = vmatpush1.msra.mxu0 %v1884
    %2063 = vmatprep.subr.mxu0 0.0
    %2064 = vmatpush1.msra.mxu0 %v1885
    %2065 = vmatprep.subr.mxu0 0.0
    %2066 = vmatpush1.msra.mxu0 %v1886
    %2067 = vmatprep.subr.mxu0 0.0
    %2068 = vmatpush1.msra.mxu0 %v1887
    %2069 = vmatprep.subr.mxu0 0.0
    %2070 = vmatpush1.msra.mxu0 %v1888
    %2071 = vmatprep.subr.mxu0 0.0
    %2072 = vmatpush1.msra.mxu0 %v1889
    %2073 = vmatprep.subr.mxu0 0.0
    %2074 = vmatpush1.msra.mxu0 %v1890
    %2075 = vmatprep.subr.mxu0 0.0
    %2076 = vmatpush1.msra.mxu0 %v1891
    %2077 = vmatprep.subr.mxu0 0.0
    %2078 = vmatpush1.msra.mxu0 %v1892
    %2079 = vmatprep.subr.mxu0 0.0
    %2080 = vmatpush1.msra.mxu0 %v1893
    %2081 = vmatprep.subr.mxu0 0.0
    %2082 = vmatpush1.msra.mxu0 %v1894
    %2083 = vmatprep.subr.mxu0 0.0
    %2084 = vmatpush1.msra.mxu0 %v1895
    %2085 = vmatprep.subr.mxu0 0.0
    %2086 = vmatpush1.msra.mxu0 %v1896
    %2087 = vmatprep.subr.mxu0 0.0
    %2088 = vmatpush1.msra.mxu0 %v1897
    %2089 = vmatprep.subr.mxu0 0.0
    %2090 = vmatpush1.msra.mxu0 %v1898
    %2091 = vmatprep.subr.mxu0 0.0
    %2092 = vmatpush1.msra.mxu0 %v1899
    %2093 = vmatprep.subr.mxu0 0.0
    %2094 = vmatpush1.msra.mxu0 %v1900
    %2095 = vmatprep.subr.mxu0 0.0
    %2096 = vmatpush1.msra.mxu0 %v1901
    %2097 = vmatprep.subr.mxu0 0.0
    %2098 = vmatpush1.msra.mxu0 %v1902
    %2099 = vmatprep.subr.mxu0 0.0
    %2100 = vmatpush1.msra.mxu0 %v1903
    %2101 = vmatprep.subr.mxu0 0.0
    %2102 = vmatpush1.msra.mxu0 %v1904
    %2103 = vmatprep.subr.mxu0 0.0
    %2104 = vmatpush1.msra.mxu0 %v1905
    %2105 = vmatprep.subr.mxu0 0.0
    %2106 = vmatpush1.msra.mxu0 %v1906
    %2107 = vmatprep.subr.mxu0 0.0
    %2108 = vmatpush1.msra.mxu0 %v1907
    %2109 = vmatprep.subr.mxu0 0.0
    %2110 = vmatpush1.msra.mxu0 %v1908
    %2111 = vmatprep.subr.mxu0 0.0
    %2112 = vmatpush1.msra.mxu0 %v1909
    %2113 = vmatprep.subr.mxu0 0.0
    %2114 = vmatpush1.msra.mxu0 %v1910
    %2115 = vmatprep.subr.mxu0 0.0
    %2116 = vmatpush1.msra.mxu0 %v1911
    %2117 = vmatprep.subr.mxu0 0.0
    %2118 = vmatpush1.msra.mxu0 %v1912
    %2119 = vmatprep.subr.mxu0 0.0
    %2120 = vmatpush1.msra.mxu0 %v1913
    %2121 = vmatprep.mubr.f32.mxu0 %v1837
    %2122 = vmatmul.mubr.f32.gmra.mrb[0].mxu0 %v1836
    %v2123 = vpop.f32.mrb[0].mxu0
    %v2124 = vadd.f32 %v2049, %v2123
    %v2125 = vpop.f32.mrb[0].mxu0
    %2126 = vmatprep.mubr.f32.mxu0 %v1845
    %2127 = vmatmul.mubr.f32.gmra.mrb[0].mxu0 %v1844
    %v2128 = vpop.f32.mrb[0].mxu0
    %v2129 = vadd.f32 %v2054, %v2128
    %v2130 = vpop.f32.mrb[0].mxu0
    %2131 = vdwg.mxu0
    %2132 = vmatprep.subr.mxu0 0.0
    %2133 = vmatpush1.msra.mxu0 %v1914
    %2134 = vmatprep.subr.mxu0 0.0
    %2135 = vmatpush1.msra.mxu0 %v1915
    %2136 = vmatprep.subr.mxu0 0.0
    %2137 = vmatpush1.msra.mxu0 %v1916
    %2138 = vmatprep.subr.mxu0 0.0
    %2139 = vmatpush1.msra.mxu0 %v1917
    %2140 = vmatprep.subr.mxu0 0.0
    %2141 = vmatpush1.msra.mxu0 %v1918
    %2142 = vmatprep.subr.mxu0 0.0
    %2143 = vmatpush1.msra.mxu0 %v1919
    %2144 = vmatprep.subr.mxu0 0.0
    %2145 = vmatpush1.msra.mxu0 %v1920
    %2146 = vmatprep.subr.mxu0 0.0
    %2147 = vmatpush1.msra.mxu0 %v1921
    %2148 = vmatprep.subr.mxu0 0.0
    %2149 = vmatpush1.msra.mxu0 %v1922
    %2150 = vmatprep.subr.mxu0 0.0
    %2151 = vmatpush1.msra.mxu0 %v1923
    %2152 = vmatprep.subr.mxu0 0.0
    %2153 = vmatpush1.msra.mxu0 %v1924
    %2154 = vmatprep.subr.mxu0 0.0
    %2155 = vmatpush1.msra.mxu0 %v1925
    %2156 = vmatprep.subr.mxu0 0.0
    %2157 = vmatpush1.msra.mxu0 %v1926
    %2158 = vmatprep.subr.mxu0 0.0
    %2159 = vmatpush1.msra.mxu0 %v1927
    %2160 = vmatprep.subr.mxu0 0.0
    %2161 = vmatpush1.msra.mxu0 %v1928
    %2162 = vmatprep.subr.mxu0 0.0
    %2163 = vmatpush1.msra.mxu0 %v1929
    %2164 = vmatprep.subr.mxu0 0.0
    %2165 = vmatpush1.msra.mxu0 %v1930
    %2166 = vmatprep.subr.mxu0 0.0
    %2167 = vmatpush1.msra.mxu0 %v1931
    %2168 = vmatprep.subr.mxu0 0.0
    %2169 = vmatpush1.msra.mxu0 %v1932
    %2170 = vmatprep.subr.mxu0 0.0
    %2171 = vmatpush1.msra.mxu0 %v1933
    %2172 = vmatprep.subr.mxu0 0.0
    %2173 = vmatpush1.msra.mxu0 %v1934
    %2174 = vmatprep.subr.mxu0 0.0
    %2175 = vmatpush1.msra.mxu0 %v1935
    %2176 = vmatprep.subr.mxu0 0.0
    %2177 = vmatpush1.msra.mxu0 %v1936
    %2178 = vmatprep.subr.mxu0 0.0
    %2179 = vmatpush1.msra.mxu0 %v1937
    %2180 = vmatprep.subr.mxu0 0.0
    %2181 = vmatpush1.msra.mxu0 %v1938
    %2182 = vmatprep.subr.mxu0 0.0
    %2183 = vmatpush1.msra.mxu0 %v1939
    %2184 = vmatprep.subr.mxu0 0.0
    %2185 = vmatpush1.msra.mxu0 %v1940
    %2186 = vmatprep.subr.mxu0 0.0
    %2187 = vmatpush1.msra.mxu0 %v1941
    %2188 = vmatprep.subr.mxu0 0.0
    %2189 = vmatpush1.msra.mxu0 %v1942
    %2190 = vmatprep.subr.mxu0 0.0
    %2191 = vmatpush1.msra.mxu0 %v1943
    %2192 = vmatprep.subr.mxu0 0.0
    %2193 = vmatpush1.msra.mxu0 %v1944
    %2194 = vmatprep.subr.mxu0 0.0
    %2195 = vmatpush1.msra.mxu0 %v1945
    %2196 = vmatprep.mubr.f32.mxu0 %v1839
    %2197 = vmatmul.mubr.f32.gmra.mrb[0].mxu0 %v1838
    %v2198 = vpop.f32.mrb[0].mxu0
    %v2199 = vadd.f32 %v2124, %v2198
    %v2200 = vpop.f32.mrb[0].mxu0
    %2201 = vmatprep.mubr.f32.mxu0 %v1847
    %2202 = vmatmul.mubr.f32.gmra.mrb[0].mxu0 %v1846
    %v2203 = vpop.f32.mrb[0].mxu0
    %v2204 = vadd.f32 %v2129, %v2203
    %v2205 = vpop.f32.mrb[0].mxu0
    %2206 = vdwg.mxu0
    %2207 = vmatprep.subr.mxu0 0.0
    %2208 = vmatpush1.msra.mxu0 %v1946
    %2209 = vmatprep.subr.mxu0 0.0
    %2210 = vmatpush1.msra.mxu0 %v1947
    %2211 = vmatprep.subr.mxu0 0.0
    %2212 = vmatpush1.msra.mxu0 %v1948
    %2213 = vmatprep.subr.mxu0 0.0
    %2214 = vmatpush1.msra.mxu0 %v1949
    %2215 = vmatprep.subr.mxu0 0.0
    %2216 = vmatpush1.msra.mxu0 %v1950
    %2217 = vmatprep.subr.mxu0 0.0
    %2218 = vmatpush1.msra.mxu0 %v1951
    %2219 = vmatprep.subr.mxu0 0.0
    %2220 = vmatpush1.msra.mxu0 %v1952
    %2221 = vmatprep.subr.mxu0 0.0
    %2222 = vmatpush1.msra.mxu0 %v1953
    %2223 = vmatprep.subr.mxu0 0.0
    %2224 = vmatpush1.msra.mxu0 %v1954
    %2225 = vmatprep.subr.mxu0 0.0
    %2226 = vmatpush1.msra.mxu0 %v1955
    %2227 = vmatprep.subr.mxu0 0.0
    %2228 = vmatpush1.msra.mxu0 %v1956
    %2229 = vmatprep.subr.mxu0 0.0
    %2230 = vmatpush1.msra.mxu0 %v1957
    %2231 = vmatprep.subr.mxu0 0.0
    %2232 = vmatpush1.msra.mxu0 %v1958
    %2233 = vmatprep.subr.mxu0 0.0
    %2234 = vmatpush1.msra.mxu0 %v1959
    %2235 = vmatprep.subr.mxu0 0.0
    %2236 = vmatpush1.msra.mxu0 %v1960
    %2237 = vmatprep.subr.mxu0 0.0
    %2238 = vmatpush1.msra.mxu0 %v1961
    %2239 = vmatprep.subr.mxu0 0.0
    %2240 = vmatpush1.msra.mxu0 %v1962
    %2241 = vmatprep.subr.mxu0 0.0
    %2242 = vmatpush1.msra.mxu0 %v1963
    %2243 = vmatprep.subr.mxu0 0.0
    %2244 = vmatpush1.msra.mxu0 %v1964
    %2245 = vmatprep.subr.mxu0 0.0
    %2246 = vmatpush1.msra.mxu0 %v1965
    %2247 = vmatprep.subr.mxu0 0.0
    %2248 = vmatpush1.msra.mxu0 %v1966
    %2249 = vmatprep.subr.mxu0 0.0
    %2250 = vmatpush1.msra.mxu0 %v1967
    %2251 = vmatprep.subr.mxu0 0.0
    %2252 = vmatpush1.msra.mxu0 %v1968
    %2253 = vmatprep.subr.mxu0 0.0
    %2254 = vmatpush1.msra.mxu0 %v1969
    %2255 = vmatprep.subr.mxu0 0.0
    %2256 = vmatpush1.msra.mxu0 %v1970
    %2257 = vmatprep.subr.mxu0 0.0
    %2258 = vmatpush1.msra.mxu0 %v1971
    %2259 = vmatprep.subr.mxu0 0.0
    %2260 = vmatpush1.msra.mxu0 %v1972
    %2261 = vmatprep.subr.mxu0 0.0
    %2262 = vmatpush1.msra.mxu0 %v1973
    %2263 = vmatprep.subr.mxu0 0.0
    %2264 = vmatpush1.msra.mxu0 %v1974
    %2265 = vmatprep.subr.mxu0 0.0
    %2266 = vmatpush1.msra.mxu0 %v1975
    %2267 = vmatprep.subr.mxu0 0.0
    %2268 = vmatpush1.msra.mxu0 %v1976
    %2269 = vmatprep.subr.mxu0 0.0
    %2270 = vmatpush1.msra.mxu0 %v1977
    %2271 = vmatprep.mubr.f32.mxu0 %v1841
    %2272 = vmatmul.mubr.f32.gmra.mrb[0].mxu0 %v1840
    %v2273 = vpop.f32.mrb[0].mxu0
    %v2274 = vadd.f32 %v2199, %v2273
    %v2275 = vpop.f32.mrb[0].mxu0
    %2276 = vmatprep.mubr.f32.mxu0 %v1849
    %2277 = vmatmul.mubr.f32.gmra.mrb[0].mxu0 %v1848
    %v2278 = vpop.f32.mrb[0].mxu0
    %v2279 = vadd.f32 %v2204, %v2278
    %v2280 = vpop.f32.mrb[0].mxu0
    %2281 = vdwg.mxu0
    %v2282 = vadd.f32 %v1428, %v2274
    %v2283 = vadd.f32 %v1429, %v2279
    %v2284 = vsel %vm108, %v2282, 0.0
    %2285 = vadd.xlane.f32.xlu0 %v2284
    %v2286 = vpop.xlane.xlu0 %2285
    %v2287 = vsel %vm108, %v2283, 0.0
    %2288 = vadd.xlane.f32.xlu0 %v2287
    %v2289 = vpop.xlane.xlu0 %2288
    %v2290 = vmul.f32 %v2286, %v1397
    %v2291 = vmul.f32 %v2289, %v1397
    %v2292 = vsub.f32 %v2282, %v2290
    %v2293 = vsub.f32 %v2283, %v2291
    %v2294 = vmul.f32 %v2292, %v2292
    %v2295 = vmul.f32 %v2293, %v2293
    %v2296 = vsel %vm108, %v2294, 0.0
    %2297 = vadd.xlane.f32.xlu0 %v2296
    %v2298 = vpop.xlane.xlu0 %2297
    %v2299 = vsel %vm108, %v2295, 0.0
    %2300 = vadd.xlane.f32.xlu0 %v2299
    %v2301 = vpop.xlane.xlu0 %2300
    %v2302 = vmul.f32 %v2298, %v1397
    %v2303 = vmul.f32 %v2301, %v1397
    %v2304 = vadd.f32 %v2302, 1e-05
    %v2305 = vadd.f32 %v2303, 1e-05
    %v2306 = vrsqrt.pop %v2304
    %v2307 = vrsqrt.pop %v2305
    %v2308 = vmul.f32 %v2292, %v2306
    %v2309 = vmul.f32 %v2293, %v2307
    %v2310 = vlaneseq
    %v2311 = vshrl.u32 %v2310, 7
    %v2312 = vsub.s32 4, %v2311
    %v2313 = vrot.slane %v1262, %v2312
    %v2314 = vmul.f32 %v2308, %v2313
    %v2315 = vmul.f32 %v2309, %v2313
    %v2316 = vlaneseq
    %v2317 = vshrl.u32 %v2316, 7
    %v2318 = vsub.s32 5, %v2317
    %v2319 = vrot.slane %v1262, %v2318
    %v2320 = vadd.f32 %v2314, %v2319
    %v2321 = vadd.f32 %v2315, %v2319
    %s2322 = scalar_lea.vmem %s2, 96
    %v2323 = vld [vmem:[%s2322] sm:$0xff]
    %v2324 = vld [vmem:[%s2322 + $0x8] sm:$0xff]
    %v2325 = vld [vmem:[%s2322 + $0x10] sm:$0xff]
    %v2326 = vld [vmem:[%s2322 + $0x18] sm:$0xff]
    %v2327 = vld [vmem:[%s2322 + $0x20] sm:$0xff]
    %v2328 = vld [vmem:[%s2322 + $0x28] sm:$0xff]
    %v2329 = vld [vmem:[%s2322 + $0x30] sm:$0xff]
    %v2330 = vld [vmem:[%s2322 + $0x38] sm:$0xff]
    %v2331 = vld [vmem:[%s2322 + $0x40] sm:$0xff]
    %v2332 = vld [vmem:[%s2322 + $0x48] sm:$0xff]
    %v2333 = vld [vmem:[%s2322 + $0x50] sm:$0xff]
    %v2334 = vld [vmem:[%s2322 + $0x58] sm:$0xff]
    %s2335 = scalar_lea.vmem %s3, 2
    %v2336 = vld [vmem:[%s2335] sm:$0x3]
    %v2338 = vlaneseq
    %v2339 = vshrl.u32 %v2338, 7
    %v2340 = vsub.s32 0, %v2339
    %v2341 = vrot.slane %v2336, %v2340
    %v2342 = vlaneseq
    %v2343 = vshrl.u32 %v2342, 7
    %v2344 = vsub.s32 1, %v2343
    %v2345 = vrot.slane %v2336, %v2344
    %v2349 = vsel %vm108, %v2320, 0
    %v2352 = vsel %vm108, %v2321, 0
    %2354 = vmatprep.subr.mxu0 %v2324
    %2355 = vmatpush1.msra.mxu0 %v2323
    %2356 = vmatprep.subr.mxu0 %v2326
    %2357 = vmatpush1.msra.mxu0 %v2325
    %2358 = vmatprep.subr.mxu0 %v2328
    %2359 = vmatpush1.msra.mxu0 %v2327
    %2360 = vmatprep.subr.mxu0 %v2330
    %2361 = vmatpush1.msra.mxu0 %v2329
    %2362 = vmatprep.subr.mxu0 %v2332
    %2363 = vmatpush1.msra.mxu0 %v2331
    %2364 = vmatprep.subr.mxu0 %v2334
    %2365 = vmatpush1.msra.mxu0 %v2333
    %2366 = vmatprep.subr.mxu0 0.0
    %2367 = vmatpush1.msra.mxu0 0.0
    %2368 = vmatprep.subr.mxu0 0.0
    %2369 = vmatpush1.msra.mxu0 0.0
    %2370 = vmatprep.subr.mxu0 0.0
    %2371 = vmatpush1.msra.mxu0 0.0
    %2372 = vmatprep.subr.mxu0 0.0
    %2373 = vmatpush1.msra.mxu0 0.0
    %2374 = vmatprep.subr.mxu0 0.0
    %2375 = vmatpush1.msra.mxu0 0.0
    %2376 = vmatprep.subr.mxu0 0.0
    %2377 = vmatpush1.msra.mxu0 0.0
    %2378 = vmatprep.subr.mxu0 0.0
    %2379 = vmatpush1.msra.mxu0 0.0
    %2380 = vmatprep.subr.mxu0 0.0
    %2381 = vmatpush1.msra.mxu0 0.0
    %2382 = vmatprep.subr.mxu0 0.0
    %2383 = vmatpush1.msra.mxu0 0.0
    %2384 = vmatprep.subr.mxu0 0.0
    %2385 = vmatpush1.msra.mxu0 0.0
    %2386 = vmatprep.subr.mxu0 0.0
    %2387 = vmatpush1.msra.mxu0 0.0
    %2388 = vmatprep.subr.mxu0 0.0
    %2389 = vmatpush1.msra.mxu0 0.0
    %2390 = vmatprep.subr.mxu0 0.0
    %2391 = vmatpush1.msra.mxu0 0.0
    %2392 = vmatprep.subr.mxu0 0.0
    %2393 = vmatpush1.msra.mxu0 0.0
    %2394 = vmatprep.subr.mxu0 0.0
    %2395 = vmatpush1.msra.mxu0 0.0
    %2396 = vmatprep.subr.mxu0 0.0
    %2397 = vmatpush1.msra.mxu0 0.0
    %2398 = vmatprep.subr.mxu0 0.0
    %2399 = vmatpush1.msra.mxu0 0.0
    %2400 = vmatprep.subr.mxu0 0.0
    %2401 = vmatpush1.msra.mxu0 0.0
    %2402 = vmatprep.subr.mxu0 0.0
    %2403 = vmatpush1.msra.mxu0 0.0
    %2404 = vmatprep.subr.mxu0 0.0
    %2405 = vmatpush1.msra.mxu0 0.0
    %2406 = vmatprep.subr.mxu0 0.0
    %2407 = vmatpush1.msra.mxu0 0.0
    %2408 = vmatprep.subr.mxu0 0.0
    %2409 = vmatpush1.msra.mxu0 0.0
    %2410 = vmatprep.subr.mxu0 0.0
    %2411 = vmatpush1.msra.mxu0 0.0
    %2412 = vmatprep.subr.mxu0 0.0
    %2413 = vmatpush1.msra.mxu0 0.0
    %2414 = vmatprep.subr.mxu0 0.0
    %2415 = vmatpush1.msra.mxu0 0.0
    %2416 = vmatprep.subr.mxu0 0.0
    %2417 = vmatpush1.msra.mxu0 0.0
    %2418 = vmatprep.mubr.f32.mxu0 0.0
    %2419 = vmatmul.mubr.f32.gmra.mrb[0].mxu0 %v2349
    %v2420 = vpop.f32.mrb[0].mxu0
    %v2421 = vadd.f32 %v2341, %v2420
    %v2422 = vpop.f32.mrb[0].mxu0
    %v2423 = vadd.f32 %v2345, %v2422
    %2424 = vmatprep.mubr.f32.mxu0 0.0
    %2425 = vmatmul.mubr.f32.gmra.mrb[0].mxu0 %v2352
    %v2426 = vpop.f32.mrb[0].mxu0
    %v2427 = vadd.f32 %v2341, %v2426
    %v2428 = vpop.f32.mrb[0].mxu0
    %v2429 = vadd.f32 %v2345, %v2428
    %2430 = vdwg.mxu0
    %v2431 = vmul.f32 %v2421, 0.35355338
    %v2432 = vmul.f32 %v2427, 0.35355338
    %v2435 = vcombine.high %v2431, %v2431
    %v2437 = vunpack.c.l.s4 1966171168
    %v2438 = vunpack.c.0.s8 %v2437
    %v2439 = vlaneseq
    %v2440 = vshrl.u32 %v2439, 7
    %v2441 = vsub.s32 %v2438, %v2440
    %v2442 = vrot.slane %v2431, %v2441
    %v2444 = vunpack.c.l.s4 1966171168
    %v2445 = vunpack.c.0.s8 %v2444
    %v2446 = vlaneseq
    %v2447 = vshrl.u32 %v2446, 7
    %v2448 = vsub.s32 %v2445, %v2447
    %v2449 = vrot.slane %v2435, %v2448
    %v2450 = vcombine.high %v2442, %v2442
    %v2451 = vcombine.high %v2449, %v2449
    %v2453 = vunpack.c.l.s4 1966171168
    %v2454 = vunpack.c.0.s8 %v2453
    %v2455 = vlaneseq
    %v2456 = vshrl.u32 %v2455, 7
    %v2457 = vsub.s32 %v2454, %v2456
    %v2458 = vrot.slane %v2442, %v2457
    %v2460 = vunpack.c.l.s4 1966171168
    %v2461 = vunpack.c.0.s8 %v2460
    %v2462 = vlaneseq
    %v2463 = vshrl.u32 %v2462, 7
    %v2464 = vsub.s32 %v2461, %v2463
    %v2465 = vrot.slane %v2449, %v2464
    %v2467 = vunpack.c.l.s4 1966171168
    %v2468 = vunpack.c.0.s8 %v2467
    %v2469 = vlaneseq
    %v2470 = vshrl.u32 %v2469, 7
    %v2471 = vsub.s32 %v2468, %v2470
    %v2472 = vrot.slane %v2450, %v2471
    %v2474 = vunpack.c.l.s4 1966171168
    %v2475 = vunpack.c.0.s8 %v2474
    %v2476 = vlaneseq
    %v2477 = vshrl.u32 %v2476, 7
    %v2478 = vsub.s32 %v2475, %v2477
    %v2479 = vrot.slane %v2451, %v2478
    %v2480 = vcombine.high %v2458, %v2458
    %v2481 = vcombine.high %v2465, %v2465
    %v2482 = vcombine.high %v2472, %v2472
    %v2483 = vcombine.high %v2479, %v2479
    %v2484 = vcombine.high %v2432, %v2432
    %v2486 = vunpack.c.l.s4 1966171168
    %v2487 = vunpack.c.0.s8 %v2486
    %v2488 = vlaneseq
    %v2489 = vshrl.u32 %v2488, 7
    %v2490 = vsub.s32 %v2487, %v2489
    %v2491 = vrot.slane %v2432, %v2490
    %v2493 = vunpack.c.l.s4 1966171168
    %v2494 = vunpack.c.0.s8 %v2493
    %v2495 = vlaneseq
    %v2496 = vshrl.u32 %v2495, 7
    %v2497 = vsub.s32 %v2494, %v2496
    %v2498 = vrot.slane %v2484, %v2497
    %v2499 = vcombine.high %v2491, %v2491
    %v2500 = vcombine.high %v2498, %v2498
    %v2502 = vunpack.c.l.s4 1966171168
    %v2503 = vunpack.c.0.s8 %v2502
    %v2504 = vlaneseq
    %v2505 = vshrl.u32 %v2504, 7
    %v2506 = vsub.s32 %v2503, %v2505
    %v2507 = vrot.slane %v2491, %v2506
    %v2509 = vunpack.c.l.s4 1966171168
    %v2510 = vunpack.c.0.s8 %v2509
    %v2511 = vlaneseq
    %v2512 = vshrl.u32 %v2511, 7
    %v2513 = vsub.s32 %v2510, %v2512
    %v2514 = vrot.slane %v2498, %v2513
    %v2516 = vunpack.c.l.s4 1966171168
    %v2517 = vunpack.c.0.s8 %v2516
    %v2518 = vlaneseq
    %v2519 = vshrl.u32 %v2518, 7
    %v2520 = vsub.s32 %v2517, %v2519
    %v2521 = vrot.slane %v2499, %v2520
    %v2523 = vunpack.c.l.s4 1966171168
    %v2524 = vunpack.c.0.s8 %v2523
    %v2525 = vlaneseq
    %v2526 = vshrl.u32 %v2525, 7
    %v2527 = vsub.s32 %v2524, %v2526
    %v2528 = vrot.slane %v2500, %v2527
    %v2529 = vcombine.high %v2507, %v2507
    %v2530 = vcombine.high %v2514, %v2514
    %v2531 = vcombine.high %v2521, %v2521
    %v2532 = vcombine.high %v2528, %v2528
    %v2533 = vlaneseq
    %v2534 = vshrl.u32 %v2533, 7
    %v2535 = vsub.s32 0, %v2534
    %v2536 = vrot.slane %v2458, %v2535
    %v2537 = vlaneseq
    %v2538 = vshrl.u32 %v2537, 7
    %v2539 = vsub.s32 0, %v2538
    %v2540 = vrot.slane %v2472, %v2539
    %v2541 = vlaneseq
    %v2542 = vshrl.u32 %v2541, 7
    %v2543 = vsub.s32 0, %v2542
    %v2544 = vrot.slane %v2480, %v2543
    %v2545 = vlaneseq
    %v2546 = vshrl.u32 %v2545, 7
    %v2547 = vsub.s32 0, %v2546
    %v2548 = vrot.slane %v2482, %v2547
    %v2549 = vlaneseq
    %v2550 = vshrl.u32 %v2549, 7
    %v2551 = vsub.s32 0, %v2550
    %v2552 = vrot.slane %v2465, %v2551
    %v2553 = vlaneseq
    %v2554 = vshrl.u32 %v2553, 7
    %v2555 = vsub.s32 0, %v2554
    %v2556 = vrot.slane %v2479, %v2555
    %v2557 = vlaneseq
    %v2558 = vshrl.u32 %v2557, 7
    %v2559 = vsub.s32 0, %v2558
    %v2560 = vrot.slane %v2481, %v2559
    %v2561 = vlaneseq
    %v2562 = vshrl.u32 %v2561, 7
    %v2563 = vsub.s32 0, %v2562
    %v2564 = vrot.slane %v2483, %v2563
    %v2565 = vlaneseq
    %v2566 = vshrl.u32 %v2565, 7
    %v2567 = vsub.s32 0, %v2566
    %v2568 = vrot.slane %v2507, %v2567
    %v2569 = vlaneseq
    %v2570 = vshrl.u32 %v2569, 7
    %v2571 = vsub.s32 0, %v2570
    %v2572 = vrot.slane %v2521, %v2571
    %v2573 = vlaneseq
    %v2574 = vshrl.u32 %v2573, 7
    %v2575 = vsub.s32 0, %v2574
    %v2576 = vrot.slane %v2529, %v2575
    %v2577 = vlaneseq
    %v2578 = vshrl.u32 %v2577, 7
    %v2579 = vsub.s32 0, %v2578
    %v2580 = vrot.slane %v2531, %v2579
    %v2581 = vlaneseq
    %v2582 = vshrl.u32 %v2581, 7
    %v2583 = vsub.s32 0, %v2582
    %v2584 = vrot.slane %v2514, %v2583
    %v2585 = vlaneseq
    %v2586 = vshrl.u32 %v2585, 7
    %v2587 = vsub.s32 0, %v2586
    %v2588 = vrot.slane %v2528, %v2587
    %v2589 = vlaneseq
    %v2590 = vshrl.u32 %v2589, 7
    %v2591 = vsub.s32 0, %v2590
    %v2592 = vrot.slane %v2530, %v2591
    %v2593 = vlaneseq
    %v2594 = vshrl.u32 %v2593, 7
    %v2595 = vsub.s32 0, %v2594
    %v2596 = vrot.slane %v2532, %v2595
    %2615 = vrot.lane.b32.xlu0 %v2421, 80
    %v2616 = vpop.permute.xlu0 %2615
    %2617 = vrot.lane.b32.xlu0 %v2427, 80
    %v2618 = vpop.permute.xlu0 %2617
    %v2621 = vmul.f32 %v2536, %v2616
    %v2622 = vmul.f32 %v2540, %v2616
    %v2623 = vmul.f32 %v2544, %v2616
    %v2624 = vmul.f32 %v2548, %v2616
    %v2625 = vmul.f32 %v2552, %v2616
    %v2626 = vmul.f32 %v2556, %v2616
    %v2627 = vmul.f32 %v2560, %v2616
    %v2628 = vmul.f32 %v2564, %v2616
    %v2629 = vmul.f32 %v2568, %v2618
    %v2630 = vmul.f32 %v2572, %v2618
    %v2631 = vmul.f32 %v2576, %v2618
    %v2632 = vmul.f32 %v2580, %v2618
    %v2633 = vmul.f32 %v2584, %v2618
    %v2634 = vmul.f32 %v2588, %v2618
    %v2635 = vmul.f32 %v2592, %v2618
    %v2636 = vmul.f32 %v2596, %v2618
    %v2638 = vsel %vm108, %v2621, 0
    %v2641 = vsel %vm108, %v2622, 0
    %v2644 = vsel %vm108, %v2623, 0
    %v2647 = vsel %vm108, %v2624, 0
    %v2650 = vsel %vm108, %v2625, 0
    %v2653 = vsel %vm108, %v2626, 0
    %v2656 = vsel %vm108, %v2627, 0
    %v2659 = vsel %vm108, %v2628, 0
    %v2662 = vsel %vm108, %v2629, 0
    %v2665 = vsel %vm108, %v2630, 0
    %v2668 = vsel %vm108, %v2631, 0
    %v2671 = vsel %vm108, %v2632, 0
    %v2674 = vsel %vm108, %v2633, 0
    %v2677 = vsel %vm108, %v2634, 0
    %v2680 = vsel %vm108, %v2635, 0
    %v2683 = vsel %vm108, %v2636, 0
    %2685 = vmatprep.subr.mxu0 0.0
    %2686 = vmatpush1.msra.mxu0 %v72
    %2687 = vmatprep.subr.mxu0 0.0
    %2688 = vmatpush1.msra.mxu0 %v73
    %2689 = vmatprep.subr.mxu0 0.0
    %2690 = vmatpush1.msra.mxu0 %v74
    %2691 = vmatprep.subr.mxu0 0.0
    %2692 = vmatpush1.msra.mxu0 %v75
    %2693 = vmatprep.subr.mxu0 0.0
    %2694 = vmatpush1.msra.mxu0 %v76
    %2695 = vmatprep.subr.mxu0 0.0
    %2696 = vmatpush1.msra.mxu0 %v77
    %2697 = vmatprep.subr.mxu0 0.0
    %2698 = vmatpush1.msra.mxu0 0.0
    %2699 = vmatprep.subr.mxu0 0.0
    %2700 = vmatpush1.msra.mxu0 0.0
    %2701 = vmatprep.subr.mxu0 0.0
    %2702 = vmatpush1.msra.mxu0 0.0
    %2703 = vmatprep.subr.mxu0 0.0
    %2704 = vmatpush1.msra.mxu0 0.0
    %2705 = vmatprep.subr.mxu0 0.0
    %2706 = vmatpush1.msra.mxu0 0.0
    %2707 = vmatprep.subr.mxu0 0.0
    %2708 = vmatpush1.msra.mxu0 0.0
    %2709 = vmatprep.subr.mxu0 0.0
    %2710 = vmatpush1.msra.mxu0 0.0
    %2711 = vmatprep.subr.mxu0 0.0
    %2712 = vmatpush1.msra.mxu0 0.0
    %2713 = vmatprep.subr.mxu0 0.0
    %2714 = vmatpush1.msra.mxu0 0.0
    %2715 = vmatprep.subr.mxu0 0.0
    %2716 = vmatpush1.msra.mxu0 0.0
    %2717 = vmatprep.subr.mxu0 0.0
    %2718 = vmatpush1.msra.mxu0 0.0
    %2719 = vmatprep.subr.mxu0 0.0
    %2720 = vmatpush1.msra.mxu0 0.0
    %2721 = vmatprep.subr.mxu0 0.0
    %2722 = vmatpush1.msra.mxu0 0.0
    %2723 = vmatprep.subr.mxu0 0.0
    %2724 = vmatpush1.msra.mxu0 0.0
    %2725 = vmatprep.subr.mxu0 0.0
    %2726 = vmatpush1.msra.mxu0 0.0
    %2727 = vmatprep.subr.mxu0 0.0
    %2728 = vmatpush1.msra.mxu0 0.0
    %2729 = vmatprep.subr.mxu0 0.0
    %2730 = vmatpush1.msra.mxu0 0.0
    %2731 = vmatprep.subr.mxu0 0.0
    %2732 = vmatpush1.msra.mxu0 0.0
    %2733 = vmatprep.subr.mxu0 0.0
    %2734 = vmatpush1.msra.mxu0 0.0
    %2735 = vmatprep.subr.mxu0 0.0
    %2736 = vmatpush1.msra.mxu0 0.0
    %2737 = vmatprep.subr.mxu0 0.0
    %2738 = vmatpush1.msra.mxu0 0.0
    %2739 = vmatprep.subr.mxu0 0.0
    %2740 = vmatpush1.msra.mxu0 0.0
    %2741 = vmatprep.subr.mxu0 0.0
    %2742 = vmatpush1.msra.mxu0 0.0
    %2743 = vmatprep.subr.mxu0 0.0
    %2744 = vmatpush1.msra.mxu0 0.0
    %2745 = vmatprep.subr.mxu0 0.0
    %2746 = vmatpush1.msra.mxu0 0.0
    %2747 = vmatprep.subr.mxu0 0.0
    %2748 = vmatpush1.msra.mxu0 0.0
    %2749 = vmatprep.mubr.f32.mxu0 0.0
    %2750 = vmatmul.mubr.f32.gmra.mrb[0].mxu0 %v2638
    %v2751 = vpop.f32.mrb[0].mxu0
    %v2752 = vadd.f32 0.0, %v2751
    %v2753 = vpop.f32.mrb[0].mxu0
    %2754 = vmatprep.mubr.f32.mxu0 0.0
    %2755 = vmatmul.mubr.f32.gmra.mrb[0].mxu0 %v2641
    %v2756 = vpop.f32.mrb[0].mxu0
    %v2757 = vadd.f32 0.0, %v2756
    %v2758 = vpop.f32.mrb[0].mxu0
    %2759 = vmatprep.mubr.f32.mxu0 0.0
    %2760 = vmatmul.mubr.f32.gmra.mrb[0].mxu0 %v2644
    %v2761 = vpop.f32.mrb[0].mxu0
    %v2762 = vadd.f32 0.0, %v2761
    %v2763 = vpop.f32.mrb[0].mxu0
    %2764 = vmatprep.mubr.f32.mxu0 0.0
    %2765 = vmatmul.mubr.f32.gmra.mrb[0].mxu0 %v2647
    %v2766 = vpop.f32.mrb[0].mxu0
    %v2767 = vadd.f32 0.0, %v2766
    %v2768 = vpop.f32.mrb[0].mxu0
    %2769 = vmatprep.mubr.f32.mxu0 0.0
    %2770 = vmatmul.mubr.f32.gmra.mrb[0].mxu0 %v2650
    %v2771 = vpop.f32.mrb[0].mxu0
    %v2772 = vadd.f32 0.0, %v2771
    %v2773 = vpop.f32.mrb[0].mxu0
    %2774 = vmatprep.mubr.f32.mxu0 0.0
    %2775 = vmatmul.mubr.f32.gmra.mrb[0].mxu0 %v2653
    %v2776 = vpop.f32.mrb[0].mxu0
    %v2777 = vadd.f32 0.0, %v2776
    %v2778 = vpop.f32.mrb[0].mxu0
    %2779 = vmatprep.mubr.f32.mxu0 0.0
    %2780 = vmatmul.mubr.f32.gmra.mrb[0].mxu0 %v2656
    %v2781 = vpop.f32.mrb[0].mxu0
    %v2782 = vadd.f32 0.0, %v2781
    %v2783 = vpop.f32.mrb[0].mxu0
    %2784 = vmatprep.mubr.f32.mxu0 0.0
    %2785 = vmatmul.mubr.f32.gmra.mrb[0].mxu0 %v2659
    %v2786 = vpop.f32.mrb[0].mxu0
    %v2787 = vadd.f32 0.0, %v2786
    %v2788 = vpop.f32.mrb[0].mxu0
    %2789 = vmatprep.mubr.f32.mxu0 0.0
    %2790 = vmatmul.mubr.f32.gmra.mrb[0].mxu0 %v2662
    %v2791 = vpop.f32.mrb[0].mxu0
    %v2792 = vadd.f32 0.0, %v2791
    %v2793 = vpop.f32.mrb[0].mxu0
    %2794 = vmatprep.mubr.f32.mxu0 0.0
    %2795 = vmatmul.mubr.f32.gmra.mrb[0].mxu0 %v2665
    %v2796 = vpop.f32.mrb[0].mxu0
    %v2797 = vadd.f32 0.0, %v2796
    %v2798 = vpop.f32.mrb[0].mxu0
    %2799 = vmatprep.mubr.f32.mxu0 0.0
    %2800 = vmatmul.mubr.f32.gmra.mrb[0].mxu0 %v2668
    %v2801 = vpop.f32.mrb[0].mxu0
    %v2802 = vadd.f32 0.0, %v2801
    %v2803 = vpop.f32.mrb[0].mxu0
    %2804 = vmatprep.mubr.f32.mxu0 0.0
    %2805 = vmatmul.mubr.f32.gmra.mrb[0].mxu0 %v2671
    %v2806 = vpop.f32.mrb[0].mxu0
    %v2807 = vadd.f32 0.0, %v2806
    %v2808 = vpop.f32.mrb[0].mxu0
    %2809 = vmatprep.mubr.f32.mxu0 0.0
    %2810 = vmatmul.mubr.f32.gmra.mrb[0].mxu0 %v2674
    %v2811 = vpop.f32.mrb[0].mxu0
    %v2812 = vadd.f32 0.0, %v2811
    %v2813 = vpop.f32.mrb[0].mxu0
    %2814 = vmatprep.mubr.f32.mxu0 0.0
    %2815 = vmatmul.mubr.f32.gmra.mrb[0].mxu0 %v2677
    %v2816 = vpop.f32.mrb[0].mxu0
    %v2817 = vadd.f32 0.0, %v2816
    %v2818 = vpop.f32.mrb[0].mxu0
    %2819 = vmatprep.mubr.f32.mxu0 0.0
    %2820 = vmatmul.mubr.f32.gmra.mrb[0].mxu0 %v2680
    %v2821 = vpop.f32.mrb[0].mxu0
    %v2822 = vadd.f32 0.0, %v2821
    %v2823 = vpop.f32.mrb[0].mxu0
    %2824 = vmatprep.mubr.f32.mxu0 0.0
    %2825 = vmatmul.mubr.f32.gmra.mrb[0].mxu0 %v2683
    %v2826 = vpop.f32.mrb[0].mxu0
    %v2827 = vadd.f32 0.0, %v2826
    %v2828 = vpop.f32.mrb[0].mxu0
    %2829 = vdwg.mxu0
    %v2830 = vadd.f32 %v2752, %v594
    %v2831 = vadd.f32 %v2757, %v594
    %v2832 = vadd.f32 %v2762, %v594
    %v2833 = vadd.f32 %v2767, %v594
    %v2834 = vadd.f32 %v2772, %v594
    %v2835 = vadd.f32 %v2777, %v594
    %v2836 = vadd.f32 %v2782, %v594
    %v2837 = vadd.f32 %v2787, %v594
    %v2838 = vadd.f32 %v2792, %v599
    %v2839 = vadd.f32 %v2797, %v599
    %v2840 = vadd.f32 %v2802, %v599
    %v2841 = vadd.f32 %v2807, %v599
    %v2842 = vadd.f32 %v2812, %v599
    %v2843 = vadd.f32 %v2817, %v599
    %v2844 = vadd.f32 %v2822, %v599
    %v2845 = vadd.f32 %v2827, %v599
    %v2846 = vsel %vm617, %v2830, -inf
    %v2847 = vrot.slane %v2846, 4
    %v2848 = vmax.f32 %v2846, %v2847
    %v2849 = vrot.slane %v2848, 2
    %v2850 = vmax.f32 %v2848, %v2849
    %v2851 = vrot.slane %v2850, 1
    %v2852 = vmax.f32 %v2850, %v2851
    %v2853 = vsel %vm617, %v2831, -inf
    %v2854 = vrot.slane %v2853, 4
    %v2855 = vmax.f32 %v2853, %v2854
    %v2856 = vrot.slane %v2855, 2
    %v2857 = vmax.f32 %v2855, %v2856
    %v2858 = vrot.slane %v2857, 1
    %v2859 = vmax.f32 %v2857, %v2858
    %v2860 = vsel %vm617, %v2832, -inf
    %v2861 = vrot.slane %v2860, 4
    %v2862 = vmax.f32 %v2860, %v2861
    %v2863 = vrot.slane %v2862, 2
    %v2864 = vmax.f32 %v2862, %v2863
    %v2865 = vrot.slane %v2864, 1
    %v2866 = vmax.f32 %v2864, %v2865
    %v2867 = vsel %vm617, %v2833, -inf
    %v2868 = vrot.slane %v2867, 4
    %v2869 = vmax.f32 %v2867, %v2868
    %v2870 = vrot.slane %v2869, 2
    %v2871 = vmax.f32 %v2869, %v2870
    %v2872 = vrot.slane %v2871, 1
    %v2873 = vmax.f32 %v2871, %v2872
    %v2874 = vsel %vm617, %v2834, -inf
    %v2875 = vrot.slane %v2874, 4
    %v2876 = vmax.f32 %v2874, %v2875
    %v2877 = vrot.slane %v2876, 2
    %v2878 = vmax.f32 %v2876, %v2877
    %v2879 = vrot.slane %v2878, 1
    %v2880 = vmax.f32 %v2878, %v2879
    %v2881 = vsel %vm617, %v2835, -inf
    %v2882 = vrot.slane %v2881, 4
    %v2883 = vmax.f32 %v2881, %v2882
    %v2884 = vrot.slane %v2883, 2
    %v2885 = vmax.f32 %v2883, %v2884
    %v2886 = vrot.slane %v2885, 1
    %v2887 = vmax.f32 %v2885, %v2886
    %v2888 = vsel %vm617, %v2836, -inf
    %v2889 = vrot.slane %v2888, 4
    %v2890 = vmax.f32 %v2888, %v2889
    %v2891 = vrot.slane %v2890, 2
    %v2892 = vmax.f32 %v2890, %v2891
    %v2893 = vrot.slane %v2892, 1
    %v2894 = vmax.f32 %v2892, %v2893
    %v2895 = vsel %vm617, %v2837, -inf
    %v2896 = vrot.slane %v2895, 4
    %v2897 = vmax.f32 %v2895, %v2896
    %v2898 = vrot.slane %v2897, 2
    %v2899 = vmax.f32 %v2897, %v2898
    %v2900 = vrot.slane %v2899, 1
    %v2901 = vmax.f32 %v2899, %v2900
    %v2902 = vsel %vm617, %v2838, -inf
    %v2903 = vrot.slane %v2902, 4
    %v2904 = vmax.f32 %v2902, %v2903
    %v2905 = vrot.slane %v2904, 2
    %v2906 = vmax.f32 %v2904, %v2905
    %v2907 = vrot.slane %v2906, 1
    %v2908 = vmax.f32 %v2906, %v2907
    %v2909 = vsel %vm617, %v2839, -inf
    %v2910 = vrot.slane %v2909, 4
    %v2911 = vmax.f32 %v2909, %v2910
    %v2912 = vrot.slane %v2911, 2
    %v2913 = vmax.f32 %v2911, %v2912
    %v2914 = vrot.slane %v2913, 1
    %v2915 = vmax.f32 %v2913, %v2914
    %v2916 = vsel %vm617, %v2840, -inf
    %v2917 = vrot.slane %v2916, 4
    %v2918 = vmax.f32 %v2916, %v2917
    %v2919 = vrot.slane %v2918, 2
    %v2920 = vmax.f32 %v2918, %v2919
    %v2921 = vrot.slane %v2920, 1
    %v2922 = vmax.f32 %v2920, %v2921
    %v2923 = vsel %vm617, %v2841, -inf
    %v2924 = vrot.slane %v2923, 4
    %v2925 = vmax.f32 %v2923, %v2924
    %v2926 = vrot.slane %v2925, 2
    %v2927 = vmax.f32 %v2925, %v2926
    %v2928 = vrot.slane %v2927, 1
    %v2929 = vmax.f32 %v2927, %v2928
    %v2930 = vsel %vm617, %v2842, -inf
    %v2931 = vrot.slane %v2930, 4
    %v2932 = vmax.f32 %v2930, %v2931
    %v2933 = vrot.slane %v2932, 2
    %v2934 = vmax.f32 %v2932, %v2933
    %v2935 = vrot.slane %v2934, 1
    %v2936 = vmax.f32 %v2934, %v2935
    %v2937 = vsel %vm617, %v2843, -inf
    %v2938 = vrot.slane %v2937, 4
    %v2939 = vmax.f32 %v2937, %v2938
    %v2940 = vrot.slane %v2939, 2
    %v2941 = vmax.f32 %v2939, %v2940
    %v2942 = vrot.slane %v2941, 1
    %v2943 = vmax.f32 %v2941, %v2942
    %v2944 = vsel %vm617, %v2844, -inf
    %v2945 = vrot.slane %v2944, 4
    %v2946 = vmax.f32 %v2944, %v2945
    %v2947 = vrot.slane %v2946, 2
    %v2948 = vmax.f32 %v2946, %v2947
    %v2949 = vrot.slane %v2948, 1
    %v2950 = vmax.f32 %v2948, %v2949
    %v2951 = vsel %vm617, %v2845, -inf
    %v2952 = vrot.slane %v2951, 4
    %v2953 = vmax.f32 %v2951, %v2952
    %v2954 = vrot.slane %v2953, 2
    %v2955 = vmax.f32 %v2953, %v2954
    %v2956 = vrot.slane %v2955, 1
    %v2957 = vmax.f32 %v2955, %v2956
    %v2958 = vsub.f32 %v2830, %v2852
    %v2959 = vsub.f32 %v2831, %v2859
    %v2960 = vsub.f32 %v2832, %v2866
    %v2961 = vsub.f32 %v2833, %v2873
    %v2962 = vsub.f32 %v2834, %v2880
    %v2963 = vsub.f32 %v2835, %v2887
    %v2964 = vsub.f32 %v2836, %v2894
    %v2965 = vsub.f32 %v2837, %v2901
    %v2966 = vsub.f32 %v2838, %v2908
    %v2967 = vsub.f32 %v2839, %v2915
    %v2968 = vsub.f32 %v2840, %v2922
    %v2969 = vsub.f32 %v2841, %v2929
    %v2970 = vsub.f32 %v2842, %v2936
    %v2971 = vsub.f32 %v2843, %v2943
    %v2972 = vsub.f32 %v2844, %v2950
    %v2973 = vsub.f32 %v2845, %v2957
    %v2974 = vmul.f32 %v2958, 1.442695
    %v2975 = vpow.pop %v2974
    %v2976 = vmul.f32 %v2959, 1.442695
    %v2977 = vpow.pop %v2976
    %v2978 = vmul.f32 %v2960, 1.442695
    %v2979 = vpow.pop %v2978
    %v2980 = vmul.f32 %v2961, 1.442695
    %v2981 = vpow.pop %v2980
    %v2982 = vmul.f32 %v2962, 1.442695
    %v2983 = vpow.pop %v2982
    %v2984 = vmul.f32 %v2963, 1.442695
    %v2985 = vpow.pop %v2984
    %v2986 = vmul.f32 %v2964, 1.442695
    %v2987 = vpow.pop %v2986
    %v2988 = vmul.f32 %v2965, 1.442695
    %v2989 = vpow.pop %v2988
    %v2990 = vmul.f32 %v2966, 1.442695
    %v2991 = vpow.pop %v2990
    %v2992 = vmul.f32 %v2967, 1.442695
    %v2993 = vpow.pop %v2992
    %v2994 = vmul.f32 %v2968, 1.442695
    %v2995 = vpow.pop %v2994
    %v2996 = vmul.f32 %v2969, 1.442695
    %v2997 = vpow.pop %v2996
    %v2998 = vmul.f32 %v2970, 1.442695
    %v2999 = vpow.pop %v2998
    %v3000 = vmul.f32 %v2971, 1.442695
    %v3001 = vpow.pop %v3000
    %v3002 = vmul.f32 %v2972, 1.442695
    %v3003 = vpow.pop %v3002
    %v3004 = vmul.f32 %v2973, 1.442695
    %v3005 = vpow.pop %v3004
    %v3006 = vsel %vm617, %v2975, 0.0
    %v3007 = vrot.slane %v3006, 4
    %v3008 = vadd.f32 %v3006, %v3007
    %v3009 = vrot.slane %v3008, 2
    %v3010 = vadd.f32 %v3008, %v3009
    %v3011 = vrot.slane %v3010, 1
    %v3012 = vadd.f32 %v3010, %v3011
    %v3013 = vsel %vm617, %v2977, 0.0
    %v3014 = vrot.slane %v3013, 4
    %v3015 = vadd.f32 %v3013, %v3014
    %v3016 = vrot.slane %v3015, 2
    %v3017 = vadd.f32 %v3015, %v3016
    %v3018 = vrot.slane %v3017, 1
    %v3019 = vadd.f32 %v3017, %v3018
    %v3020 = vsel %vm617, %v2979, 0.0
    %v3021 = vrot.slane %v3020, 4
    %v3022 = vadd.f32 %v3020, %v3021
    %v3023 = vrot.slane %v3022, 2
    %v3024 = vadd.f32 %v3022, %v3023
    %v3025 = vrot.slane %v3024, 1
    %v3026 = vadd.f32 %v3024, %v3025
    %v3027 = vsel %vm617, %v2981, 0.0
    %v3028 = vrot.slane %v3027, 4
    %v3029 = vadd.f32 %v3027, %v3028
    %v3030 = vrot.slane %v3029, 2
    %v3031 = vadd.f32 %v3029, %v3030
    %v3032 = vrot.slane %v3031, 1
    %v3033 = vadd.f32 %v3031, %v3032
    %v3034 = vsel %vm617, %v2983, 0.0
    %v3035 = vrot.slane %v3034, 4
    %v3036 = vadd.f32 %v3034, %v3035
    %v3037 = vrot.slane %v3036, 2
    %v3038 = vadd.f32 %v3036, %v3037
    %v3039 = vrot.slane %v3038, 1
    %v3040 = vadd.f32 %v3038, %v3039
    %v3041 = vsel %vm617, %v2985, 0.0
    %v3042 = vrot.slane %v3041, 4
    %v3043 = vadd.f32 %v3041, %v3042
    %v3044 = vrot.slane %v3043, 2
    %v3045 = vadd.f32 %v3043, %v3044
    %v3046 = vrot.slane %v3045, 1
    %v3047 = vadd.f32 %v3045, %v3046
    %v3048 = vsel %vm617, %v2987, 0.0
    %v3049 = vrot.slane %v3048, 4
    %v3050 = vadd.f32 %v3048, %v3049
    %v3051 = vrot.slane %v3050, 2
    %v3052 = vadd.f32 %v3050, %v3051
    %v3053 = vrot.slane %v3052, 1
    %v3054 = vadd.f32 %v3052, %v3053
    %v3055 = vsel %vm617, %v2989, 0.0
    %v3056 = vrot.slane %v3055, 4
    %v3057 = vadd.f32 %v3055, %v3056
    %v3058 = vrot.slane %v3057, 2
    %v3059 = vadd.f32 %v3057, %v3058
    %v3060 = vrot.slane %v3059, 1
    %v3061 = vadd.f32 %v3059, %v3060
    %v3062 = vsel %vm617, %v2991, 0.0
    %v3063 = vrot.slane %v3062, 4
    %v3064 = vadd.f32 %v3062, %v3063
    %v3065 = vrot.slane %v3064, 2
    %v3066 = vadd.f32 %v3064, %v3065
    %v3067 = vrot.slane %v3066, 1
    %v3068 = vadd.f32 %v3066, %v3067
    %v3069 = vsel %vm617, %v2993, 0.0
    %v3070 = vrot.slane %v3069, 4
    %v3071 = vadd.f32 %v3069, %v3070
    %v3072 = vrot.slane %v3071, 2
    %v3073 = vadd.f32 %v3071, %v3072
    %v3074 = vrot.slane %v3073, 1
    %v3075 = vadd.f32 %v3073, %v3074
    %v3076 = vsel %vm617, %v2995, 0.0
    %v3077 = vrot.slane %v3076, 4
    %v3078 = vadd.f32 %v3076, %v3077
    %v3079 = vrot.slane %v3078, 2
    %v3080 = vadd.f32 %v3078, %v3079
    %v3081 = vrot.slane %v3080, 1
    %v3082 = vadd.f32 %v3080, %v3081
    %v3083 = vsel %vm617, %v2997, 0.0
    %v3084 = vrot.slane %v3083, 4
    %v3085 = vadd.f32 %v3083, %v3084
    %v3086 = vrot.slane %v3085, 2
    %v3087 = vadd.f32 %v3085, %v3086
    %v3088 = vrot.slane %v3087, 1
    %v3089 = vadd.f32 %v3087, %v3088
    %v3090 = vsel %vm617, %v2999, 0.0
    %v3091 = vrot.slane %v3090, 4
    %v3092 = vadd.f32 %v3090, %v3091
    %v3093 = vrot.slane %v3092, 2
    %v3094 = vadd.f32 %v3092, %v3093
    %v3095 = vrot.slane %v3094, 1
    %v3096 = vadd.f32 %v3094, %v3095
    %v3097 = vsel %vm617, %v3001, 0.0
    %v3098 = vrot.slane %v3097, 4
    %v3099 = vadd.f32 %v3097, %v3098
    %v3100 = vrot.slane %v3099, 2
    %v3101 = vadd.f32 %v3099, %v3100
    %v3102 = vrot.slane %v3101, 1
    %v3103 = vadd.f32 %v3101, %v3102
    %v3104 = vsel %vm617, %v3003, 0.0
    %v3105 = vrot.slane %v3104, 4
    %v3106 = vadd.f32 %v3104, %v3105
    %v3107 = vrot.slane %v3106, 2
    %v3108 = vadd.f32 %v3106, %v3107
    %v3109 = vrot.slane %v3108, 1
    %v3110 = vadd.f32 %v3108, %v3109
    %v3111 = vsel %vm617, %v3005, 0.0
    %v3112 = vrot.slane %v3111, 4
    %v3113 = vadd.f32 %v3111, %v3112
    %v3114 = vrot.slane %v3113, 2
    %v3115 = vadd.f32 %v3113, %v3114
    %v3116 = vrot.slane %v3115, 1
    %v3117 = vadd.f32 %v3115, %v3116
    %v3118 = vrcp.pop %v3012
    %v3119 = vrcp.pop %v3019
    %v3120 = vrcp.pop %v3026
    %v3121 = vrcp.pop %v3033
    %v3122 = vrcp.pop %v3040
    %v3123 = vrcp.pop %v3047
    %v3124 = vrcp.pop %v3054
    %v3125 = vrcp.pop %v3061
    %v3126 = vrcp.pop %v3068
    %v3127 = vrcp.pop %v3075
    %v3128 = vrcp.pop %v3082
    %v3129 = vrcp.pop %v3089
    %v3130 = vrcp.pop %v3096
    %v3131 = vrcp.pop %v3103
    %v3132 = vrcp.pop %v3110
    %v3133 = vrcp.pop %v3117
    %v3134 = vmul.f32 %v2975, %v3118
    %v3135 = vmul.f32 %v2977, %v3119
    %v3136 = vmul.f32 %v2979, %v3120
    %v3137 = vmul.f32 %v2981, %v3121
    %v3138 = vmul.f32 %v2983, %v3122
    %v3139 = vmul.f32 %v2985, %v3123
    %v3140 = vmul.f32 %v2987, %v3124
    %v3141 = vmul.f32 %v2989, %v3125
    %v3142 = vmul.f32 %v2991, %v3126
    %v3143 = vmul.f32 %v2993, %v3127
    %v3144 = vmul.f32 %v2995, %v3128
    %v3145 = vmul.f32 %v2997, %v3129
    %v3146 = vmul.f32 %v2999, %v3130
    %v3147 = vmul.f32 %v3001, %v3131
    %v3148 = vmul.f32 %v3003, %v3132
    %v3149 = vmul.f32 %v3005, %v3133
    %v3151 = vsel %vm617, %v3134, 0
    %v3154 = vsel %vm617, %v3135, 0
    %v3157 = vsel %vm617, %v3136, 0
    %v3160 = vsel %vm617, %v3137, 0
    %v3163 = vsel %vm617, %v3138, 0
    %v3166 = vsel %vm617, %v3139, 0
    %v3169 = vsel %vm617, %v3140, 0
    %v3172 = vsel %vm617, %v3141, 0
    %v3175 = vsel %vm617, %v3142, 0
    %v3178 = vsel %vm617, %v3143, 0
    %v3181 = vsel %vm617, %v3144, 0
    %v3184 = vsel %vm617, %v3145, 0
    %v3187 = vsel %vm617, %v3146, 0
    %v3190 = vsel %vm617, %v3147, 0
    %v3193 = vsel %vm617, %v3148, 0
    %v3196 = vsel %vm617, %v3149, 0
    %3198 = vmatprep.subr.mxu0 0.0
    %3199 = vmatpush1.msra.mxu0 %v972
    %3200 = vmatprep.subr.mxu0 0.0
    %3201 = vmatpush1.msra.mxu0 0.0
    %3202 = vmatprep.subr.mxu0 0.0
    %3203 = vmatpush1.msra.mxu0 0.0
    %3204 = vmatprep.subr.mxu0 0.0
    %3205 = vmatpush1.msra.mxu0 0.0
    %3206 = vmatprep.subr.mxu0 0.0
    %3207 = vmatpush1.msra.mxu0 0.0
    %3208 = vmatprep.subr.mxu0 0.0
    %3209 = vmatpush1.msra.mxu0 0.0
    %3210 = vmatprep.subr.mxu0 0.0
    %3211 = vmatpush1.msra.mxu0 0.0
    %3212 = vmatprep.subr.mxu0 0.0
    %3213 = vmatpush1.msra.mxu0 0.0
    %3214 = vmatprep.subr.mxu0 0.0
    %3215 = vmatpush1.msra.mxu0 0.0
    %3216 = vmatprep.subr.mxu0 0.0
    %3217 = vmatpush1.msra.mxu0 0.0
    %3218 = vmatprep.subr.mxu0 0.0
    %3219 = vmatpush1.msra.mxu0 0.0
    %3220 = vmatprep.subr.mxu0 0.0
    %3221 = vmatpush1.msra.mxu0 0.0
    %3222 = vmatprep.subr.mxu0 0.0
    %3223 = vmatpush1.msra.mxu0 0.0
    %3224 = vmatprep.subr.mxu0 0.0
    %3225 = vmatpush1.msra.mxu0 0.0
    %3226 = vmatprep.subr.mxu0 0.0
    %3227 = vmatpush1.msra.mxu0 0.0
    %3228 = vmatprep.subr.mxu0 0.0
    %3229 = vmatpush1.msra.mxu0 0.0
    %3230 = vmatprep.subr.mxu0 0.0
    %3231 = vmatpush1.msra.mxu0 0.0
    %3232 = vmatprep.subr.mxu0 0.0
    %3233 = vmatpush1.msra.mxu0 0.0
    %3234 = vmatprep.subr.mxu0 0.0
    %3235 = vmatpush1.msra.mxu0 0.0
    %3236 = vmatprep.subr.mxu0 0.0
    %3237 = vmatpush1.msra.mxu0 0.0
    %3238 = vmatprep.subr.mxu0 0.0
    %3239 = vmatpush1.msra.mxu0 0.0
    %3240 = vmatprep.subr.mxu0 0.0
    %3241 = vmatpush1.msra.mxu0 0.0
    %3242 = vmatprep.subr.mxu0 0.0
    %3243 = vmatpush1.msra.mxu0 0.0
    %3244 = vmatprep.subr.mxu0 0.0
    %3245 = vmatpush1.msra.mxu0 0.0
    %3246 = vmatprep.subr.mxu0 0.0
    %3247 = vmatpush1.msra.mxu0 0.0
    %3248 = vmatprep.subr.mxu0 0.0
    %3249 = vmatpush1.msra.mxu0 0.0
    %3250 = vmatprep.subr.mxu0 0.0
    %3251 = vmatpush1.msra.mxu0 0.0
    %3252 = vmatprep.subr.mxu0 0.0
    %3253 = vmatpush1.msra.mxu0 0.0
    %3254 = vmatprep.subr.mxu0 0.0
    %3255 = vmatpush1.msra.mxu0 0.0
    %3256 = vmatprep.subr.mxu0 0.0
    %3257 = vmatpush1.msra.mxu0 0.0
    %3258 = vmatprep.subr.mxu0 0.0
    %3259 = vmatpush1.msra.mxu0 0.0
    %3260 = vmatprep.subr.mxu0 0.0
    %3261 = vmatpush1.msra.mxu0 0.0
    %3262 = vmatprep.mubr.f32.mxu0 0.0
    %3263 = vmatmul.mubr.f32.gmra.mrb[0].mxu0 %v3151
    %v3264 = vpop.f32.mrb[0].mxu0
    %v3265 = vadd.f32 0.0, %v3264
    %v3266 = vpop.f32.mrb[0].mxu0
    %3267 = vmatprep.mubr.f32.mxu0 0.0
    %3268 = vmatmul.mubr.f32.gmra.mrb[0].mxu0 %v3154
    %v3269 = vpop.f32.mrb[0].mxu0
    %v3270 = vadd.f32 0.0, %v3269
    %v3271 = vpop.f32.mrb[0].mxu0
    %3272 = vmatprep.mubr.f32.mxu0 0.0
    %3273 = vmatmul.mubr.f32.gmra.mrb[0].mxu0 %v3157
    %v3274 = vpop.f32.mrb[0].mxu0
    %v3275 = vadd.f32 0.0, %v3274
    %v3276 = vpop.f32.mrb[0].mxu0
    %3277 = vmatprep.mubr.f32.mxu0 0.0
    %3278 = vmatmul.mubr.f32.gmra.mrb[0].mxu0 %v3160
    %v3279 = vpop.f32.mrb[0].mxu0
    %v3280 = vadd.f32 0.0, %v3279
    %v3281 = vpop.f32.mrb[0].mxu0
    %3282 = vmatprep.mubr.f32.mxu0 0.0
    %3283 = vmatmul.mubr.f32.gmra.mrb[0].mxu0 %v3163
    %v3284 = vpop.f32.mrb[0].mxu0
    %v3285 = vadd.f32 0.0, %v3284
    %v3286 = vpop.f32.mrb[0].mxu0
    %3287 = vmatprep.mubr.f32.mxu0 0.0
    %3288 = vmatmul.mubr.f32.gmra.mrb[0].mxu0 %v3166
    %v3289 = vpop.f32.mrb[0].mxu0
    %v3290 = vadd.f32 0.0, %v3289
    %v3291 = vpop.f32.mrb[0].mxu0
    %3292 = vmatprep.mubr.f32.mxu0 0.0
    %3293 = vmatmul.mubr.f32.gmra.mrb[0].mxu0 %v3169
    %v3294 = vpop.f32.mrb[0].mxu0
    %v3295 = vadd.f32 0.0, %v3294
    %v3296 = vpop.f32.mrb[0].mxu0
    %3297 = vmatprep.mubr.f32.mxu0 0.0
    %3298 = vmatmul.mubr.f32.gmra.mrb[0].mxu0 %v3172
    %v3299 = vpop.f32.mrb[0].mxu0
    %v3300 = vadd.f32 0.0, %v3299
    %v3301 = vpop.f32.mrb[0].mxu0
    %3302 = vmatprep.mubr.f32.mxu0 0.0
    %3303 = vmatmul.mubr.f32.gmra.mrb[0].mxu0 %v3175
    %v3304 = vpop.f32.mrb[0].mxu0
    %v3305 = vadd.f32 0.0, %v3304
    %v3306 = vpop.f32.mrb[0].mxu0
    %3307 = vmatprep.mubr.f32.mxu0 0.0
    %3308 = vmatmul.mubr.f32.gmra.mrb[0].mxu0 %v3178
    %v3309 = vpop.f32.mrb[0].mxu0
    %v3310 = vadd.f32 0.0, %v3309
    %v3311 = vpop.f32.mrb[0].mxu0
    %3312 = vmatprep.mubr.f32.mxu0 0.0
    %3313 = vmatmul.mubr.f32.gmra.mrb[0].mxu0 %v3181
    %v3314 = vpop.f32.mrb[0].mxu0
    %v3315 = vadd.f32 0.0, %v3314
    %v3316 = vpop.f32.mrb[0].mxu0
    %3317 = vmatprep.mubr.f32.mxu0 0.0
    %3318 = vmatmul.mubr.f32.gmra.mrb[0].mxu0 %v3184
    %v3319 = vpop.f32.mrb[0].mxu0
    %v3320 = vadd.f32 0.0, %v3319
    %v3321 = vpop.f32.mrb[0].mxu0
    %3322 = vmatprep.mubr.f32.mxu0 0.0
    %3323 = vmatmul.mubr.f32.gmra.mrb[0].mxu0 %v3187
    %v3324 = vpop.f32.mrb[0].mxu0
    %v3325 = vadd.f32 0.0, %v3324
    %v3326 = vpop.f32.mrb[0].mxu0
    %3327 = vmatprep.mubr.f32.mxu0 0.0
    %3328 = vmatmul.mubr.f32.gmra.mrb[0].mxu0 %v3190
    %v3329 = vpop.f32.mrb[0].mxu0
    %v3330 = vadd.f32 0.0, %v3329
    %v3331 = vpop.f32.mrb[0].mxu0
    %3332 = vmatprep.mubr.f32.mxu0 0.0
    %3333 = vmatmul.mubr.f32.gmra.mrb[0].mxu0 %v3193
    %v3334 = vpop.f32.mrb[0].mxu0
    %v3335 = vadd.f32 0.0, %v3334
    %v3336 = vpop.f32.mrb[0].mxu0
    %3337 = vmatprep.mubr.f32.mxu0 0.0
    %3338 = vmatmul.mubr.f32.gmra.mrb[0].mxu0 %v3196
    %v3339 = vpop.f32.mrb[0].mxu0
    %v3340 = vadd.f32 0.0, %v3339
    %v3341 = vpop.f32.mrb[0].mxu0
    %3342 = vdwg.mxu0
    %3345 = vrot.lane.b32.xlu0 %v2421, 32
    %v3346 = vpop.permute.xlu0 %3345
    %3347 = vrot.lane.b32.xlu0 %v2423, 32
    %v3348 = vpop.permute.xlu0 %3347
    %3349 = vrot.lane.b32.xlu0 %v2427, 32
    %v3350 = vpop.permute.xlu0 %3349
    %3351 = vrot.lane.b32.xlu0 %v2429, 32
    %v3352 = vpop.permute.xlu0 %3351
    %v3353 = vsel %vm1129, %v3346, %v3348
    %v3354 = vsel %vm1129, %v3350, %v3352
    %v3357 = vmul.f32 %v3265, %v3353
    %v3358 = vmul.f32 %v3270, %v3353
    %v3359 = vmul.f32 %v3275, %v3353
    %v3360 = vmul.f32 %v3280, %v3353
    %v3361 = vmul.f32 %v3285, %v3353
    %v3362 = vmul.f32 %v3290, %v3353
    %v3363 = vmul.f32 %v3295, %v3353
    %v3364 = vmul.f32 %v3300, %v3353
    %v3365 = vmul.f32 %v3305, %v3354
    %v3366 = vmul.f32 %v3310, %v3354
    %v3367 = vmul.f32 %v3315, %v3354
    %v3368 = vmul.f32 %v3320, %v3354
    %v3369 = vmul.f32 %v3325, %v3354
    %v3370 = vmul.f32 %v3330, %v3354
    %v3371 = vmul.f32 %v3335, %v3354
    %v3372 = vmul.f32 %v3340, %v3354
    %v3373 = vsel %vm108, %v3357, 0.0
    %v3374 = vrot.slane %v3373, 4
    %v3375 = vadd.f32 %v3373, %v3374
    %v3376 = vrot.slane %v3375, 2
    %v3377 = vadd.f32 %v3375, %v3376
    %v3378 = vrot.slane %v3377, 1
    %v3379 = vadd.f32 %v3377, %v3378
    %v3380 = vsel %vm108, %v3358, 0.0
    %v3381 = vrot.slane %v3380, 4
    %v3382 = vadd.f32 %v3380, %v3381
    %v3383 = vrot.slane %v3382, 2
    %v3384 = vadd.f32 %v3382, %v3383
    %v3385 = vrot.slane %v3384, 1
    %v3386 = vadd.f32 %v3384, %v3385
    %v3387 = vsel %vm108, %v3359, 0.0
    %v3388 = vrot.slane %v3387, 4
    %v3389 = vadd.f32 %v3387, %v3388
    %v3390 = vrot.slane %v3389, 2
    %v3391 = vadd.f32 %v3389, %v3390
    %v3392 = vrot.slane %v3391, 1
    %v3393 = vadd.f32 %v3391, %v3392
    %v3394 = vsel %vm108, %v3360, 0.0
    %v3395 = vrot.slane %v3394, 4
    %v3396 = vadd.f32 %v3394, %v3395
    %v3397 = vrot.slane %v3396, 2
    %v3398 = vadd.f32 %v3396, %v3397
    %v3399 = vrot.slane %v3398, 1
    %v3400 = vadd.f32 %v3398, %v3399
    %v3401 = vsel %vm108, %v3361, 0.0
    %v3402 = vrot.slane %v3401, 4
    %v3403 = vadd.f32 %v3401, %v3402
    %v3404 = vrot.slane %v3403, 2
    %v3405 = vadd.f32 %v3403, %v3404
    %v3406 = vrot.slane %v3405, 1
    %v3407 = vadd.f32 %v3405, %v3406
    %v3408 = vsel %vm108, %v3362, 0.0
    %v3409 = vrot.slane %v3408, 4
    %v3410 = vadd.f32 %v3408, %v3409
    %v3411 = vrot.slane %v3410, 2
    %v3412 = vadd.f32 %v3410, %v3411
    %v3413 = vrot.slane %v3412, 1
    %v3414 = vadd.f32 %v3412, %v3413
    %v3415 = vsel %vm108, %v3363, 0.0
    %v3416 = vrot.slane %v3415, 4
    %v3417 = vadd.f32 %v3415, %v3416
    %v3418 = vrot.slane %v3417, 2
    %v3419 = vadd.f32 %v3417, %v3418
    %v3420 = vrot.slane %v3419, 1
    %v3421 = vadd.f32 %v3419, %v3420
    %v3422 = vsel %vm108, %v3364, 0.0
    %v3423 = vrot.slane %v3422, 4
    %v3424 = vadd.f32 %v3422, %v3423
    %v3425 = vrot.slane %v3424, 2
    %v3426 = vadd.f32 %v3424, %v3425
    %v3427 = vrot.slane %v3426, 1
    %v3428 = vadd.f32 %v3426, %v3427
    %v3429 = vsel %vm108, %v3365, 0.0
    %v3430 = vrot.slane %v3429, 4
    %v3431 = vadd.f32 %v3429, %v3430
    %v3432 = vrot.slane %v3431, 2
    %v3433 = vadd.f32 %v3431, %v3432
    %v3434 = vrot.slane %v3433, 1
    %v3435 = vadd.f32 %v3433, %v3434
    %v3436 = vsel %vm108, %v3366, 0.0
    %v3437 = vrot.slane %v3436, 4
    %v3438 = vadd.f32 %v3436, %v3437
    %v3439 = vrot.slane %v3438, 2
    %v3440 = vadd.f32 %v3438, %v3439
    %v3441 = vrot.slane %v3440, 1
    %v3442 = vadd.f32 %v3440, %v3441
    %v3443 = vsel %vm108, %v3367, 0.0
    %v3444 = vrot.slane %v3443, 4
    %v3445 = vadd.f32 %v3443, %v3444
    %v3446 = vrot.slane %v3445, 2
    %v3447 = vadd.f32 %v3445, %v3446
    %v3448 = vrot.slane %v3447, 1
    %v3449 = vadd.f32 %v3447, %v3448
    %v3450 = vsel %vm108, %v3368, 0.0
    %v3451 = vrot.slane %v3450, 4
    %v3452 = vadd.f32 %v3450, %v3451
    %v3453 = vrot.slane %v3452, 2
    %v3454 = vadd.f32 %v3452, %v3453
    %v3455 = vrot.slane %v3454, 1
    %v3456 = vadd.f32 %v3454, %v3455
    %v3457 = vsel %vm108, %v3369, 0.0
    %v3458 = vrot.slane %v3457, 4
    %v3459 = vadd.f32 %v3457, %v3458
    %v3460 = vrot.slane %v3459, 2
    %v3461 = vadd.f32 %v3459, %v3460
    %v3462 = vrot.slane %v3461, 1
    %v3463 = vadd.f32 %v3461, %v3462
    %v3464 = vsel %vm108, %v3370, 0.0
    %v3465 = vrot.slane %v3464, 4
    %v3466 = vadd.f32 %v3464, %v3465
    %v3467 = vrot.slane %v3466, 2
    %v3468 = vadd.f32 %v3466, %v3467
    %v3469 = vrot.slane %v3468, 1
    %v3470 = vadd.f32 %v3468, %v3469
    %v3471 = vsel %vm108, %v3371, 0.0
    %v3472 = vrot.slane %v3471, 4
    %v3473 = vadd.f32 %v3471, %v3472
    %v3474 = vrot.slane %v3473, 2
    %v3475 = vadd.f32 %v3473, %v3474
    %v3476 = vrot.slane %v3475, 1
    %v3477 = vadd.f32 %v3475, %v3476
    %v3478 = vsel %vm108, %v3372, 0.0
    %v3479 = vrot.slane %v3478, 4
    %v3480 = vadd.f32 %v3478, %v3479
    %v3481 = vrot.slane %v3480, 2
    %v3482 = vadd.f32 %v3480, %v3481
    %v3483 = vrot.slane %v3482, 1
    %v3484 = vadd.f32 %v3482, %v3483
    %s3485 = scalar_lea.vmem %s5, 8
    %v3486 = vld [vmem:[%s3485] sm:$0x3f]
    %s3487 = scalar_lea.vmem %s4, 48
    %v3488 = vld [vmem:[%s3487] sm:$0xff]
    %v3489 = vld [vmem:[%s3487 + $0x8] sm:$0xff]
    %v3490 = vld [vmem:[%s3487 + $0x10] sm:$0xff]
    %v3491 = vld [vmem:[%s3487 + $0x18] sm:$0xff]
    %v3492 = vld [vmem:[%s3487 + $0x20] sm:$0xff]
    %v3493 = vld [vmem:[%s3487 + $0x28] sm:$0xff]
    %v3494 = vlaneseq
    %v3495 = vshrl.u32 %v3494, 7
    %v3496 = vsub.s32 0, %v3495
    %v3497 = vrot.slane %v3486, %v3496
    %v3514 = vsel %vm1289, %v3386, %v3379
    %v3515 = vsel %vm1291, %v3393, %v3514
    %v3516 = vsel %vm1293, %v3400, %v3515
    %v3517 = vsel %vm1295, %v3407, %v3516
    %v3518 = vsel %vm1297, %v3414, %v3517
    %v3519 = vsel %vm1299, %v3421, %v3518
    %v3520 = vsel %vm1301, %v3428, %v3519
    %v3521 = vsel %vm1289, %v3442, %v3435
    %v3522 = vsel %vm1291, %v3449, %v3521
    %v3523 = vsel %vm1293, %v3456, %v3522
    %v3524 = vsel %vm1295, %v3463, %v3523
    %v3525 = vsel %vm1297, %v3470, %v3524
    %v3526 = vsel %vm1299, %v3477, %v3525
    %v3527 = vsel %vm1301, %v3484, %v3526
    %v3528 = vsel %vm108, %v3520, 0
    %v3530 = vsel %vm108, %v3527, 0
    %3532 = vmatprep.subr.mxu0 0.0
    %3533 = vmatpush1.msra.mxu0 %v3488
    %3534 = vmatprep.subr.mxu0 0.0
    %3535 = vmatpush1.msra.mxu0 %v3489
    %3536 = vmatprep.subr.mxu0 0.0
    %3537 = vmatpush1.msra.mxu0 %v3490
    %3538 = vmatprep.subr.mxu0 0.0
    %3539 = vmatpush1.msra.mxu0 %v3491
    %3540 = vmatprep.subr.mxu0 0.0
    %3541 = vmatpush1.msra.mxu0 %v3492
    %3542 = vmatprep.subr.mxu0 0.0
    %3543 = vmatpush1.msra.mxu0 %v3493
    %3544 = vmatprep.subr.mxu0 0.0
    %3545 = vmatpush1.msra.mxu0 0.0
    %3546 = vmatprep.subr.mxu0 0.0
    %3547 = vmatpush1.msra.mxu0 0.0
    %3548 = vmatprep.subr.mxu0 0.0
    %3549 = vmatpush1.msra.mxu0 0.0
    %3550 = vmatprep.subr.mxu0 0.0
    %3551 = vmatpush1.msra.mxu0 0.0
    %3552 = vmatprep.subr.mxu0 0.0
    %3553 = vmatpush1.msra.mxu0 0.0
    %3554 = vmatprep.subr.mxu0 0.0
    %3555 = vmatpush1.msra.mxu0 0.0
    %3556 = vmatprep.subr.mxu0 0.0
    %3557 = vmatpush1.msra.mxu0 0.0
    %3558 = vmatprep.subr.mxu0 0.0
    %3559 = vmatpush1.msra.mxu0 0.0
    %3560 = vmatprep.subr.mxu0 0.0
    %3561 = vmatpush1.msra.mxu0 0.0
    %3562 = vmatprep.subr.mxu0 0.0
    %3563 = vmatpush1.msra.mxu0 0.0
    %3564 = vmatprep.subr.mxu0 0.0
    %3565 = vmatpush1.msra.mxu0 0.0
    %3566 = vmatprep.subr.mxu0 0.0
    %3567 = vmatpush1.msra.mxu0 0.0
    %3568 = vmatprep.subr.mxu0 0.0
    %3569 = vmatpush1.msra.mxu0 0.0
    %3570 = vmatprep.subr.mxu0 0.0
    %3571 = vmatpush1.msra.mxu0 0.0
    %3572 = vmatprep.subr.mxu0 0.0
    %3573 = vmatpush1.msra.mxu0 0.0
    %3574 = vmatprep.subr.mxu0 0.0
    %3575 = vmatpush1.msra.mxu0 0.0
    %3576 = vmatprep.subr.mxu0 0.0
    %3577 = vmatpush1.msra.mxu0 0.0
    %3578 = vmatprep.subr.mxu0 0.0
    %3579 = vmatpush1.msra.mxu0 0.0
    %3580 = vmatprep.subr.mxu0 0.0
    %3581 = vmatpush1.msra.mxu0 0.0
    %3582 = vmatprep.subr.mxu0 0.0
    %3583 = vmatpush1.msra.mxu0 0.0
    %3584 = vmatprep.subr.mxu0 0.0
    %3585 = vmatpush1.msra.mxu0 0.0
    %3586 = vmatprep.subr.mxu0 0.0
    %3587 = vmatpush1.msra.mxu0 0.0
    %3588 = vmatprep.subr.mxu0 0.0
    %3589 = vmatpush1.msra.mxu0 0.0
    %3590 = vmatprep.subr.mxu0 0.0
    %3591 = vmatpush1.msra.mxu0 0.0
    %3592 = vmatprep.subr.mxu0 0.0
    %3593 = vmatpush1.msra.mxu0 0.0
    %3594 = vmatprep.subr.mxu0 0.0
    %3595 = vmatpush1.msra.mxu0 0.0
    %3596 = vmatprep.mubr.f32.mxu0 0.0
    %3597 = vmatmul.mubr.f32.gmra.mrb[0].mxu0 %v3528
    %v3598 = vpop.f32.mrb[0].mxu0
    %v3599 = vadd.f32 %v3497, %v3598
    %v3600 = vpop.f32.mrb[0].mxu0
    %3601 = vmatprep.mubr.f32.mxu0 0.0
    %3602 = vmatmul.mubr.f32.gmra.mrb[0].mxu0 %v3530
    %v3603 = vpop.f32.mrb[0].mxu0
    %v3604 = vadd.f32 %v3497, %v3603
    %v3605 = vpop.f32.mrb[0].mxu0
    %3606 = vdwg.mxu0
    %v3607 = vadd.f32 %v2320, %v3599
    %v3608 = vadd.f32 %v2321, %v3604
    %v3609 = vsel %vm108, %v3607, 0.0
    %3610 = vadd.xlane.f32.xlu0 %v3609
    %v3611 = vpop.xlane.xlu0 %3610
    %v3612 = vsel %vm108, %v3608, 0.0
    %3613 = vadd.xlane.f32.xlu0 %v3612
    %v3614 = vpop.xlane.xlu0 %3613
    %v3615 = vmul.f32 %v3611, %v1397
    %v3616 = vmul.f32 %v3614, %v1397
    %v3617 = vsub.f32 %v3607, %v3615
    %v3618 = vsub.f32 %v3608, %v3616
    %v3619 = vmul.f32 %v3617, %v3617
    %v3620 = vmul.f32 %v3618, %v3618
    %v3621 = vsel %vm108, %v3619, 0.0
    %3622 = vadd.xlane.f32.xlu0 %v3621
    %v3623 = vpop.xlane.xlu0 %3622
    %v3624 = vsel %vm108, %v3620, 0.0
    %3625 = vadd.xlane.f32.xlu0 %v3624
    %v3626 = vpop.xlane.xlu0 %3625
    %v3627 = vmul.f32 %v3623, %v1397
    %v3628 = vmul.f32 %v3626, %v1397
    %v3629 = vadd.f32 %v3627, 1e-05
    %v3630 = vadd.f32 %v3628, 1e-05
    %v3631 = vrsqrt.pop %v3629
    %v3632 = vrsqrt.pop %v3630
    %v3633 = vmul.f32 %v3617, %v3631
    %v3634 = vmul.f32 %v3618, %v3632
    %v3635 = vlaneseq
    %v3636 = vshrl.u32 %v3635, 7
    %v3637 = vsub.s32 1, %v3636
    %v3638 = vrot.slane %v3486, %v3637
    %v3639 = vmul.f32 %v3633, %v3638
    %v3640 = vmul.f32 %v3634, %v3638
    %v3641 = vlaneseq
    %v3642 = vshrl.u32 %v3641, 7
    %v3643 = vsub.s32 2, %v3642
    %v3644 = vrot.slane %v3486, %v3643
    %v3645 = vadd.f32 %v3639, %v3644
    %v3646 = vadd.f32 %v3640, %v3644
    %s3647 = scalar_lea.vmem %s6, 384
    %v3648 = vld [vmem:[%s3647] sm:$0xff]
    %v3649 = vld [vmem:[%s3647 + $0x8] sm:$0xff]
    %v3650 = vld [vmem:[%s3647 + $0x10] sm:$0xff]
    %v3651 = vld [vmem:[%s3647 + $0x18] sm:$0xff]
    %v3652 = vld [vmem:[%s3647 + $0x20] sm:$0xff]
    %v3653 = vld [vmem:[%s3647 + $0x28] sm:$0xff]
    %v3654 = vld [vmem:[%s3647 + $0x30] sm:$0xff]
    %v3655 = vld [vmem:[%s3647 + $0x38] sm:$0xff]
    %v3656 = vld [vmem:[%s3647 + $0x40] sm:$0xff]
    %v3657 = vld [vmem:[%s3647 + $0x48] sm:$0xff]
    %v3658 = vld [vmem:[%s3647 + $0x50] sm:$0xff]
    %v3659 = vld [vmem:[%s3647 + $0x58] sm:$0xff]
    %v3660 = vld [vmem:[%s3647 + $0x60] sm:$0xff]
    %v3661 = vld [vmem:[%s3647 + $0x68] sm:$0xff]
    %v3662 = vld [vmem:[%s3647 + $0x70] sm:$0xff]
    %v3663 = vld [vmem:[%s3647 + $0x78] sm:$0xff]
    %v3664 = vld [vmem:[%s3647 + $0x80] sm:$0xff]
    %v3665 = vld [vmem:[%s3647 + $0x88] sm:$0xff]
    %v3666 = vld [vmem:[%s3647 + $0x90] sm:$0xff]
    %v3667 = vld [vmem:[%s3647 + $0x98] sm:$0xff]
    %v3668 = vld [vmem:[%s3647 + $0xa0] sm:$0xff]
    %v3669 = vld [vmem:[%s3647 + $0xa8] sm:$0xff]
    %v3670 = vld [vmem:[%s3647 + $0xb0] sm:$0xff]
    %v3671 = vld [vmem:[%s3647 + $0xb8] sm:$0xff]
    %v3672 = vld [vmem:[%s3647 + $0xc0] sm:$0xff]
    %v3673 = vld [vmem:[%s3647 + $0xc8] sm:$0xff]
    %v3674 = vld [vmem:[%s3647 + $0xd0] sm:$0xff]
    %v3675 = vld [vmem:[%s3647 + $0xd8] sm:$0xff]
    %v3676 = vld [vmem:[%s3647 + $0xe0] sm:$0xff]
    %v3677 = vld [vmem:[%s3647 + $0xe8] sm:$0xff]
    %v3678 = vld [vmem:[%s3647 + $0xf0] sm:$0xff]
    %v3679 = vld [vmem:[%s3647 + $0xf8] sm:$0xff]
    %v3680 = vld [vmem:[%s3647 + $0x100] sm:$0xff]
    %v3681 = vld [vmem:[%s3647 + $0x108] sm:$0xff]
    %v3682 = vld [vmem:[%s3647 + $0x110] sm:$0xff]
    %v3683 = vld [vmem:[%s3647 + $0x118] sm:$0xff]
    %v3684 = vld [vmem:[%s3647 + $0x120] sm:$0xff]
    %v3685 = vld [vmem:[%s3647 + $0x128] sm:$0xff]
    %v3686 = vld [vmem:[%s3647 + $0x130] sm:$0xff]
    %v3687 = vld [vmem:[%s3647 + $0x138] sm:$0xff]
    %v3688 = vld [vmem:[%s3647 + $0x140] sm:$0xff]
    %v3689 = vld [vmem:[%s3647 + $0x148] sm:$0xff]
    %v3690 = vld [vmem:[%s3647 + $0x150] sm:$0xff]
    %v3691 = vld [vmem:[%s3647 + $0x158] sm:$0xff]
    %v3692 = vld [vmem:[%s3647 + $0x160] sm:$0xff]
    %v3693 = vld [vmem:[%s3647 + $0x168] sm:$0xff]
    %v3694 = vld [vmem:[%s3647 + $0x170] sm:$0xff]
    %v3695 = vld [vmem:[%s3647 + $0x178] sm:$0xff]
    %s3696 = scalar_lea.vmem %s7, 8
    %v3697 = vld [vmem:[%s3696] sm:$0xff]
    %v3699 = vlaneseq
    %v3700 = vshrl.u32 %v3699, 7
    %v3701 = vsub.s32 0, %v3700
    %v3702 = vrot.slane %v3697, %v3701
    %v3703 = vlaneseq
    %v3704 = vshrl.u32 %v3703, 7
    %v3705 = vsub.s32 1, %v3704
    %v3706 = vrot.slane %v3697, %v3705
    %v3707 = vlaneseq
    %v3708 = vshrl.u32 %v3707, 7
    %v3709 = vsub.s32 2, %v3708
    %v3710 = vrot.slane %v3697, %v3709
    %v3711 = vlaneseq
    %v3712 = vshrl.u32 %v3711, 7
    %v3713 = vsub.s32 3, %v3712
    %v3714 = vrot.slane %v3697, %v3713
    %v3715 = vlaneseq
    %v3716 = vshrl.u32 %v3715, 7
    %v3717 = vsub.s32 4, %v3716
    %v3718 = vrot.slane %v3697, %v3717
    %v3719 = vlaneseq
    %v3720 = vshrl.u32 %v3719, 7
    %v3721 = vsub.s32 5, %v3720
    %v3722 = vrot.slane %v3697, %v3721
    %v3723 = vlaneseq
    %v3724 = vshrl.u32 %v3723, 7
    %v3725 = vsub.s32 6, %v3724
    %v3726 = vrot.slane %v3697, %v3725
    %v3727 = vlaneseq
    %v3728 = vshrl.u32 %v3727, 7
    %v3729 = vsub.s32 7, %v3728
    %v3730 = vrot.slane %v3697, %v3729
    %v3740 = vsel %vm108, %v3645, 0
    %v3743 = vsel %vm108, %v3646, 0
    %3745 = vmatprep.subr.mxu0 %v3649
    %3746 = vmatpush1.msra.mxu0 %v3648
    %3747 = vmatprep.subr.mxu0 %v3657
    %3748 = vmatpush1.msra.mxu0 %v3656
    %3749 = vmatprep.subr.mxu0 %v3665
    %3750 = vmatpush1.msra.mxu0 %v3664
    %3751 = vmatprep.subr.mxu0 %v3673
    %3752 = vmatpush1.msra.mxu0 %v3672
    %3753 = vmatprep.subr.mxu0 %v3681
    %3754 = vmatpush1.msra.mxu0 %v3680
    %3755 = vmatprep.subr.mxu0 %v3689
    %3756 = vmatpush1.msra.mxu0 %v3688
    %3757 = vmatprep.subr.mxu0 0.0
    %3758 = vmatpush1.msra.mxu0 0.0
    %3759 = vmatprep.subr.mxu0 0.0
    %3760 = vmatpush1.msra.mxu0 0.0
    %3761 = vmatprep.subr.mxu0 0.0
    %3762 = vmatpush1.msra.mxu0 0.0
    %3763 = vmatprep.subr.mxu0 0.0
    %3764 = vmatpush1.msra.mxu0 0.0
    %3765 = vmatprep.subr.mxu0 0.0
    %3766 = vmatpush1.msra.mxu0 0.0
    %3767 = vmatprep.subr.mxu0 0.0
    %3768 = vmatpush1.msra.mxu0 0.0
    %3769 = vmatprep.subr.mxu0 0.0
    %3770 = vmatpush1.msra.mxu0 0.0
    %3771 = vmatprep.subr.mxu0 0.0
    %3772 = vmatpush1.msra.mxu0 0.0
    %3773 = vmatprep.subr.mxu0 0.0
    %3774 = vmatpush1.msra.mxu0 0.0
    %3775 = vmatprep.subr.mxu0 0.0
    %3776 = vmatpush1.msra.mxu0 0.0
    %3777 = vmatprep.subr.mxu0 0.0
    %3778 = vmatpush1.msra.mxu0 0.0
    %3779 = vmatprep.subr.mxu0 0.0
    %3780 = vmatpush1.msra.mxu0 0.0
    %3781 = vmatprep.subr.mxu0 0.0
    %3782 = vmatpush1.msra.mxu0 0.0
    %3783 = vmatprep.subr.mxu0 0.0
    %3784 = vmatpush1.msra.mxu0 0.0
    %3785 = vmatprep.subr.mxu0 0.0
    %3786 = vmatpush1.msra.mxu0 0.0
    %3787 = vmatprep.subr.mxu0 0.0
    %3788 = vmatpush1.msra.mxu0 0.0
    %3789 = vmatprep.subr.mxu0 0.0
    %3790 = vmatpush1.msra.mxu0 0.0
    %3791 = vmatprep.subr.mxu0 0.0
    %3792 = vmatpush1.msra.mxu0 0.0
    %3793 = vmatprep.subr.mxu0 0.0
    %3794 = vmatpush1.msra.mxu0 0.0
    %3795 = vmatprep.subr.mxu0 0.0
    %3796 = vmatpush1.msra.mxu0 0.0
    %3797 = vmatprep.subr.mxu0 0.0
    %3798 = vmatpush1.msra.mxu0 0.0
    %3799 = vmatprep.subr.mxu0 0.0
    %3800 = vmatpush1.msra.mxu0 0.0
    %3801 = vmatprep.subr.mxu0 0.0
    %3802 = vmatpush1.msra.mxu0 0.0
    %3803 = vmatprep.subr.mxu0 0.0
    %3804 = vmatpush1.msra.mxu0 0.0
    %3805 = vmatprep.subr.mxu0 0.0
    %3806 = vmatpush1.msra.mxu0 0.0
    %3807 = vmatprep.subr.mxu0 0.0
    %3808 = vmatpush1.msra.mxu0 0.0
    %3809 = vmatprep.mubr.f32.mxu0 0.0
    %3810 = vmatmul.mubr.f32.gmra.mrb[0].mxu0 %v3740
    %v3811 = vpop.f32.mrb[0].mxu0
    %v3812 = vadd.f32 %v3702, %v3811
    %v3813 = vpop.f32.mrb[0].mxu0
    %v3814 = vadd.f32 %v3706, %v3813
    %3815 = vmatprep.mubr.f32.mxu0 0.0
    %3816 = vmatmul.mubr.f32.gmra.mrb[0].mxu0 %v3743
    %v3817 = vpop.f32.mrb[0].mxu0
    %v3818 = vadd.f32 %v3702, %v3817
    %v3819 = vpop.f32.mrb[0].mxu0
    %v3820 = vadd.f32 %v3706, %v3819
    %3821 = vdwg.mxu0
    %3822 = vmatprep.subr.mxu0 %v3651
    %3823 = vmatpush1.msra.mxu0 %v3650
    %3824 = vmatprep.subr.mxu0 %v3659
    %3825 = vmatpush1.msra.mxu0 %v3658
    %3826 = vmatprep.subr.mxu0 %v3667
    %3827 = vmatpush1.msra.mxu0 %v3666
    %3828 = vmatprep.subr.mxu0 %v3675
    %3829 = vmatpush1.msra.mxu0 %v3674
    %3830 = vmatprep.subr.mxu0 %v3683
    %3831 = vmatpush1.msra.mxu0 %v3682
    %3832 = vmatprep.subr.mxu0 %v3691
    %3833 = vmatpush1.msra.mxu0 %v3690
    %3834 = vmatprep.subr.mxu0 0.0
    %3835 = vmatpush1.msra.mxu0 0.0
    %3836 = vmatprep.subr.mxu0 0.0
    %3837 = vmatpush1.msra.mxu0 0.0
    %3838 = vmatprep.subr.mxu0 0.0
    %3839 = vmatpush1.msra.mxu0 0.0
    %3840 = vmatprep.subr.mxu0 0.0
    %3841 = vmatpush1.msra.mxu0 0.0
    %3842 = vmatprep.subr.mxu0 0.0
    %3843 = vmatpush1.msra.mxu0 0.0
    %3844 = vmatprep.subr.mxu0 0.0
    %3845 = vmatpush1.msra.mxu0 0.0
    %3846 = vmatprep.subr.mxu0 0.0
    %3847 = vmatpush1.msra.mxu0 0.0
    %3848 = vmatprep.subr.mxu0 0.0
    %3849 = vmatpush1.msra.mxu0 0.0
    %3850 = vmatprep.subr.mxu0 0.0
    %3851 = vmatpush1.msra.mxu0 0.0
    %3852 = vmatprep.subr.mxu0 0.0
    %3853 = vmatpush1.msra.mxu0 0.0
    %3854 = vmatprep.subr.mxu0 0.0
    %3855 = vmatpush1.msra.mxu0 0.0
    %3856 = vmatprep.subr.mxu0 0.0
    %3857 = vmatpush1.msra.mxu0 0.0
    %3858 = vmatprep.subr.mxu0 0.0
    %3859 = vmatpush1.msra.mxu0 0.0
    %3860 = vmatprep.subr.mxu0 0.0
    %3861 = vmatpush1.msra.mxu0 0.0
    %3862 = vmatprep.subr.mxu0 0.0
    %3863 = vmatpush1.msra.mxu0 0.0
    %3864 = vmatprep.subr.mxu0 0.0
    %3865 = vmatpush1.msra.mxu0 0.0
    %3866 = vmatprep.subr.mxu0 0.0
    %3867 = vmatpush1.msra.mxu0 0.0
    %3868 = vmatprep.subr.mxu0 0.0
    %3869 = vmatpush1.msra.mxu0 0.0
    %3870 = vmatprep.subr.mxu0 0.0
    %3871 = vmatpush1.msra.mxu0 0.0
    %3872 = vmatprep.subr.mxu0 0.0
    %3873 = vmatpush1.msra.mxu0 0.0
    %3874 = vmatprep.subr.mxu0 0.0
    %3875 = vmatpush1.msra.mxu0 0.0
    %3876 = vmatprep.subr.mxu0 0.0
    %3877 = vmatpush1.msra.mxu0 0.0
    %3878 = vmatprep.subr.mxu0 0.0
    %3879 = vmatpush1.msra.mxu0 0.0
    %3880 = vmatprep.subr.mxu0 0.0
    %3881 = vmatpush1.msra.mxu0 0.0
    %3882 = vmatprep.subr.mxu0 0.0
    %3883 = vmatpush1.msra.mxu0 0.0
    %3884 = vmatprep.subr.mxu0 0.0
    %3885 = vmatpush1.msra.mxu0 0.0
    %3886 = vmatprep.mubr.f32.mxu0 0.0
    %3887 = vmatmul.mubr.f32.gmra.mrb[0].mxu0 %v3740
    %v3888 = vpop.f32.mrb[0].mxu0
    %v3889 = vadd.f32 %v3710, %v3888
    %v3890 = vpop.f32.mrb[0].mxu0
    %v3891 = vadd.f32 %v3714, %v3890
    %3892 = vmatprep.mubr.f32.mxu0 0.0
    %3893 = vmatmul.mubr.f32.gmra.mrb[0].mxu0 %v3743
    %v3894 = vpop.f32.mrb[0].mxu0
    %v3895 = vadd.f32 %v3710, %v3894
    %v3896 = vpop.f32.mrb[0].mxu0
    %v3897 = vadd.f32 %v3714, %v3896
    %3898 = vdwg.mxu0
    %3899 = vmatprep.subr.mxu0 %v3653
    %3900 = vmatpush1.msra.mxu0 %v3652
    %3901 = vmatprep.subr.mxu0 %v3661
    %3902 = vmatpush1.msra.mxu0 %v3660
    %3903 = vmatprep.subr.mxu0 %v3669
    %3904 = vmatpush1.msra.mxu0 %v3668
    %3905 = vmatprep.subr.mxu0 %v3677
    %3906 = vmatpush1.msra.mxu0 %v3676
    %3907 = vmatprep.subr.mxu0 %v3685
    %3908 = vmatpush1.msra.mxu0 %v3684
    %3909 = vmatprep.subr.mxu0 %v3693
    %3910 = vmatpush1.msra.mxu0 %v3692
    %3911 = vmatprep.subr.mxu0 0.0
    %3912 = vmatpush1.msra.mxu0 0.0
    %3913 = vmatprep.subr.mxu0 0.0
    %3914 = vmatpush1.msra.mxu0 0.0
    %3915 = vmatprep.subr.mxu0 0.0
    %3916 = vmatpush1.msra.mxu0 0.0
    %3917 = vmatprep.subr.mxu0 0.0
    %3918 = vmatpush1.msra.mxu0 0.0
    %3919 = vmatprep.subr.mxu0 0.0
    %3920 = vmatpush1.msra.mxu0 0.0
    %3921 = vmatprep.subr.mxu0 0.0
    %3922 = vmatpush1.msra.mxu0 0.0
    %3923 = vmatprep.subr.mxu0 0.0
    %3924 = vmatpush1.msra.mxu0 0.0
    %3925 = vmatprep.subr.mxu0 0.0
    %3926 = vmatpush1.msra.mxu0 0.0
    %3927 = vmatprep.subr.mxu0 0.0
    %3928 = vmatpush1.msra.mxu0 0.0
    %3929 = vmatprep.subr.mxu0 0.0
    %3930 = vmatpush1.msra.mxu0 0.0
    %3931 = vmatprep.subr.mxu0 0.0
    %3932 = vmatpush1.msra.mxu0 0.0
    %3933 = vmatprep.subr.mxu0 0.0
    %3934 = vmatpush1.msra.mxu0 0.0
    %3935 = vmatprep.subr.mxu0 0.0
    %3936 = vmatpush1.msra.mxu0 0.0
    %3937 = vmatprep.subr.mxu0 0.0
    %3938 = vmatpush1.msra.mxu0 0.0
    %3939 = vmatprep.subr.mxu0 0.0
    %3940 = vmatpush1.msra.mxu0 0.0
    %3941 = vmatprep.subr.mxu0 0.0
    %3942 = vmatpush1.msra.mxu0 0.0
    %3943 = vmatprep.subr.mxu0 0.0
    %3944 = vmatpush1.msra.mxu0 0.0
    %3945 = vmatprep.subr.mxu0 0.0
    %3946 = vmatpush1.msra.mxu0 0.0
    %3947 = vmatprep.subr.mxu0 0.0
    %3948 = vmatpush1.msra.mxu0 0.0
    %3949 = vmatprep.subr.mxu0 0.0
    %3950 = vmatpush1.msra.mxu0 0.0
    %3951 = vmatprep.subr.mxu0 0.0
    %3952 = vmatpush1.msra.mxu0 0.0
    %3953 = vmatprep.subr.mxu0 0.0
    %3954 = vmatpush1.msra.mxu0 0.0
    %3955 = vmatprep.subr.mxu0 0.0
    %3956 = vmatpush1.msra.mxu0 0.0
    %3957 = vmatprep.subr.mxu0 0.0
    %3958 = vmatpush1.msra.mxu0 0.0
    %3959 = vmatprep.subr.mxu0 0.0
    %3960 = vmatpush1.msra.mxu0 0.0
    %3961 = vmatprep.subr.mxu0 0.0
    %3962 = vmatpush1.msra.mxu0 0.0
    %3963 = vmatprep.mubr.f32.mxu0 0.0
    %3964 = vmatmul.mubr.f32.gmra.mrb[0].mxu0 %v3740
    %v3965 = vpop.f32.mrb[0].mxu0
    %v3966 = vadd.f32 %v3718, %v3965
    %v3967 = vpop.f32.mrb[0].mxu0
    %v3968 = vadd.f32 %v3722, %v3967
    %3969 = vmatprep.mubr.f32.mxu0 0.0
    %3970 = vmatmul.mubr.f32.gmra.mrb[0].mxu0 %v3743
    %v3971 = vpop.f32.mrb[0].mxu0
    %v3972 = vadd.f32 %v3718, %v3971
    %v3973 = vpop.f32.mrb[0].mxu0
    %v3974 = vadd.f32 %v3722, %v3973
    %3975 = vdwg.mxu0
    %3976 = vmatprep.subr.mxu0 %v3655
    %3977 = vmatpush1.msra.mxu0 %v3654
    %3978 = vmatprep.subr.mxu0 %v3663
    %3979 = vmatpush1.msra.mxu0 %v3662
    %3980 = vmatprep.subr.mxu0 %v3671
    %3981 = vmatpush1.msra.mxu0 %v3670
    %3982 = vmatprep.subr.mxu0 %v3679
    %3983 = vmatpush1.msra.mxu0 %v3678
    %3984 = vmatprep.subr.mxu0 %v3687
    %3985 = vmatpush1.msra.mxu0 %v3686
    %3986 = vmatprep.subr.mxu0 %v3695
    %3987 = vmatpush1.msra.mxu0 %v3694
    %3988 = vmatprep.subr.mxu0 0.0
    %3989 = vmatpush1.msra.mxu0 0.0
    %3990 = vmatprep.subr.mxu0 0.0
    %3991 = vmatpush1.msra.mxu0 0.0
    %3992 = vmatprep.subr.mxu0 0.0
    %3993 = vmatpush1.msra.mxu0 0.0
    %3994 = vmatprep.subr.mxu0 0.0
    %3995 = vmatpush1.msra.mxu0 0.0
    %3996 = vmatprep.subr.mxu0 0.0
    %3997 = vmatpush1.msra.mxu0 0.0
    %3998 = vmatprep.subr.mxu0 0.0
    %3999 = vmatpush1.msra.mxu0 0.0
    %4000 = vmatprep.subr.mxu0 0.0
    %4001 = vmatpush1.msra.mxu0 0.0
    %4002 = vmatprep.subr.mxu0 0.0
    %4003 = vmatpush1.msra.mxu0 0.0
    %4004 = vmatprep.subr.mxu0 0.0
    %4005 = vmatpush1.msra.mxu0 0.0
    %4006 = vmatprep.subr.mxu0 0.0
    %4007 = vmatpush1.msra.mxu0 0.0
    %4008 = vmatprep.subr.mxu0 0.0
    %4009 = vmatpush1.msra.mxu0 0.0
    %4010 = vmatprep.subr.mxu0 0.0
    %4011 = vmatpush1.msra.mxu0 0.0
    %4012 = vmatprep.subr.mxu0 0.0
    %4013 = vmatpush1.msra.mxu0 0.0
    %4014 = vmatprep.subr.mxu0 0.0
    %4015 = vmatpush1.msra.mxu0 0.0
    %4016 = vmatprep.subr.mxu0 0.0
    %4017 = vmatpush1.msra.mxu0 0.0
    %4018 = vmatprep.subr.mxu0 0.0
    %4019 = vmatpush1.msra.mxu0 0.0
    %4020 = vmatprep.subr.mxu0 0.0
    %4021 = vmatpush1.msra.mxu0 0.0
    %4022 = vmatprep.subr.mxu0 0.0
    %4023 = vmatpush1.msra.mxu0 0.0
    %4024 = vmatprep.subr.mxu0 0.0
    %4025 = vmatpush1.msra.mxu0 0.0
    %4026 = vmatprep.subr.mxu0 0.0
    %4027 = vmatpush1.msra.mxu0 0.0
    %4028 = vmatprep.subr.mxu0 0.0
    %4029 = vmatpush1.msra.mxu0 0.0
    %4030 = vmatprep.subr.mxu0 0.0
    %4031 = vmatpush1.msra.mxu0 0.0
    %4032 = vmatprep.subr.mxu0 0.0
    %4033 = vmatpush1.msra.mxu0 0.0
    %4034 = vmatprep.subr.mxu0 0.0
    %4035 = vmatpush1.msra.mxu0 0.0
    %4036 = vmatprep.subr.mxu0 0.0
    %4037 = vmatpush1.msra.mxu0 0.0
    %4038 = vmatprep.subr.mxu0 0.0
    %4039 = vmatpush1.msra.mxu0 0.0
    %4040 = vmatprep.mubr.f32.mxu0 0.0
    %4041 = vmatmul.mubr.f32.gmra.mrb[0].mxu0 %v3740
    %v4042 = vpop.f32.mrb[0].mxu0
    %v4043 = vadd.f32 %v3726, %v4042
    %v4044 = vpop.f32.mrb[0].mxu0
    %v4045 = vadd.f32 %v3730, %v4044
    %4046 = vmatprep.mubr.f32.mxu0 0.0
    %4047 = vmatmul.mubr.f32.gmra.mrb[0].mxu0 %v3743
    %v4048 = vpop.f32.mrb[0].mxu0
    %v4049 = vadd.f32 %v3726, %v4048
    %v4050 = vpop.f32.mrb[0].mxu0
    %v4051 = vadd.f32 %v3730, %v4050
    %4052 = vdwg.mxu0
    %v4053 = vmax.f32 %v3812, 0.0
    %v4054 = vmax.f32 %v3814, 0.0
    %v4055 = vmax.f32 %v3889, 0.0
    %v4056 = vmax.f32 %v3891, 0.0
    %v4057 = vmax.f32 %v3966, 0.0
    %v4058 = vmax.f32 %v3968, 0.0
    %v4059 = vmax.f32 %v4043, 0.0
    %v4060 = vmax.f32 %v4045, 0.0
    %v4061 = vmax.f32 %v3818, 0.0
    %v4062 = vmax.f32 %v3820, 0.0
    %v4063 = vmax.f32 %v3895, 0.0
    %v4064 = vmax.f32 %v3897, 0.0
    %v4065 = vmax.f32 %v3972, 0.0
    %v4066 = vmax.f32 %v3974, 0.0
    %v4067 = vmax.f32 %v4049, 0.0
    %v4068 = vmax.f32 %v4051, 0.0
    %s4069 = scalar_lea.vmem %s8, 1024
    %v4070 = vld [vmem:[%s4069] sm:$0xff]
    %v4071 = vld [vmem:[%s4069 + $0x8] sm:$0xff]
    %v4072 = vld [vmem:[%s4069 + $0x10] sm:$0xff]
    %v4073 = vld [vmem:[%s4069 + $0x18] sm:$0xff]
    %v4074 = vld [vmem:[%s4069 + $0x20] sm:$0xff]
    %v4075 = vld [vmem:[%s4069 + $0x28] sm:$0xff]
    %v4076 = vld [vmem:[%s4069 + $0x30] sm:$0xff]
    %v4077 = vld [vmem:[%s4069 + $0x38] sm:$0xff]
    %v4078 = vld [vmem:[%s4069 + $0x40] sm:$0xff]
    %v4079 = vld [vmem:[%s4069 + $0x48] sm:$0xff]
    %v4080 = vld [vmem:[%s4069 + $0x50] sm:$0xff]
    %v4081 = vld [vmem:[%s4069 + $0x58] sm:$0xff]
    %v4082 = vld [vmem:[%s4069 + $0x60] sm:$0xff]
    %v4083 = vld [vmem:[%s4069 + $0x68] sm:$0xff]
    %v4084 = vld [vmem:[%s4069 + $0x70] sm:$0xff]
    %v4085 = vld [vmem:[%s4069 + $0x78] sm:$0xff]
    %v4086 = vld [vmem:[%s4069 + $0x80] sm:$0xff]
    %v4087 = vld [vmem:[%s4069 + $0x88] sm:$0xff]
    %v4088 = vld [vmem:[%s4069 + $0x90] sm:$0xff]
    %v4089 = vld [vmem:[%s4069 + $0x98] sm:$0xff]
    %v4090 = vld [vmem:[%s4069 + $0xa0] sm:$0xff]
    %v4091 = vld [vmem:[%s4069 + $0xa8] sm:$0xff]
    %v4092 = vld [vmem:[%s4069 + $0xb0] sm:$0xff]
    %v4093 = vld [vmem:[%s4069 + $0xb8] sm:$0xff]
    %v4094 = vld [vmem:[%s4069 + $0xc0] sm:$0xff]
    %v4095 = vld [vmem:[%s4069 + $0xc8] sm:$0xff]
    %v4096 = vld [vmem:[%s4069 + $0xd0] sm:$0xff]
    %v4097 = vld [vmem:[%s4069 + $0xd8] sm:$0xff]
    %v4098 = vld [vmem:[%s4069 + $0xe0] sm:$0xff]
    %v4099 = vld [vmem:[%s4069 + $0xe8] sm:$0xff]
    %v4100 = vld [vmem:[%s4069 + $0xf0] sm:$0xff]
    %v4101 = vld [vmem:[%s4069 + $0xf8] sm:$0xff]
    %v4102 = vld [vmem:[%s4069 + $0x100] sm:$0xff]
    %v4103 = vld [vmem:[%s4069 + $0x108] sm:$0xff]
    %v4104 = vld [vmem:[%s4069 + $0x110] sm:$0xff]
    %v4105 = vld [vmem:[%s4069 + $0x118] sm:$0xff]
    %v4106 = vld [vmem:[%s4069 + $0x120] sm:$0xff]
    %v4107 = vld [vmem:[%s4069 + $0x128] sm:$0xff]
    %v4108 = vld [vmem:[%s4069 + $0x130] sm:$0xff]
    %v4109 = vld [vmem:[%s4069 + $0x138] sm:$0xff]
    %v4110 = vld [vmem:[%s4069 + $0x140] sm:$0xff]
    %v4111 = vld [vmem:[%s4069 + $0x148] sm:$0xff]
    %v4112 = vld [vmem:[%s4069 + $0x150] sm:$0xff]
    %v4113 = vld [vmem:[%s4069 + $0x158] sm:$0xff]
    %v4114 = vld [vmem:[%s4069 + $0x160] sm:$0xff]
    %v4115 = vld [vmem:[%s4069 + $0x168] sm:$0xff]
    %v4116 = vld [vmem:[%s4069 + $0x170] sm:$0xff]
    %v4117 = vld [vmem:[%s4069 + $0x178] sm:$0xff]
    %v4118 = vld [vmem:[%s4069 + $0x180] sm:$0xff]
    %v4119 = vld [vmem:[%s4069 + $0x188] sm:$0xff]
    %v4120 = vld [vmem:[%s4069 + $0x190] sm:$0xff]
    %v4121 = vld [vmem:[%s4069 + $0x198] sm:$0xff]
    %v4122 = vld [vmem:[%s4069 + $0x1a0] sm:$0xff]
    %v4123 = vld [vmem:[%s4069 + $0x1a8] sm:$0xff]
    %v4124 = vld [vmem:[%s4069 + $0x1b0] sm:$0xff]
    %v4125 = vld [vmem:[%s4069 + $0x1b8] sm:$0xff]
    %v4126 = vld [vmem:[%s4069 + $0x1c0] sm:$0xff]
    %v4127 = vld [vmem:[%s4069 + $0x1c8] sm:$0xff]
    %v4128 = vld [vmem:[%s4069 + $0x1d0] sm:$0xff]
    %v4129 = vld [vmem:[%s4069 + $0x1d8] sm:$0xff]
    %v4130 = vld [vmem:[%s4069 + $0x1e0] sm:$0xff]
    %v4131 = vld [vmem:[%s4069 + $0x1e8] sm:$0xff]
    %v4132 = vld [vmem:[%s4069 + $0x1f0] sm:$0xff]
    %v4133 = vld [vmem:[%s4069 + $0x1f8] sm:$0xff]
    %v4134 = vld [vmem:[%s4069 + $0x200] sm:$0xff]
    %v4135 = vld [vmem:[%s4069 + $0x208] sm:$0xff]
    %v4136 = vld [vmem:[%s4069 + $0x210] sm:$0xff]
    %v4137 = vld [vmem:[%s4069 + $0x218] sm:$0xff]
    %v4138 = vld [vmem:[%s4069 + $0x220] sm:$0xff]
    %v4139 = vld [vmem:[%s4069 + $0x228] sm:$0xff]
    %v4140 = vld [vmem:[%s4069 + $0x230] sm:$0xff]
    %v4141 = vld [vmem:[%s4069 + $0x238] sm:$0xff]
    %v4142 = vld [vmem:[%s4069 + $0x240] sm:$0xff]
    %v4143 = vld [vmem:[%s4069 + $0x248] sm:$0xff]
    %v4144 = vld [vmem:[%s4069 + $0x250] sm:$0xff]
    %v4145 = vld [vmem:[%s4069 + $0x258] sm:$0xff]
    %v4146 = vld [vmem:[%s4069 + $0x260] sm:$0xff]
    %v4147 = vld [vmem:[%s4069 + $0x268] sm:$0xff]
    %v4148 = vld [vmem:[%s4069 + $0x270] sm:$0xff]
    %v4149 = vld [vmem:[%s4069 + $0x278] sm:$0xff]
    %v4150 = vld [vmem:[%s4069 + $0x280] sm:$0xff]
    %v4151 = vld [vmem:[%s4069 + $0x288] sm:$0xff]
    %v4152 = vld [vmem:[%s4069 + $0x290] sm:$0xff]
    %v4153 = vld [vmem:[%s4069 + $0x298] sm:$0xff]
    %v4154 = vld [vmem:[%s4069 + $0x2a0] sm:$0xff]
    %v4155 = vld [vmem:[%s4069 + $0x2a8] sm:$0xff]
    %v4156 = vld [vmem:[%s4069 + $0x2b0] sm:$0xff]
    %v4157 = vld [vmem:[%s4069 + $0x2b8] sm:$0xff]
    %v4158 = vld [vmem:[%s4069 + $0x2c0] sm:$0xff]
    %v4159 = vld [vmem:[%s4069 + $0x2c8] sm:$0xff]
    %v4160 = vld [vmem:[%s4069 + $0x2d0] sm:$0xff]
    %v4161 = vld [vmem:[%s4069 + $0x2d8] sm:$0xff]
    %v4162 = vld [vmem:[%s4069 + $0x2e0] sm:$0xff]
    %v4163 = vld [vmem:[%s4069 + $0x2e8] sm:$0xff]
    %v4164 = vld [vmem:[%s4069 + $0x2f0] sm:$0xff]
    %v4165 = vld [vmem:[%s4069 + $0x2f8] sm:$0xff]
    %v4166 = vld [vmem:[%s4069 + $0x300] sm:$0xff]
    %v4167 = vld [vmem:[%s4069 + $0x308] sm:$0xff]
    %v4168 = vld [vmem:[%s4069 + $0x310] sm:$0xff]
    %v4169 = vld [vmem:[%s4069 + $0x318] sm:$0xff]
    %v4170 = vld [vmem:[%s4069 + $0x320] sm:$0xff]
    %v4171 = vld [vmem:[%s4069 + $0x328] sm:$0xff]
    %v4172 = vld [vmem:[%s4069 + $0x330] sm:$0xff]
    %v4173 = vld [vmem:[%s4069 + $0x338] sm:$0xff]
    %v4174 = vld [vmem:[%s4069 + $0x340] sm:$0xff]
    %v4175 = vld [vmem:[%s4069 + $0x348] sm:$0xff]
    %v4176 = vld [vmem:[%s4069 + $0x350] sm:$0xff]
    %v4177 = vld [vmem:[%s4069 + $0x358] sm:$0xff]
    %v4178 = vld [vmem:[%s4069 + $0x360] sm:$0xff]
    %v4179 = vld [vmem:[%s4069 + $0x368] sm:$0xff]
    %v4180 = vld [vmem:[%s4069 + $0x370] sm:$0xff]
    %v4181 = vld [vmem:[%s4069 + $0x378] sm:$0xff]
    %v4182 = vld [vmem:[%s4069 + $0x380] sm:$0xff]
    %v4183 = vld [vmem:[%s4069 + $0x388] sm:$0xff]
    %v4184 = vld [vmem:[%s4069 + $0x390] sm:$0xff]
    %v4185 = vld [vmem:[%s4069 + $0x398] sm:$0xff]
    %v4186 = vld [vmem:[%s4069 + $0x3a0] sm:$0xff]
    %v4187 = vld [vmem:[%s4069 + $0x3a8] sm:$0xff]
    %v4188 = vld [vmem:[%s4069 + $0x3b0] sm:$0xff]
    %v4189 = vld [vmem:[%s4069 + $0x3b8] sm:$0xff]
    %v4190 = vld [vmem:[%s4069 + $0x3c0] sm:$0xff]
    %v4191 = vld [vmem:[%s4069 + $0x3c8] sm:$0xff]
    %v4192 = vld [vmem:[%s4069 + $0x3d0] sm:$0xff]
    %v4193 = vld [vmem:[%s4069 + $0x3d8] sm:$0xff]
    %v4194 = vld [vmem:[%s4069 + $0x3e0] sm:$0xff]
    %v4195 = vld [vmem:[%s4069 + $0x3e8] sm:$0xff]
    %v4196 = vld [vmem:[%s4069 + $0x3f0] sm:$0xff]
    %v4197 = vld [vmem:[%s4069 + $0x3f8] sm:$0xff]
    %v4198 = vlaneseq
    %v4199 = vshrl.u32 %v4198, 7
    %v4200 = vsub.s32 3, %v4199
    %v4201 = vrot.slane %v3486, %v4200
    %4202 = vmatprep.subr.mxu0 0.0
    %4203 = vmatpush1.msra.mxu0 %v4070
    %4204 = vmatprep.subr.mxu0 0.0
    %4205 = vmatpush1.msra.mxu0 %v4071
    %4206 = vmatprep.subr.mxu0 0.0
    %4207 = vmatpush1.msra.mxu0 %v4072
    %4208 = vmatprep.subr.mxu0 0.0
    %4209 = vmatpush1.msra.mxu0 %v4073
    %4210 = vmatprep.subr.mxu0 0.0
    %4211 = vmatpush1.msra.mxu0 %v4074
    %4212 = vmatprep.subr.mxu0 0.0
    %4213 = vmatpush1.msra.mxu0 %v4075
    %4214 = vmatprep.subr.mxu0 0.0
    %4215 = vmatpush1.msra.mxu0 %v4076
    %4216 = vmatprep.subr.mxu0 0.0
    %4217 = vmatpush1.msra.mxu0 %v4077
    %4218 = vmatprep.subr.mxu0 0.0
    %4219 = vmatpush1.msra.mxu0 %v4078
    %4220 = vmatprep.subr.mxu0 0.0
    %4221 = vmatpush1.msra.mxu0 %v4079
    %4222 = vmatprep.subr.mxu0 0.0
    %4223 = vmatpush1.msra.mxu0 %v4080
    %4224 = vmatprep.subr.mxu0 0.0
    %4225 = vmatpush1.msra.mxu0 %v4081
    %4226 = vmatprep.subr.mxu0 0.0
    %4227 = vmatpush1.msra.mxu0 %v4082
    %4228 = vmatprep.subr.mxu0 0.0
    %4229 = vmatpush1.msra.mxu0 %v4083
    %4230 = vmatprep.subr.mxu0 0.0
    %4231 = vmatpush1.msra.mxu0 %v4084
    %4232 = vmatprep.subr.mxu0 0.0
    %4233 = vmatpush1.msra.mxu0 %v4085
    %4234 = vmatprep.subr.mxu0 0.0
    %4235 = vmatpush1.msra.mxu0 %v4086
    %4236 = vmatprep.subr.mxu0 0.0
    %4237 = vmatpush1.msra.mxu0 %v4087
    %4238 = vmatprep.subr.mxu0 0.0
    %4239 = vmatpush1.msra.mxu0 %v4088
    %4240 = vmatprep.subr.mxu0 0.0
    %4241 = vmatpush1.msra.mxu0 %v4089
    %4242 = vmatprep.subr.mxu0 0.0
    %4243 = vmatpush1.msra.mxu0 %v4090
    %4244 = vmatprep.subr.mxu0 0.0
    %4245 = vmatpush1.msra.mxu0 %v4091
    %4246 = vmatprep.subr.mxu0 0.0
    %4247 = vmatpush1.msra.mxu0 %v4092
    %4248 = vmatprep.subr.mxu0 0.0
    %4249 = vmatpush1.msra.mxu0 %v4093
    %4250 = vmatprep.subr.mxu0 0.0
    %4251 = vmatpush1.msra.mxu0 %v4094
    %4252 = vmatprep.subr.mxu0 0.0
    %4253 = vmatpush1.msra.mxu0 %v4095
    %4254 = vmatprep.subr.mxu0 0.0
    %4255 = vmatpush1.msra.mxu0 %v4096
    %4256 = vmatprep.subr.mxu0 0.0
    %4257 = vmatpush1.msra.mxu0 %v4097
    %4258 = vmatprep.subr.mxu0 0.0
    %4259 = vmatpush1.msra.mxu0 %v4098
    %4260 = vmatprep.subr.mxu0 0.0
    %4261 = vmatpush1.msra.mxu0 %v4099
    %4262 = vmatprep.subr.mxu0 0.0
    %4263 = vmatpush1.msra.mxu0 %v4100
    %4264 = vmatprep.subr.mxu0 0.0
    %4265 = vmatpush1.msra.mxu0 %v4101
    %4266 = vmatprep.mubr.f32.mxu0 %v4054
    %4267 = vmatmul.mubr.f32.gmra.mrb[0].mxu0 %v4053
    %v4268 = vpop.f32.mrb[0].mxu0
    %v4269 = vadd.f32 %v4201, %v4268
    %v4270 = vpop.f32.mrb[0].mxu0
    %4271 = vmatprep.mubr.f32.mxu0 %v4062
    %4272 = vmatmul.mubr.f32.gmra.mrb[0].mxu0 %v4061
    %v4273 = vpop.f32.mrb[0].mxu0
    %v4274 = vadd.f32 %v4201, %v4273
    %v4275 = vpop.f32.mrb[0].mxu0
    %4276 = vdwg.mxu0
    %4277 = vmatprep.subr.mxu0 0.0
    %4278 = vmatpush1.msra.mxu0 %v4102
    %4279 = vmatprep.subr.mxu0 0.0
    %4280 = vmatpush1.msra.mxu0 %v4103
    %4281 = vmatprep.subr.mxu0 0.0
    %4282 = vmatpush1.msra.mxu0 %v4104
    %4283 = vmatprep.subr.mxu0 0.0
    %4284 = vmatpush1.msra.mxu0 %v4105
    %4285 = vmatprep.subr.mxu0 0.0
    %4286 = vmatpush1.msra.mxu0 %v4106
    %4287 = vmatprep.subr.mxu0 0.0
    %4288 = vmatpush1.msra.mxu0 %v4107
    %4289 = vmatprep.subr.mxu0 0.0
    %4290 = vmatpush1.msra.mxu0 %v4108
    %4291 = vmatprep.subr.mxu0 0.0
    %4292 = vmatpush1.msra.mxu0 %v4109
    %4293 = vmatprep.subr.mxu0 0.0
    %4294 = vmatpush1.msra.mxu0 %v4110
    %4295 = vmatprep.subr.mxu0 0.0
    %4296 = vmatpush1.msra.mxu0 %v4111
    %4297 = vmatprep.subr.mxu0 0.0
    %4298 = vmatpush1.msra.mxu0 %v4112
    %4299 = vmatprep.subr.mxu0 0.0
    %4300 = vmatpush1.msra.mxu0 %v4113
    %4301 = vmatprep.subr.mxu0 0.0
    %4302 = vmatpush1.msra.mxu0 %v4114
    %4303 = vmatprep.subr.mxu0 0.0
    %4304 = vmatpush1.msra.mxu0 %v4115
    %4305 = vmatprep.subr.mxu0 0.0
    %4306 = vmatpush1.msra.mxu0 %v4116
    %4307 = vmatprep.subr.mxu0 0.0
    %4308 = vmatpush1.msra.mxu0 %v4117
    %4309 = vmatprep.subr.mxu0 0.0
    %4310 = vmatpush1.msra.mxu0 %v4118
    %4311 = vmatprep.subr.mxu0 0.0
    %4312 = vmatpush1.msra.mxu0 %v4119
    %4313 = vmatprep.subr.mxu0 0.0
    %4314 = vmatpush1.msra.mxu0 %v4120
    %4315 = vmatprep.subr.mxu0 0.0
    %4316 = vmatpush1.msra.mxu0 %v4121
    %4317 = vmatprep.subr.mxu0 0.0
    %4318 = vmatpush1.msra.mxu0 %v4122
    %4319 = vmatprep.subr.mxu0 0.0
    %4320 = vmatpush1.msra.mxu0 %v4123
    %4321 = vmatprep.subr.mxu0 0.0
    %4322 = vmatpush1.msra.mxu0 %v4124
    %4323 = vmatprep.subr.mxu0 0.0
    %4324 = vmatpush1.msra.mxu0 %v4125
    %4325 = vmatprep.subr.mxu0 0.0
    %4326 = vmatpush1.msra.mxu0 %v4126
    %4327 = vmatprep.subr.mxu0 0.0
    %4328 = vmatpush1.msra.mxu0 %v4127
    %4329 = vmatprep.subr.mxu0 0.0
    %4330 = vmatpush1.msra.mxu0 %v4128
    %4331 = vmatprep.subr.mxu0 0.0
    %4332 = vmatpush1.msra.mxu0 %v4129
    %4333 = vmatprep.subr.mxu0 0.0
    %4334 = vmatpush1.msra.mxu0 %v4130
    %4335 = vmatprep.subr.mxu0 0.0
    %4336 = vmatpush1.msra.mxu0 %v4131
    %4337 = vmatprep.subr.mxu0 0.0
    %4338 = vmatpush1.msra.mxu0 %v4132
    %4339 = vmatprep.subr.mxu0 0.0
    %4340 = vmatpush1.msra.mxu0 %v4133
    %4341 = vmatprep.mubr.f32.mxu0 %v4056
    %4342 = vmatmul.mubr.f32.gmra.mrb[0].mxu0 %v4055
    %v4343 = vpop.f32.mrb[0].mxu0
    %v4344 = vadd.f32 %v4269, %v4343
    %v4345 = vpop.f32.mrb[0].mxu0
    %4346 = vmatprep.mubr.f32.mxu0 %v4064
    %4347 = vmatmul.mubr.f32.gmra.mrb[0].mxu0 %v4063
    %v4348 = vpop.f32.mrb[0].mxu0
    %v4349 = vadd.f32 %v4274, %v4348
    %v4350 = vpop.f32.mrb[0].mxu0
    %4351 = vdwg.mxu0
    %4352 = vmatprep.subr.mxu0 0.0
    %4353 = vmatpush1.msra.mxu0 %v4134
    %4354 = vmatprep.subr.mxu0 0.0
    %4355 = vmatpush1.msra.mxu0 %v4135
    %4356 = vmatprep.subr.mxu0 0.0
    %4357 = vmatpush1.msra.mxu0 %v4136
    %4358 = vmatprep.subr.mxu0 0.0
    %4359 = vmatpush1.msra.mxu0 %v4137
    %4360 = vmatprep.subr.mxu0 0.0
    %4361 = vmatpush1.msra.mxu0 %v4138
    %4362 = vmatprep.subr.mxu0 0.0
    %4363 = vmatpush1.msra.mxu0 %v4139
    %4364 = vmatprep.subr.mxu0 0.0
    %4365 = vmatpush1.msra.mxu0 %v4140
    %4366 = vmatprep.subr.mxu0 0.0
    %4367 = vmatpush1.msra.mxu0 %v4141
    %4368 = vmatprep.subr.mxu0 0.0
    %4369 = vmatpush1.msra.mxu0 %v4142
    %4370 = vmatprep.subr.mxu0 0.0
    %4371 = vmatpush1.msra.mxu0 %v4143
    %4372 = vmatprep.subr.mxu0 0.0
    %4373 = vmatpush1.msra.mxu0 %v4144
    %4374 = vmatprep.subr.mxu0 0.0
    %4375 = vmatpush1.msra.mxu0 %v4145
    %4376 = vmatprep.subr.mxu0 0.0
    %4377 = vmatpush1.msra.mxu0 %v4146
    %4378 = vmatprep.subr.mxu0 0.0
    %4379 = vmatpush1.msra.mxu0 %v4147
    %4380 = vmatprep.subr.mxu0 0.0
    %4381 = vmatpush1.msra.mxu0 %v4148
    %4382 = vmatprep.subr.mxu0 0.0
    %4383 = vmatpush1.msra.mxu0 %v4149
    %4384 = vmatprep.subr.mxu0 0.0
    %4385 = vmatpush1.msra.mxu0 %v4150
    %4386 = vmatprep.subr.mxu0 0.0
    %4387 = vmatpush1.msra.mxu0 %v4151
    %4388 = vmatprep.subr.mxu0 0.0
    %4389 = vmatpush1.msra.mxu0 %v4152
    %4390 = vmatprep.subr.mxu0 0.0
    %4391 = vmatpush1.msra.mxu0 %v4153
    %4392 = vmatprep.subr.mxu0 0.0
    %4393 = vmatpush1.msra.mxu0 %v4154
    %4394 = vmatprep.subr.mxu0 0.0
    %4395 = vmatpush1.msra.mxu0 %v4155
    %4396 = vmatprep.subr.mxu0 0.0
    %4397 = vmatpush1.msra.mxu0 %v4156
    %4398 = vmatprep.subr.mxu0 0.0
    %4399 = vmatpush1.msra.mxu0 %v4157
    %4400 = vmatprep.subr.mxu0 0.0
    %4401 = vmatpush1.msra.mxu0 %v4158
    %4402 = vmatprep.subr.mxu0 0.0
    %4403 = vmatpush1.msra.mxu0 %v4159
    %4404 = vmatprep.subr.mxu0 0.0
    %4405 = vmatpush1.msra.mxu0 %v4160
    %4406 = vmatprep.subr.mxu0 0.0
    %4407 = vmatpush1.msra.mxu0 %v4161
    %4408 = vmatprep.subr.mxu0 0.0
    %4409 = vmatpush1.msra.mxu0 %v4162
    %4410 = vmatprep.subr.mxu0 0.0
    %4411 = vmatpush1.msra.mxu0 %v4163
    %4412 = vmatprep.subr.mxu0 0.0
    %4413 = vmatpush1.msra.mxu0 %v4164
    %4414 = vmatprep.subr.mxu0 0.0
    %4415 = vmatpush1.msra.mxu0 %v4165
    %4416 = vmatprep.mubr.f32.mxu0 %v4058
    %4417 = vmatmul.mubr.f32.gmra.mrb[0].mxu0 %v4057
    %v4418 = vpop.f32.mrb[0].mxu0
    %v4419 = vadd.f32 %v4344, %v4418
    %v4420 = vpop.f32.mrb[0].mxu0
    %4421 = vmatprep.mubr.f32.mxu0 %v4066
    %4422 = vmatmul.mubr.f32.gmra.mrb[0].mxu0 %v4065
    %v4423 = vpop.f32.mrb[0].mxu0
    %v4424 = vadd.f32 %v4349, %v4423
    %v4425 = vpop.f32.mrb[0].mxu0
    %4426 = vdwg.mxu0
    %4427 = vmatprep.subr.mxu0 0.0
    %4428 = vmatpush1.msra.mxu0 %v4166
    %4429 = vmatprep.subr.mxu0 0.0
    %4430 = vmatpush1.msra.mxu0 %v4167
    %4431 = vmatprep.subr.mxu0 0.0
    %4432 = vmatpush1.msra.mxu0 %v4168
    %4433 = vmatprep.subr.mxu0 0.0
    %4434 = vmatpush1.msra.mxu0 %v4169
    %4435 = vmatprep.subr.mxu0 0.0
    %4436 = vmatpush1.msra.mxu0 %v4170
    %4437 = vmatprep.subr.mxu0 0.0
    %4438 = vmatpush1.msra.mxu0 %v4171
    %4439 = vmatprep.subr.mxu0 0.0
    %4440 = vmatpush1.msra.mxu0 %v4172
    %4441 = vmatprep.subr.mxu0 0.0
    %4442 = vmatpush1.msra.mxu0 %v4173
    %4443 = vmatprep.subr.mxu0 0.0
    %4444 = vmatpush1.msra.mxu0 %v4174
    %4445 = vmatprep.subr.mxu0 0.0
    %4446 = vmatpush1.msra.mxu0 %v4175
    %4447 = vmatprep.subr.mxu0 0.0
    %4448 = vmatpush1.msra.mxu0 %v4176
    %4449 = vmatprep.subr.mxu0 0.0
    %4450 = vmatpush1.msra.mxu0 %v4177
    %4451 = vmatprep.subr.mxu0 0.0
    %4452 = vmatpush1.msra.mxu0 %v4178
    %4453 = vmatprep.subr.mxu0 0.0
    %4454 = vmatpush1.msra.mxu0 %v4179
    %4455 = vmatprep.subr.mxu0 0.0
    %4456 = vmatpush1.msra.mxu0 %v4180
    %4457 = vmatprep.subr.mxu0 0.0
    %4458 = vmatpush1.msra.mxu0 %v4181
    %4459 = vmatprep.subr.mxu0 0.0
    %4460 = vmatpush1.msra.mxu0 %v4182
    %4461 = vmatprep.subr.mxu0 0.0
    %4462 = vmatpush1.msra.mxu0 %v4183
    %4463 = vmatprep.subr.mxu0 0.0
    %4464 = vmatpush1.msra.mxu0 %v4184
    %4465 = vmatprep.subr.mxu0 0.0
    %4466 = vmatpush1.msra.mxu0 %v4185
    %4467 = vmatprep.subr.mxu0 0.0
    %4468 = vmatpush1.msra.mxu0 %v4186
    %4469 = vmatprep.subr.mxu0 0.0
    %4470 = vmatpush1.msra.mxu0 %v4187
    %4471 = vmatprep.subr.mxu0 0.0
    %4472 = vmatpush1.msra.mxu0 %v4188
    %4473 = vmatprep.subr.mxu0 0.0
    %4474 = vmatpush1.msra.mxu0 %v4189
    %4475 = vmatprep.subr.mxu0 0.0
    %4476 = vmatpush1.msra.mxu0 %v4190
    %4477 = vmatprep.subr.mxu0 0.0
    %4478 = vmatpush1.msra.mxu0 %v4191
    %4479 = vmatprep.subr.mxu0 0.0
    %4480 = vmatpush1.msra.mxu0 %v4192
    %4481 = vmatprep.subr.mxu0 0.0
    %4482 = vmatpush1.msra.mxu0 %v4193
    %4483 = vmatprep.subr.mxu0 0.0
    %4484 = vmatpush1.msra.mxu0 %v4194
    %4485 = vmatprep.subr.mxu0 0.0
    %4486 = vmatpush1.msra.mxu0 %v4195
    %4487 = vmatprep.subr.mxu0 0.0
    %4488 = vmatpush1.msra.mxu0 %v4196
    %4489 = vmatprep.subr.mxu0 0.0
    %4490 = vmatpush1.msra.mxu0 %v4197
    %4491 = vmatprep.mubr.f32.mxu0 %v4060
    %4492 = vmatmul.mubr.f32.gmra.mrb[0].mxu0 %v4059
    %v4493 = vpop.f32.mrb[0].mxu0
    %v4494 = vadd.f32 %v4419, %v4493
    %v4495 = vpop.f32.mrb[0].mxu0
    %4496 = vmatprep.mubr.f32.mxu0 %v4068
    %4497 = vmatmul.mubr.f32.gmra.mrb[0].mxu0 %v4067
    %v4498 = vpop.f32.mrb[0].mxu0
    %v4499 = vadd.f32 %v4424, %v4498
    %v4500 = vpop.f32.mrb[0].mxu0
    %4501 = vdwg.mxu0
    %v4502 = vadd.f32 %v3645, %v4494
    %v4503 = vadd.f32 %v3646, %v4499
    %v4504 = vsel %vm108, %v4502, 0.0
    %4505 = vadd.xlane.f32.xlu0 %v4504
    %v4506 = vpop.xlane.xlu0 %4505
    %v4507 = vsel %vm108, %v4503, 0.0
    %4508 = vadd.xlane.f32.xlu0 %v4507
    %v4509 = vpop.xlane.xlu0 %4508
    %v4510 = vmul.f32 %v4506, %v1397
    %v4511 = vmul.f32 %v4509, %v1397
    %v4512 = vsub.f32 %v4502, %v4510
    %v4513 = vsub.f32 %v4503, %v4511
    %v4514 = vmul.f32 %v4512, %v4512
    %v4515 = vmul.f32 %v4513, %v4513
    %v4516 = vsel %vm108, %v4514, 0.0
    %4517 = vadd.xlane.f32.xlu0 %v4516
    %v4518 = vpop.xlane.xlu0 %4517
    %v4519 = vsel %vm108, %v4515, 0.0
    %4520 = vadd.xlane.f32.xlu0 %v4519
    %v4521 = vpop.xlane.xlu0 %4520
    %v4522 = vmul.f32 %v4518, %v1397
    %v4523 = vmul.f32 %v4521, %v1397
    %v4524 = vadd.f32 %v4522, 1e-05
    %v4525 = vadd.f32 %v4523, 1e-05
    %v4526 = vrsqrt.pop %v4524
    %v4527 = vrsqrt.pop %v4525
    %v4528 = vmul.f32 %v4512, %v4526
    %v4529 = vmul.f32 %v4513, %v4527
    %v4530 = vlaneseq
    %v4531 = vshrl.u32 %v4530, 7
    %v4532 = vsub.s32 4, %v4531
    %v4533 = vrot.slane %v3486, %v4532
    %v4534 = vmul.f32 %v4528, %v4533
    %v4535 = vmul.f32 %v4529, %v4533
    %v4536 = vlaneseq
    %v4537 = vshrl.u32 %v4536, 7
    %v4538 = vsub.s32 5, %v4537
    %v4539 = vrot.slane %v3486, %v4538
    %v4540 = vadd.f32 %v4534, %v4539
    %v4541 = vadd.f32 %v4535, %v4539
    %v4542 = vld [vmem:[%s9] sm:$0xff]
    %v4543 = vld [vmem:[%s9 + $0x8] sm:$0xff]
    %v4544 = vld [vmem:[%s9 + $0x10] sm:$0xff]
    %v4545 = vld [vmem:[%s9 + $0x18] sm:$0xff]
    %v4546 = vld [vmem:[%s9 + $0x20] sm:$0xff]
    %v4547 = vld [vmem:[%s9 + $0x28] sm:$0xff]
    %v4548 = vld [vmem:[%s10] sm:$0x1]
    %v4550 = vlaneseq
    %v4551 = vshrl.u32 %v4550, 7
    %v4552 = vsub.s32 0, %v4551
    %v4553 = vrot.slane %v4548, %v4552
    %v4556 = vsel %vm108, %v4540, 0
    %v4559 = vsel %vm108, %v4541, 0
    %4561 = vmatprep.subr.mxu0 0.0
    %4562 = vmatpush1.msra.mxu0 %v4542
    %4563 = vmatprep.subr.mxu0 0.0
    %4564 = vmatpush1.msra.mxu0 %v4543
    %4565 = vmatprep.subr.mxu0 0.0
    %4566 = vmatpush1.msra.mxu0 %v4544
    %4567 = vmatprep.subr.mxu0 0.0
    %4568 = vmatpush1.msra.mxu0 %v4545
    %4569 = vmatprep.subr.mxu0 0.0
    %4570 = vmatpush1.msra.mxu0 %v4546
    %4571 = vmatprep.subr.mxu0 0.0
    %4572 = vmatpush1.msra.mxu0 %v4547
    %4573 = vmatprep.subr.mxu0 0.0
    %4574 = vmatpush1.msra.mxu0 0.0
    %4575 = vmatprep.subr.mxu0 0.0
    %4576 = vmatpush1.msra.mxu0 0.0
    %4577 = vmatprep.subr.mxu0 0.0
    %4578 = vmatpush1.msra.mxu0 0.0
    %4579 = vmatprep.subr.mxu0 0.0
    %4580 = vmatpush1.msra.mxu0 0.0
    %4581 = vmatprep.subr.mxu0 0.0
    %4582 = vmatpush1.msra.mxu0 0.0
    %4583 = vmatprep.subr.mxu0 0.0
    %4584 = vmatpush1.msra.mxu0 0.0
    %4585 = vmatprep.subr.mxu0 0.0
    %4586 = vmatpush1.msra.mxu0 0.0
    %4587 = vmatprep.subr.mxu0 0.0
    %4588 = vmatpush1.msra.mxu0 0.0
    %4589 = vmatprep.subr.mxu0 0.0
    %4590 = vmatpush1.msra.mxu0 0.0
    %4591 = vmatprep.subr.mxu0 0.0
    %4592 = vmatpush1.msra.mxu0 0.0
    %4593 = vmatprep.subr.mxu0 0.0
    %4594 = vmatpush1.msra.mxu0 0.0
    %4595 = vmatprep.subr.mxu0 0.0
    %4596 = vmatpush1.msra.mxu0 0.0
    %4597 = vmatprep.subr.mxu0 0.0
    %4598 = vmatpush1.msra.mxu0 0.0
    %4599 = vmatprep.subr.mxu0 0.0
    %4600 = vmatpush1.msra.mxu0 0.0
    %4601 = vmatprep.subr.mxu0 0.0
    %4602 = vmatpush1.msra.mxu0 0.0
    %4603 = vmatprep.subr.mxu0 0.0
    %4604 = vmatpush1.msra.mxu0 0.0
    %4605 = vmatprep.subr.mxu0 0.0
    %4606 = vmatpush1.msra.mxu0 0.0
    %4607 = vmatprep.subr.mxu0 0.0
    %4608 = vmatpush1.msra.mxu0 0.0
    %4609 = vmatprep.subr.mxu0 0.0
    %4610 = vmatpush1.msra.mxu0 0.0
    %4611 = vmatprep.subr.mxu0 0.0
    %4612 = vmatpush1.msra.mxu0 0.0
    %4613 = vmatprep.subr.mxu0 0.0
    %4614 = vmatpush1.msra.mxu0 0.0
    %4615 = vmatprep.subr.mxu0 0.0
    %4616 = vmatpush1.msra.mxu0 0.0
    %4617 = vmatprep.subr.mxu0 0.0
    %4618 = vmatpush1.msra.mxu0 0.0
    %4619 = vmatprep.subr.mxu0 0.0
    %4620 = vmatpush1.msra.mxu0 0.0
    %4621 = vmatprep.subr.mxu0 0.0
    %4622 = vmatpush1.msra.mxu0 0.0
    %4623 = vmatprep.subr.mxu0 0.0
    %4624 = vmatpush1.msra.mxu0 0.0
    %4625 = vmatprep.mubr.f32.mxu0 0.0
    %4626 = vmatmul.mubr.f32.gmra.mrb[0].mxu0 %v4556
    %v4627 = vpop.f32.mrb[0].mxu0
    %v4628 = vadd.f32 %v4553, %v4627
    %v4629 = vpop.f32.mrb[0].mxu0
    %4630 = vmatprep.mubr.f32.mxu0 0.0
    %4631 = vmatmul.mubr.f32.gmra.mrb[0].mxu0 %v4559
    %v4632 = vpop.f32.mrb[0].mxu0
    %v4633 = vadd.f32 %v4553, %v4632
    %v4634 = vpop.f32.mrb[0].mxu0
    %4635 = vdwg.mxu0
    %4636 = vst [vmem:[#allocation2] sm:$0xff] %v4628
    %4637 = vst [vmem:[#allocation2 + $0x8] sm:$0xff] %v4633
    // Predicated region
    $region46: #{tpu_custom_call.1} parent=1 // pred_check
      _
    $region47: #{tpu_custom_call.1} parent=1 // pred_check_branch
      %4639 = sbr.rel (0) target = $region49
    $region48: #{tpu_custom_call.1} parent=1 // pred_region
      %s4641 = ssub.s32 256, 256
      %4642 = vsyncadd [#allocation3], %s4641
      %s4643 = sshll.u32 [#allocation2], 4
      %s4644 = int_to_ptr.vmem [resolvable:$true] %s4643
      %4649 = dma.vmem_to_hbm [thread:$0]  %s4644, 256, %s11, [#allocation3], 128, 128, 8
    $region49: #{tpu_custom_call.1} parent=1 // pred_fallthru
      _
    // Predicated region
    $region50: #{tpu_custom_call.1} parent=1 // pred_check
      _
    $region51: #{tpu_custom_call.1} parent=1 // pred_check_branch
      %4651 = sbr.rel (0) target = $region53
    $region52: #{tpu_custom_call.1} parent=1 // pred_region
      %4652 = dma.done [#allocation3], 256
    $region53: #{tpu_custom_call.1} parent=1 // pred_fallthru
      _
    %4653 = vsyncpa [#allocation3], 1

</llo_original>
